<compile_context>
chip_gen: v6e
topology: v6e:2x2x1
jax: 0.10.0
libtpu: 0.0.40
codegen_flags: <defaults>
</compile_context>

<pallas_src>
import functools

import jax
import jax.numpy as jnp
from jax import lax
from jax.experimental import pallas as pl
from jax.experimental.pallas import tpu as pltpu


# ----------------------------------------------------------------------------
# Fused kernel
# ----------------------------------------------------------------------------
def tcn_kernel(x_ref, *refs, block_cfg, kernel_size, seq_len):
    # refs = per block: [conv1 taps (k), conv1 bias, conv2 taps (k), b2,
    #                    conv3 taps (k), b3], then the output ref.
    # When a block downsamples, the 1x1 residual conv is fused into conv1's
    # taps (rows [cout_p : 2*cout_p]) so each block is exactly 3 convs.
    o_ref = refs[-1]
    w_refs = refs[:-1]
    BL = x_ref.shape[-1]

    # Hoisted once: within-sequence time index and the causal mask for every
    # shift used by any block (JAX does not CSE broadcast_in_dim, so we build
    # these exactly once instead of 3x per block).
    t = lax.rem(lax.broadcasted_iota(jnp.int32, (1, BL), 1), seq_len)
    shifts = sorted({d * (kernel_size - 1 - j)
                     for d, _, _ in block_cfg for j in range(kernel_size - 1)})
    masks = {s: (t >= s) for s in shifts}

    def taps(h, dilation):
        # One (C, BL) operand per tap: shifted + causally masked for the past
        # taps, raw `h` for the zero-shift tap.  VPU work stays in f32
        # (v5e has no bf16 VALU); only the matmul operands are cast below.
        parts = []
        for j in range(kernel_size - 1):
            s = dilation * (kernel_size - 1 - j)  # static shift
            parts.append(jnp.where(masks[s], pltpu.roll(h, shift=s, axis=1),
                                   0.0))
        parts.append(h)
        return parts

    def conv(tap_list, w_tap_refs, b_ref):
        # k accumulated per-tap MXU matmuls instead of a (k*Cin, BL)
        # concatenate copy; operands in the (pre-cast) weight dtype (bf16 on
        # the fast path), accumulation in f32.
        acc = None
        for tap, w_ref in zip(tap_list, w_tap_refs):
            w = w_ref[...]
            y = jnp.dot(w, tap.astype(w.dtype),
                        preferred_element_type=jnp.float32)
            acc = y if acc is None else acc + y
        return acc + b_ref[...]

    k = kernel_size
    h = x_ref[...]
    idx = 0
    for dilation, has_downsample, cout_p in block_cfg:
        x_in = h
        # conv1 (+ fused 1x1 residual rows) -> chomp -> ReLU
        y1 = conv(taps(x_in, dilation), w_refs[idx:idx + k], w_refs[idx + k])
        idx += k + 1
        if has_downsample:
            h = jnp.maximum(y1[:cout_p], 0.0)
            res = y1[cout_p:]
        else:
            h = jnp.maximum(y1, 0.0)
            res = x_in
        # conv2 -> chomp -> ReLU
        h = jnp.maximum(conv(taps(h, dilation),
                             w_refs[idx:idx + k], w_refs[idx + k]), 0.0)
        idx += k + 1
        # conv3 -> chomp -> ReLU
        h = jnp.maximum(conv(taps(h, dilation),
                             w_refs[idx:idx + k], w_refs[idx + k]), 0.0)
        idx += k + 1
        # TODO(synk): nn.Dropout is stochastic in train mode; implemented here
        # as identity (inference/eval semantics).
        h = jnp.maximum(h + res, 0.0)

    o_ref[...] = h


# ----------------------------------------------------------------------------
# Wrapper / glue
# ----------------------------------------------------------------------------
def _weight_norm(v, g):
    # PyTorch weight_norm(dim=0) for Conv1d weight (Cout, Cin, k)
    norm = jnp.sqrt(jnp.sum(v * v, axis=(1, 2), keepdims=True))
    return g * v / norm


def _round_up(n, m):
    return ((n + m - 1) // m) * m


def _pad_to(a, shape):
    return jnp.pad(a, [(0, s - d) for s, d in zip(shape, a.shape)])


def _tpu_vmem_capacity():
    try:
        return int(pltpu.get_tpu_info().vmem_capacity_bytes)
    except Exception:
        return 64 * 1024 * 1024  # conservative: v7x per-TC VMEM


def _num_tensorcores():
    try:
        if "v7" in jax.devices()[0].device_kind.lower():
            return 2
    except Exception:
        pass
    return 1


def _single_buffer_mode():
    # Weights/biases use a constant block index -> nothing to prefetch; a
    # single buffer halves their VMEM footprint.  Probe support, else None.
    try:
        mode = pl.Buffered(1)
        pl.BlockSpec((8, 128), lambda n: (0, 0), pipeline_mode=mode)
        return mode
    except Exception:
        return None


def _rep_spec(a, pipeline_mode):
    nd = a.ndim
    imap = lambda n, _nd=nd: (0,) * _nd
    if pipeline_mode is not None:
        return pl.BlockSpec(a.shape, imap, pipeline_mode=pipeline_mode)
    return pl.BlockSpec(a.shape, imap)


def _vmem_needed(b_tile, l_pad, cp, weight_bytes):
    # Conservative per-grid-step resident set: double-buffered in/out f32
    # activation blocks + in-kernel temporaries (x_in/res, current h, rolled
    # tap, bf16 cast, dot result) + resident weights.
    bl = b_tile * l_pad
    io = (2 * cp[0] + 2 * cp[-1]) * bl * 4
    temps = 6 * max(cp) * bl * 4
    return weight_bytes + io + temps


def _choose_batch_tile(n, l_pad, cp, weight_bytes, vmem_budget, num_cores):
    # Largest batch tile (divisor of N) whose resident set fits the VMEM
    # budget; on multi-TensorCore parts (v7x) prefer >= num_cores grid points
    # so dimension_semantics=("parallel",) can feed both cores.  On single-TC
    # parts (v5e/v6e) never shrink the tile just to add grid points.
    divisors = [b for b in range(n, 0, -1) if n % b == 0]
    fits = [b for b in divisors
            if _vmem_needed(b, l_pad, cp, weight_bytes) <= vmem_budget]
    if not fits:
        # TODO(synk): add an L-tiling grid axis with a causal halo of the
        # cumulative receptive field (1 + 3*(k-1)*sum_i 2^i) so tile size
        # decouples from sequence length for very long sequences.
        return 1
    if num_cores > 1:
        multi = [b for b in fits if n // b >= num_cores]
        if multi:
            return multi[0]
    return fits[0]


def temporal_conv_net_pallas(x, block_params, kernel_size,
                             matmul_dtype=jnp.bfloat16):
    N, c0, L = x.shape
    channels = [c0] + [p["v1"].shape[0] for p in block_params]
    cp = [_round_up(c, 8) for c in channels]   # activations stay f32 -> 8-row pad
    L_pad = _round_up(L, 128)                  # lane-dense blocks & unmasked vst

    # (N, C, L) -> (C_pad, N*L_pad): lane-dense layout plumbing, once, in XLA.
    x_flat = jnp.pad(x, ((0, 0), (0, cp[0] - c0), (0, L_pad - L)))
    x_flat = x_flat.transpose(1, 0, 2).reshape(cp[0], N * L_pad)

    inputs = [x_flat]
    block_cfg = []
    flops = 0
    for i, p in enumerate(block_params):
        cin_p, cout_p = cp[i], cp[i + 1]
        dilation = 2 ** i
        has_downsample = "wd" in p
        ins_p = [cin_p, cout_p, cout_p]
        for li in range(3):
            w = _weight_norm(p[f"v{li + 1}"], p[f"g{li + 1}"])  # (Cout, Cin, k)
            b = _pad_to(p[f"b{li + 1}"][:, None], (cout_p, 1))
            for j in range(kernel_size):
                tap = _pad_to(w[:, :, j], (cout_p, ins_p[li]))
                if li == 0 and has_downsample:
                    # Fuse the 1x1 residual conv into conv1: extra Cout rows,
                    # non-zero only on the zero-shift tap.
                    bottom = (_pad_to(p["wd"][:, :, 0], (cout_p, cin_p))
                              if j == kernel_size - 1
                              else jnp.zeros((cout_p, cin_p), jnp.float32))
                    tap = jnp.concatenate([tap, bottom], axis=0)
                inputs.append(tap.astype(matmul_dtype))  # bf16 weights (wrapper-side cast)
            if li == 0 and has_downsample:
                b = jnp.concatenate(
                    [b, _pad_to(p["bd"][:, None], (cout_p, 1))], axis=0)
            inputs.append(b.astype(jnp.float32))
        block_cfg.append((dilation, has_downsample, cout_p))
        rows1 = 2 * cout_p if has_downsample else cout_p
        flops += 2 * N * L_pad * kernel_size * (rows1 * cin_p + 2 * cout_p * cout_p)

    # --- VMEM budget / tile selection (generation-aware) ---------------------
    sbuf = _single_buffer_mode()
    w_bytes_1x = sum(int(a.size) * jnp.dtype(a.dtype).itemsize for a in inputs[1:])
    resident_w = w_bytes_1x * (1 if sbuf is not None else 2)
    vmem_cap = _tpu_vmem_capacity()            # 128 MiB v5e/v6e, 64 MiB v7x
    num_cores = _num_tensorcores()
    B_tile = _choose_batch_tile(N, L_pad, cp, resident_w,
                                int(0.8 * vmem_cap), num_cores)
    BL = B_tile * L_pad
    needed = _vmem_needed(B_tile, L_pad, cp, resident_w)
    vmem_limit = max(needed + (16 << 20), 48 << 20)
    vmem_limit = min(vmem_limit, max(int(0.95 * vmem_cap), needed))

    out_bytes = cp[-1] * N * L_pad * 4
    cost = pl.CostEstimate(
        flops=int(flops), transcendentals=0,
        bytes_accessed=int(x_flat.size) * 4 + int(out_bytes) + int(w_bytes_1x))

    kernel = functools.partial(tcn_kernel, block_cfg=tuple(block_cfg),
                               kernel_size=kernel_size, seq_len=L_pad)

    def call(weight_mode):
        in_specs = [pl.BlockSpec((cp[0], BL), lambda n: (0, n))]
        in_specs += [_rep_spec(a, weight_mode) for a in inputs[1:]]
        return pl.pallas_call(
            kernel,
            out_shape=jax.ShapeDtypeStruct((cp[-1], N * L_pad), jnp.float32),
            grid=(N // B_tile,),
            in_specs=in_specs,
            out_specs=pl.BlockSpec((cp[-1], BL), lambda n: (0, n)),
            compiler_params=pltpu.CompilerParams(
                dimension_semantics=("parallel",),
                vmem_limit_bytes=int(vmem_limit)),
            cost_estimate=cost,
        )(*inputs)

    # TODO(synk): if resident weights ever exceed ~1/4 of VMEM (deep/wide
    # configs on v7x), stream them from HBM (memory_space=pl.ANY) with a
    # manually double-buffered per-block DMA instead of keeping all resident.
    if sbuf is not None:
        try:
            y_flat = call(sbuf)
        except Exception:
            y_flat = call(None)  # fall back to default double-buffered weights
    else:
        y_flat = call(None)

    y = y_flat.reshape(cp[-1], N, L_pad).transpose(1, 0, 2)
    return y[:, :channels[-1], :L]


# ----------------------------------------------------------------------------
# Pure-JAX reference (for correctness check)
# ----------------------------------------------------------------------------
def _ref_causal_conv(x, w, b, dilation, kernel_size):
    pad = (kernel_size - 1) * dilation
    y = jax.lax.conv_general_dilated(
        x, w, window_strides=(1,), padding=[(pad, pad)], rhs_dilation=(dilation,),
        dimension_numbers=("NCH", "OIH", "NCH"))
    y = y[:, :, : x.shape[2]]  # Chomp1d
    return y + b[None, :, None]


def _ref_block(x, p, dilation, kernel_size):
    w1 = _weight_norm(p["v1"], p["g1"])
    w2 = _weight_norm(p["v2"], p["g2"])
    w3 = _weight_norm(p["v3"], p["g3"])
    h = jax.nn.relu(_ref_causal_conv(x, w1, p["b1"], dilation, kernel_size))
    h = jax.nn.relu(_ref_causal_conv(h, w2, p["b2"], dilation, kernel_size))
    h = jax.nn.relu(_ref_causal_conv(h, w3, p["b3"], dilation, kernel_size))
    if "wd" in p:
        res = jnp.einsum("oi,nil->nol", p["wd"][:, :, 0], x) + p["bd"][None, :, None]
    else:
        res = x
    return jax.nn.relu(h + res)


def temporal_conv_net_ref(x, block_params, kernel_size):
    h = x
    for i, p in enumerate(block_params):
        h = _ref_block(h, p, dilation=2 ** i, kernel_size=kernel_size)
    return h


# ----------------------------------------------------------------------------
# Deterministic parameter initialization (synthetic; shapes from __init__)
# ----------------------------------------------------------------------------
def init_params(key, num_inputs, num_channels, kernel_size):
    block_params = []
    cin = num_inputs
    for cout in num_channels:
        keys = jax.random.split(key, 12)
        key = keys[-1]
        p = {}
        ins = [cin, cout, cout]
        for li in range(3):
            kv, kg, kb = keys[3 * li], keys[3 * li + 1], keys[3 * li + 2]
            p[f"v{li+1}"] = 0.01 * jax.random.normal(kv, (cout, ins[li], kernel_size), jnp.float32)
            p[f"g{li+1}"] = 1.0 + 0.1 * jax.random.normal(kg, (cout, 1, 1), jnp.float32)
            p[f"b{li+1}"] = 0.1 * jax.random.normal(kb, (cout,), jnp.float32)
        if cin != cout:
            p["wd"] = 0.01 * jax.random.normal(keys[9], (cout, cin, 1), jnp.float32)
            p["bd"] = 0.1 * jax.random.normal(keys[10], (cout,), jnp.float32)
        block_params.append(p)
        cin = cout
    return block_params


if __name__ == "__main__":
    key = jax.random.PRNGKey(0)
    kernel_size = 2

    # Config 1: lane-aligned L, mixed downsample / identity-residual blocks.
    N, num_inputs, L = 4, 4, 128
    num_channels = [8, 8]
    k_x, k_p = jax.random.split(key)
    x = jax.random.normal(k_x, (N, num_inputs, L), jnp.float32)
    params = init_params(k_p, num_inputs, num_channels, kernel_size)
    ref = temporal_conv_net_ref(x, params, kernel_size)

    # f32 MXU operands: strict check against the f32 reference.
    out_f32 = jax.block_until_ready(
        temporal_conv_net_pallas(x, params, kernel_size, matmul_dtype=jnp.float32))
    assert out_f32.shape == (N, num_channels[-1], L)
    assert jnp.allclose(out_f32, ref, atol=2e-4, rtol=2e-4), (
        float(jnp.max(jnp.abs(out_f32 - ref))))

    # bf16 MXU operands (full-rate MXU path on v6e/v7x), f32 accumulation.
    out_bf16 = jax.block_until_ready(
        temporal_conv_net_pallas(x, params, kernel_size, matmul_dtype=jnp.bfloat16))
    assert jnp.allclose(out_bf16, ref, atol=2e-2, rtol=2e-2), (
        float(jnp.max(jnp.abs(out_bf16 - ref))))

    # Config 2: unaligned L / odd batch / channel growth — exercises L padding.
    N2, ci2, L2 = 3, 5, 96
    ch2 = [8, 16]
    k_x2, k_p2 = jax.random.split(k_p)
    x2 = jax.random.normal(k_x2, (N2, ci2, L2), jnp.float32)
    params2 = init_params(k_p2, ci2, ch2, kernel_size)
    ref2 = temporal_conv_net_ref(x2, params2, kernel_size)
    out2 = jax.block_until_ready(
        temporal_conv_net_pallas(x2, params2, kernel_size, matmul_dtype=jnp.float32))
    assert out2.shape == (N2, ch2[-1], L2)
    assert jnp.allclose(out2, ref2, atol=2e-4, rtol=2e-4), (
        float(jnp.max(jnp.abs(out2 - ref2))))

    print("KERNEL_OK")
</pallas_src>

<mosaic_0001>
module attributes {stable_mosaic.version = 11 : i64} {
  func.func @tcn_kernel(%arg0: i32, %arg1: memref<8x512xf32, #tpu.memory_space<vmem>>, %arg2: memref<16x8xf32, #tpu.memory_space<vmem>>, %arg3: memref<16x8xf32, #tpu.memory_space<vmem>>, %arg4: memref<16x1xf32, #tpu.memory_space<vmem>>, %arg5: memref<8x8xf32, #tpu.memory_space<vmem>>, %arg6: memref<8x8xf32, #tpu.memory_space<vmem>>, %arg7: memref<8x1xf32, #tpu.memory_space<vmem>>, %arg8: memref<8x8xf32, #tpu.memory_space<vmem>>, %arg9: memref<8x8xf32, #tpu.memory_space<vmem>>, %arg10: memref<8x1xf32, #tpu.memory_space<vmem>>, %arg11: memref<8x8xf32, #tpu.memory_space<vmem>>, %arg12: memref<8x8xf32, #tpu.memory_space<vmem>>, %arg13: memref<8x1xf32, #tpu.memory_space<vmem>>, %arg14: memref<8x8xf32, #tpu.memory_space<vmem>>, %arg15: memref<8x8xf32, #tpu.memory_space<vmem>>, %arg16: memref<8x1xf32, #tpu.memory_space<vmem>>, %arg17: memref<8x8xf32, #tpu.memory_space<vmem>>, %arg18: memref<8x8xf32, #tpu.memory_space<vmem>>, %arg19: memref<8x1xf32, #tpu.memory_space<vmem>>, %arg20: memref<8x512xf32, #tpu.memory_space<vmem>>) attributes {dimension_semantics = [#tpu.dimension_semantics<parallel>], iteration_bounds = array<i64: 1>, scalar_prefetch = 0 : i64, scratch_operands = 0 : i64, tpu.core_type = #tpu.core_type<tc>, window_params = [{transform_indices = @transform_0, window_bounds = array<i64: 8, 512>}, {pipeline_mode = #tpu.pipeline_mode<synchronous>, transform_indices = @transform_1, window_bounds = array<i64: 16, 8>}, {pipeline_mode = #tpu.pipeline_mode<synchronous>, transform_indices = @transform_2, window_bounds = array<i64: 16, 8>}, {pipeline_mode = #tpu.pipeline_mode<synchronous>, transform_indices = @transform_3, window_bounds = array<i64: 16, 1>}, {pipeline_mode = #tpu.pipeline_mode<synchronous>, transform_indices = @transform_4, window_bounds = array<i64: 8, 8>}, {pipeline_mode = #tpu.pipeline_mode<synchronous>, transform_indices = @transform_5, window_bounds = array<i64: 8, 8>}, {pipeline_mode = #tpu.pipeline_mode<synchronous>, transform_indices = @transform_6, window_bounds = array<i64: 8, 1>}, {pipeline_mode = #tpu.pipeline_mode<synchronous>, transform_indices = @transform_7, window_bounds = array<i64: 8, 8>}, {pipeline_mode = #tpu.pipeline_mode<synchronous>, transform_indices = @transform_8, window_bounds = array<i64: 8, 8>}, {pipeline_mode = #tpu.pipeline_mode<synchronous>, transform_indices = @transform_9, window_bounds = array<i64: 8, 1>}, {pipeline_mode = #tpu.pipeline_mode<synchronous>, transform_indices = @transform_10, window_bounds = array<i64: 8, 8>}, {pipeline_mode = #tpu.pipeline_mode<synchronous>, transform_indices = @transform_11, window_bounds = array<i64: 8, 8>}, {pipeline_mode = #tpu.pipeline_mode<synchronous>, transform_indices = @transform_12, window_bounds = array<i64: 8, 1>}, {pipeline_mode = #tpu.pipeline_mode<synchronous>, transform_indices = @transform_13, window_bounds = array<i64: 8, 8>}, {pipeline_mode = #tpu.pipeline_mode<synchronous>, transform_indices = @transform_14, window_bounds = array<i64: 8, 8>}, {pipeline_mode = #tpu.pipeline_mode<synchronous>, transform_indices = @transform_15, window_bounds = array<i64: 8, 1>}, {pipeline_mode = #tpu.pipeline_mode<synchronous>, transform_indices = @transform_16, window_bounds = array<i64: 8, 8>}, {pipeline_mode = #tpu.pipeline_mode<synchronous>, transform_indices = @transform_17, window_bounds = array<i64: 8, 8>}, {pipeline_mode = #tpu.pipeline_mode<synchronous>, transform_indices = @transform_18, window_bounds = array<i64: 8, 1>}, {transform_indices = @transform_19, window_bounds = array<i64: 8, 512>}]} {
    %0 = tpu.iota {dimensions = array<i32: 1>} : vector<1x512xi32>
    %c128_i32 = arith.constant 128 : i32
    %1 = vector.broadcast %c128_i32 : i32 to vector<1x512xi32>
    %2 = arith.remsi %0, %1 : vector<1x512xi32>
    %c1_i32 = arith.constant 1 : i32
    %3 = vector.broadcast %c1_i32 : i32 to vector<1x512xi32>
    %4 = arith.cmpi sge, %2, %3 : vector<1x512xi32>
    %c2_i32 = arith.constant 2 : i32
    %5 = vector.broadcast %c2_i32 : i32 to vector<1x512xi32>
    %6 = arith.cmpi sge, %2, %5 : vector<1x512xi32>
    %c0 = arith.constant 0 : index
    %c0_0 = arith.constant 0 : index
    %7 = vector.load %arg1[%c0, %c0_0] : memref<8x512xf32, #tpu.memory_space<vmem>>, vector<8x512xf32>
    %c1_i32_1 = arith.constant 1 : i32
    %8 = tpu.dynamic_rotate %7 by %c1_i32_1 dim 1 : vector<8x512xf32>, i32 -> vector<8x512xf32>
    %cst = arith.constant 0.000000e+00 : f32
    %9 = vector.shape_cast %4 : vector<1x512xi1> to vector<1x512xi1>
    %10 = vector.broadcast %9 : vector<1x512xi1> to vector<8x512xi1>
    %11 = vector.broadcast %cst : f32 to vector<8x512xf32>
    %12 = arith.select %10, %8, %11 : vector<8x512xi1>, vector<8x512xf32>
    %c0_2 = arith.constant 0 : index
    %c0_3 = arith.constant 0 : index
    %13 = vector.load %arg2[%c0_2, %c0_3] : memref<16x8xf32, #tpu.memory_space<vmem>>, vector<16x8xf32>
    %cst_4 = arith.constant dense<0.000000e+00> : vector<16x512xf32>
    %14 = tpu.matmul %13, %12, %cst_4 {dimension_numbers = #tpu.dot_dimension_numbers<[1], [0], [0], [1], [0, 0, 1, 1], [], []>} : vector<16x8xf32>, vector<8x512xf32>, vector<16x512xf32> -> vector<16x512xf32>
    %c0_5 = arith.constant 0 : index
    %c0_6 = arith.constant 0 : index
    %15 = vector.load %arg3[%c0_5, %c0_6] : memref<16x8xf32, #tpu.memory_space<vmem>>, vector<16x8xf32>
    %cst_7 = arith.constant dense<0.000000e+00> : vector<16x512xf32>
    %16 = tpu.matmul %15, %7, %cst_7 {dimension_numbers = #tpu.dot_dimension_numbers<[1], [0], [0], [1], [0, 0, 1, 1], [], []>} : vector<16x8xf32>, vector<8x512xf32>, vector<16x512xf32> -> vector<16x512xf32>
    %17 = arith.addf %14, %16 : vector<16x512xf32>
    %c0_8 = arith.constant 0 : index
    %c0_9 = arith.constant 0 : index
    %18 = vector.load %arg4[%c0_8, %c0_9] : memref<16x1xf32, #tpu.memory_space<vmem>>, vector<16x1xf32>
    %19 = vector.broadcast %18 : vector<16x1xf32> to vector<16x512xf32>
    %20 = arith.addf %17, %19 : vector<16x512xf32>
    %21 = vector.extract_strided_slice %20 {offsets = [0, 0], sizes = [8, 512], strides = [1, 1]} : vector<16x512xf32> to vector<8x512xf32>
    %cst_10 = arith.constant 0.000000e+00 : f32
    %22 = vector.broadcast %cst_10 : f32 to vector<8x512xf32>
    %23 = arith.maximumf %21, %22 : vector<8x512xf32>
    %24 = vector.extract_strided_slice %20 {offsets = [8, 0], sizes = [8, 512], strides = [1, 1]} : vector<16x512xf32> to vector<8x512xf32>
    %c1_i32_11 = arith.constant 1 : i32
    %25 = tpu.dynamic_rotate %23 by %c1_i32_11 dim 1 : vector<8x512xf32>, i32 -> vector<8x512xf32>
    %cst_12 = arith.constant 0.000000e+00 : f32
    %26 = vector.shape_cast %4 : vector<1x512xi1> to vector<1x512xi1>
    %27 = vector.broadcast %26 : vector<1x512xi1> to vector<8x512xi1>
    %28 = vector.broadcast %cst_12 : f32 to vector<8x512xf32>
    %29 = arith.select %27, %25, %28 : vector<8x512xi1>, vector<8x512xf32>
    %c0_13 = arith.constant 0 : index
    %c0_14 = arith.constant 0 : index
    %30 = vector.load %arg5[%c0_13, %c0_14] : memref<8x8xf32, #tpu.memory_space<vmem>>, vector<8x8xf32>
    %cst_15 = arith.constant dense<0.000000e+00> : vector<8x512xf32>
    %31 = tpu.matmul %30, %29, %cst_15 {dimension_numbers = #tpu.dot_dimension_numbers<[1], [0], [0], [1], [0, 0, 1, 1], [], []>} : vector<8x8xf32>, vector<8x512xf32>, vector<8x512xf32> -> vector<8x512xf32>
    %c0_16 = arith.constant 0 : index
    %c0_17 = arith.constant 0 : index
    %32 = vector.load %arg6[%c0_16, %c0_17] : memref<8x8xf32, #tpu.memory_space<vmem>>, vector<8x8xf32>
    %cst_18 = arith.constant dense<0.000000e+00> : vector<8x512xf32>
    %33 = tpu.matmul %32, %23, %cst_18 {dimension_numbers = #tpu.dot_dimension_numbers<[1], [0], [0], [1], [0, 0, 1, 1], [], []>} : vector<8x8xf32>, vector<8x512xf32>, vector<8x512xf32> -> vector<8x512xf32>
    %34 = arith.addf %31, %33 : vector<8x512xf32>
    %c0_19 = arith.constant 0 : index
    %c0_20 = arith.constant 0 : index
    %35 = vector.load %arg7[%c0_19, %c0_20] : memref<8x1xf32, #tpu.memory_space<vmem>>, vector<8x1xf32>
    %36 = vector.broadcast %35 : vector<8x1xf32> to vector<8x512xf32>
    %37 = arith.addf %34, %36 : vector<8x512xf32>
    %cst_21 = arith.constant 0.000000e+00 : f32
    %38 = vector.broadcast %cst_21 : f32 to vector<8x512xf32>
    %39 = arith.maximumf %37, %38 : vector<8x512xf32>
    %c1_i32_22 = arith.constant 1 : i32
    %40 = tpu.dynamic_rotate %39 by %c1_i32_22 dim 1 : vector<8x512xf32>, i32 -> vector<8x512xf32>
    %cst_23 = arith.constant 0.000000e+00 : f32
    %41 = vector.shape_cast %4 : vector<1x512xi1> to vector<1x512xi1>
    %42 = vector.broadcast %41 : vector<1x512xi1> to vector<8x512xi1>
    %43 = vector.broadcast %cst_23 : f32 to vector<8x512xf32>
    %44 = arith.select %42, %40, %43 : vector<8x512xi1>, vector<8x512xf32>
    %c0_24 = arith.constant 0 : index
    %c0_25 = arith.constant 0 : index
    %45 = vector.load %arg8[%c0_24, %c0_25] : memref<8x8xf32, #tpu.memory_space<vmem>>, vector<8x8xf32>
    %cst_26 = arith.constant dense<0.000000e+00> : vector<8x512xf32>
    %46 = tpu.matmul %45, %44, %cst_26 {dimension_numbers = #tpu.dot_dimension_numbers<[1], [0], [0], [1], [0, 0, 1, 1], [], []>} : vector<8x8xf32>, vector<8x512xf32>, vector<8x512xf32> -> vector<8x512xf32>
    %c0_27 = arith.constant 0 : index
    %c0_28 = arith.constant 0 : index
    %47 = vector.load %arg9[%c0_27, %c0_28] : memref<8x8xf32, #tpu.memory_space<vmem>>, vector<8x8xf32>
    %cst_29 = arith.constant dense<0.000000e+00> : vector<8x512xf32>
    %48 = tpu.matmul %47, %39, %cst_29 {dimension_numbers = #tpu.dot_dimension_numbers<[1], [0], [0], [1], [0, 0, 1, 1], [], []>} : vector<8x8xf32>, vector<8x512xf32>, vector<8x512xf32> -> vector<8x512xf32>
    %49 = arith.addf %46, %48 : vector<8x512xf32>
    %c0_30 = arith.constant 0 : index
    %c0_31 = arith.constant 0 : index
    %50 = vector.load %arg10[%c0_30, %c0_31] : memref<8x1xf32, #tpu.memory_space<vmem>>, vector<8x1xf32>
    %51 = vector.broadcast %50 : vector<8x1xf32> to vector<8x512xf32>
    %52 = arith.addf %49, %51 : vector<8x512xf32>
    %cst_32 = arith.constant 0.000000e+00 : f32
    %53 = vector.broadcast %cst_32 : f32 to vector<8x512xf32>
    %54 = arith.maximumf %52, %53 : vector<8x512xf32>
    %55 = arith.addf %54, %24 : vector<8x512xf32>
    %cst_33 = arith.constant 0.000000e+00 : f32
    %56 = vector.broadcast %cst_33 : f32 to vector<8x512xf32>
    %57 = arith.maximumf %55, %56 : vector<8x512xf32>
    %c2_i32_34 = arith.constant 2 : i32
    %58 = tpu.dynamic_rotate %57 by %c2_i32_34 dim 1 : vector<8x512xf32>, i32 -> vector<8x512xf32>
    %cst_35 = arith.constant 0.000000e+00 : f32
    %59 = vector.shape_cast %6 : vector<1x512xi1> to vector<1x512xi1>
    %60 = vector.broadcast %59 : vector<1x512xi1> to vector<8x512xi1>
    %61 = vector.broadcast %cst_35 : f32 to vector<8x512xf32>
    %62 = arith.select %60, %58, %61 : vector<8x512xi1>, vector<8x512xf32>
    %c0_36 = arith.constant 0 : index
    %c0_37 = arith.constant 0 : index
    %63 = vector.load %arg11[%c0_36, %c0_37] : memref<8x8xf32, #tpu.memory_space<vmem>>, vector<8x8xf32>
    %cst_38 = arith.constant dense<0.000000e+00> : vector<8x512xf32>
    %64 = tpu.matmul %63, %62, %cst_38 {dimension_numbers = #tpu.dot_dimension_numbers<[1], [0], [0], [1], [0, 0, 1, 1], [], []>} : vector<8x8xf32>, vector<8x512xf32>, vector<8x512xf32> -> vector<8x512xf32>
    %c0_39 = arith.constant 0 : index
    %c0_40 = arith.constant 0 : index
    %65 = vector.load %arg12[%c0_39, %c0_40] : memref<8x8xf32, #tpu.memory_space<vmem>>, vector<8x8xf32>
    %cst_41 = arith.constant dense<0.000000e+00> : vector<8x512xf32>
    %66 = tpu.matmul %65, %57, %cst_41 {dimension_numbers = #tpu.dot_dimension_numbers<[1], [0], [0], [1], [0, 0, 1, 1], [], []>} : vector<8x8xf32>, vector<8x512xf32>, vector<8x512xf32> -> vector<8x512xf32>
    %67 = arith.addf %64, %66 : vector<8x512xf32>
    %c0_42 = arith.constant 0 : index
    %c0_43 = arith.constant 0 : index
    %68 = vector.load %arg13[%c0_42, %c0_43] : memref<8x1xf32, #tpu.memory_space<vmem>>, vector<8x1xf32>
    %69 = vector.broadcast %68 : vector<8x1xf32> to vector<8x512xf32>
    %70 = arith.addf %67, %69 : vector<8x512xf32>
    %cst_44 = arith.constant 0.000000e+00 : f32
    %71 = vector.broadcast %cst_44 : f32 to vector<8x512xf32>
    %72 = arith.maximumf %70, %71 : vector<8x512xf32>
    %c2_i32_45 = arith.constant 2 : i32
    %73 = tpu.dynamic_rotate %72 by %c2_i32_45 dim 1 : vector<8x512xf32>, i32 -> vector<8x512xf32>
    %cst_46 = arith.constant 0.000000e+00 : f32
    %74 = vector.shape_cast %6 : vector<1x512xi1> to vector<1x512xi1>
    %75 = vector.broadcast %74 : vector<1x512xi1> to vector<8x512xi1>
    %76 = vector.broadcast %cst_46 : f32 to vector<8x512xf32>
    %77 = arith.select %75, %73, %76 : vector<8x512xi1>, vector<8x512xf32>
    %c0_47 = arith.constant 0 : index
    %c0_48 = arith.constant 0 : index
    %78 = vector.load %arg14[%c0_47, %c0_48] : memref<8x8xf32, #tpu.memory_space<vmem>>, vector<8x8xf32>
    %cst_49 = arith.constant dense<0.000000e+00> : vector<8x512xf32>
    %79 = tpu.matmul %78, %77, %cst_49 {dimension_numbers = #tpu.dot_dimension_numbers<[1], [0], [0], [1], [0, 0, 1, 1], [], []>} : vector<8x8xf32>, vector<8x512xf32>, vector<8x512xf32> -> vector<8x512xf32>
    %c0_50 = arith.constant 0 : index
    %c0_51 = arith.constant 0 : index
    %80 = vector.load %arg15[%c0_50, %c0_51] : memref<8x8xf32, #tpu.memory_space<vmem>>, vector<8x8xf32>
    %cst_52 = arith.constant dense<0.000000e+00> : vector<8x512xf32>
    %81 = tpu.matmul %80, %72, %cst_52 {dimension_numbers = #tpu.dot_dimension_numbers<[1], [0], [0], [1], [0, 0, 1, 1], [], []>} : vector<8x8xf32>, vector<8x512xf32>, vector<8x512xf32> -> vector<8x512xf32>
    %82 = arith.addf %79, %81 : vector<8x512xf32>
    %c0_53 = arith.constant 0 : index
    %c0_54 = arith.constant 0 : index
    %83 = vector.load %arg16[%c0_53, %c0_54] : memref<8x1xf32, #tpu.memory_space<vmem>>, vector<8x1xf32>
    %84 = vector.broadcast %83 : vector<8x1xf32> to vector<8x512xf32>
    %85 = arith.addf %82, %84 : vector<8x512xf32>
    %cst_55 = arith.constant 0.000000e+00 : f32
    %86 = vector.broadcast %cst_55 : f32 to vector<8x512xf32>
    %87 = arith.maximumf %85, %86 : vector<8x512xf32>
    %c2_i32_56 = arith.constant 2 : i32
    %88 = tpu.dynamic_rotate %87 by %c2_i32_56 dim 1 : vector<8x512xf32>, i32 -> vector<8x512xf32>
    %cst_57 = arith.constant 0.000000e+00 : f32
    %89 = vector.shape_cast %6 : vector<1x512xi1> to vector<1x512xi1>
    %90 = vector.broadcast %89 : vector<1x512xi1> to vector<8x512xi1>
    %91 = vector.broadcast %cst_57 : f32 to vector<8x512xf32>
    %92 = arith.select %90, %88, %91 : vector<8x512xi1>, vector<8x512xf32>
    %c0_58 = arith.constant 0 : index
    %c0_59 = arith.constant 0 : index
    %93 = vector.load %arg17[%c0_58, %c0_59] : memref<8x8xf32, #tpu.memory_space<vmem>>, vector<8x8xf32>
    %cst_60 = arith.constant dense<0.000000e+00> : vector<8x512xf32>
    %94 = tpu.matmul %93, %92, %cst_60 {dimension_numbers = #tpu.dot_dimension_numbers<[1], [0], [0], [1], [0, 0, 1, 1], [], []>} : vector<8x8xf32>, vector<8x512xf32>, vector<8x512xf32> -> vector<8x512xf32>
    %c0_61 = arith.constant 0 : index
    %c0_62 = arith.constant 0 : index
    %95 = vector.load %arg18[%c0_61, %c0_62] : memref<8x8xf32, #tpu.memory_space<vmem>>, vector<8x8xf32>
    %cst_63 = arith.constant dense<0.000000e+00> : vector<8x512xf32>
    %96 = tpu.matmul %95, %87, %cst_63 {dimension_numbers = #tpu.dot_dimension_numbers<[1], [0], [0], [1], [0, 0, 1, 1], [], []>} : vector<8x8xf32>, vector<8x512xf32>, vector<8x512xf32> -> vector<8x512xf32>
    %97 = arith.addf %94, %96 : vector<8x512xf32>
    %c0_64 = arith.constant 0 : index
    %c0_65 = arith.constant 0 : index
    %98 = vector.load %arg19[%c0_64, %c0_65] : memref<8x1xf32, #tpu.memory_space<vmem>>, vector<8x1xf32>
    %99 = vector.broadcast %98 : vector<8x1xf32> to vector<8x512xf32>
    %100 = arith.addf %97, %99 : vector<8x512xf32>
    %cst_66 = arith.constant 0.000000e+00 : f32
    %101 = vector.broadcast %cst_66 : f32 to vector<8x512xf32>
    %102 = arith.maximumf %100, %101 : vector<8x512xf32>
    %103 = arith.addf %102, %57 : vector<8x512xf32>
    %cst_67 = arith.constant 0.000000e+00 : f32
    %104 = vector.broadcast %cst_67 : f32 to vector<8x512xf32>
    %105 = arith.maximumf %103, %104 : vector<8x512xf32>
    %c0_68 = arith.constant 0 : index
    %c0_69 = arith.constant 0 : index
    %106 = vector.load %arg20[%c0_68, %c0_69] : memref<8x512xf32, #tpu.memory_space<vmem>>, vector<8x512xf32>
    tpu.vector_store %arg20[%c0_68, %c0_69], %105 {strides = array<i32>} : memref<8x512xf32, #tpu.memory_space<vmem>>, vector<8x512xf32>,
    return
  }
  func.func @transform_0(%arg0: i32) -> (i32, i32) {
    %c0_i32 = arith.constant 0 : i32
    %c0_i32_0 = arith.constant 0 : i32
    return %c0_i32, %arg0 : i32, i32
  }
  func.func @transform_1(%arg0: i32) -> (i32, i32) {
    %c0_i32 = arith.constant 0 : i32
    %c0_i32_0 = arith.constant 0 : i32
    %c0_i32_1 = arith.constant 0 : i32
    return %c0_i32, %c0_i32_0 : i32, i32
  }
  func.func @transform_2(%arg0: i32) -> (i32, i32) {
    %c0_i32 = arith.constant 0 : i32
    %c0_i32_0 = arith.constant 0 : i32
    %c0_i32_1 = arith.constant 0 : i32
    return %c0_i32, %c0_i32_0 : i32, i32
  }
  func.func @transform_3(%arg0: i32) -> (i32, i32) {
    %c0_i32 = arith.constant 0 : i32
    %c0_i32_0 = arith.constant 0 : i32
    %c0_i32_1 = arith.constant 0 : i32
    return %c0_i32, %c0_i32_0 : i32, i32
  }
  func.func @transform_4(%arg0: i32) -> (i32, i32) {
    %c0_i32 = arith.constant 0 : i32
    %c0_i32_0 = arith.constant 0 : i32
    %c0_i32_1 = arith.constant 0 : i32
    return %c0_i32, %c0_i32_0 : i32, i32
  }
  func.func @transform_5(%arg0: i32) -> (i32, i32) {
    %c0_i32 = arith.constant 0 : i32
    %c0_i32_0 = arith.constant 0 : i32
    %c0_i32_1 = arith.constant 0 : i32
    return %c0_i32, %c0_i32_0 : i32, i32
  }
  func.func @transform_6(%arg0: i32) -> (i32, i32) {
    %c0_i32 = arith.constant 0 : i32
    %c0_i32_0 = arith.constant 0 : i32
    %c0_i32_1 = arith.constant 0 : i32
    return %c0_i32, %c0_i32_0 : i32, i32
  }
  func.func @transform_7(%arg0: i32) -> (i32, i32) {
    %c0_i32 = arith.constant 0 : i32
    %c0_i32_0 = arith.constant 0 : i32
    %c0_i32_1 = arith.constant 0 : i32
    return %c0_i32, %c0_i32_0 : i32, i32
  }
  func.func @transform_8(%arg0: i32) -> (i32, i32) {
    %c0_i32 = arith.constant 0 : i32
    %c0_i32_0 = arith.constant 0 : i32
    %c0_i32_1 = arith.constant 0 : i32
    return %c0_i32, %c0_i32_0 : i32, i32
  }
  func.func @transform_9(%arg0: i32) -> (i32, i32) {
    %c0_i32 = arith.constant 0 : i32
    %c0_i32_0 = arith.constant 0 : i32
    %c0_i32_1 = arith.constant 0 : i32
    return %c0_i32, %c0_i32_0 : i32, i32
  }
  func.func @transform_10(%arg0: i32) -> (i32, i32) {
    %c0_i32 = arith.constant 0 : i32
    %c0_i32_0 = arith.constant 0 : i32
    %c0_i32_1 = arith.constant 0 : i32
    return %c0_i32, %c0_i32_0 : i32, i32
  }
  func.func @transform_11(%arg0: i32) -> (i32, i32) {
    %c0_i32 = arith.constant 0 : i32
    %c0_i32_0 = arith.constant 0 : i32
    %c0_i32_1 = arith.constant 0 : i32
    return %c0_i32, %c0_i32_0 : i32, i32
  }
  func.func @transform_12(%arg0: i32) -> (i32, i32) {
    %c0_i32 = arith.constant 0 : i32
    %c0_i32_0 = arith.constant 0 : i32
    %c0_i32_1 = arith.constant 0 : i32
    return %c0_i32, %c0_i32_0 : i32, i32
  }
  func.func @transform_13(%arg0: i32) -> (i32, i32) {
    %c0_i32 = arith.constant 0 : i32
    %c0_i32_0 = arith.constant 0 : i32
    %c0_i32_1 = arith.constant 0 : i32
    return %c0_i32, %c0_i32_0 : i32, i32
  }
  func.func @transform_14(%arg0: i32) -> (i32, i32) {
    %c0_i32 = arith.constant 0 : i32
    %c0_i32_0 = arith.constant 0 : i32
    %c0_i32_1 = arith.constant 0 : i32
    return %c0_i32, %c0_i32_0 : i32, i32
  }
  func.func @transform_15(%arg0: i32) -> (i32, i32) {
    %c0_i32 = arith.constant 0 : i32
    %c0_i32_0 = arith.constant 0 : i32
    %c0_i32_1 = arith.constant 0 : i32
    return %c0_i32, %c0_i32_0 : i32, i32
  }
  func.func @transform_16(%arg0: i32) -> (i32, i32) {
    %c0_i32 = arith.constant 0 : i32
    %c0_i32_0 = arith.constant 0 : i32
    %c0_i32_1 = arith.constant 0 : i32
    return %c0_i32, %c0_i32_0 : i32, i32
  }
  func.func @transform_17(%arg0: i32) -> (i32, i32) {
    %c0_i32 = arith.constant 0 : i32
    %c0_i32_0 = arith.constant 0 : i32
    %c0_i32_1 = arith.constant 0 : i32
    return %c0_i32, %c0_i32_0 : i32, i32
  }
  func.func @transform_18(%arg0: i32) -> (i32, i32) {
    %c0_i32 = arith.constant 0 : i32
    %c0_i32_0 = arith.constant 0 : i32
    %c0_i32_1 = arith.constant 0 : i32
    return %c0_i32, %c0_i32_0 : i32, i32
  }
  func.func @transform_19(%arg0: i32) -> (i32, i32) {
    %c0_i32 = arith.constant 0 : i32
    %c0_i32_0 = arith.constant 0 : i32
    return %c0_i32, %arg0 : i32, i32
  }
}

module attributes {stable_mosaic.version = 11 : i64} {
  func.func @tcn_kernel(%arg0: i32, %arg1: memref<8x512xf32, #tpu.memory_space<vmem>>, %arg2: memref<16x8xf32, #tpu.memory_space<vmem>>, %arg3: memref<16x8xf32, #tpu.memory_space<vmem>>, %arg4: memref<16x1xf32, #tpu.memory_space<vmem>>, %arg5: memref<8x8xf32, #tpu.memory_space<vmem>>, %arg6: memref<8x8xf32, #tpu.memory_space<vmem>>, %arg7: memref<8x1xf32, #tpu.memory_space<vmem>>, %arg8: memref<8x8xf32, #tpu.memory_space<vmem>>, %arg9: memref<8x8xf32, #tpu.memory_space<vmem>>, %arg10: memref<8x1xf32, #tpu.memory_space<vmem>>, %arg11: memref<8x8xf32, #tpu.memory_space<vmem>>, %arg12: memref<8x8xf32, #tpu.memory_space<vmem>>, %arg13: memref<8x1xf32, #tpu.memory_space<vmem>>, %arg14: memref<8x8xf32, #tpu.memory_space<vmem>>, %arg15: memref<8x8xf32, #tpu.memory_space<vmem>>, %arg16: memref<8x1xf32, #tpu.memory_space<vmem>>, %arg17: memref<8x8xf32, #tpu.memory_space<vmem>>, %arg18: memref<8x8xf32, #tpu.memory_space<vmem>>, %arg19: memref<8x1xf32, #tpu.memory_space<vmem>>, %arg20: memref<8x512xf32, #tpu.memory_space<vmem>>) attributes {dimension_semantics = [#tpu.dimension_semantics<parallel>], iteration_bounds = array<i64: 1>, scalar_prefetch = 0 : i64, scratch_operands = 0 : i64, tpu.core_type = #tpu.core_type<tc>, window_params = [{transform_indices = @transform_0, window_bounds = array<i64: 8, 512>}, {pipeline_mode = #tpu.pipeline_mode<synchronous>, transform_indices = @transform_1, window_bounds = array<i64: 16, 8>}, {pipeline_mode = #tpu.pipeline_mode<synchronous>, transform_indices = @transform_2, window_bounds = array<i64: 16, 8>}, {pipeline_mode = #tpu.pipeline_mode<synchronous>, transform_indices = @transform_3, window_bounds = array<i64: 16, 1>}, {pipeline_mode = #tpu.pipeline_mode<synchronous>, transform_indices = @transform_4, window_bounds = array<i64: 8, 8>}, {pipeline_mode = #tpu.pipeline_mode<synchronous>, transform_indices = @transform_5, window_bounds = array<i64: 8, 8>}, {pipeline_mode = #tpu.pipeline_mode<synchronous>, transform_indices = @transform_6, window_bounds = array<i64: 8, 1>}, {pipeline_mode = #tpu.pipeline_mode<synchronous>, transform_indices = @transform_7, window_bounds = array<i64: 8, 8>}, {pipeline_mode = #tpu.pipeline_mode<synchronous>, transform_indices = @transform_8, window_bounds = array<i64: 8, 8>}, {pipeline_mode = #tpu.pipeline_mode<synchronous>, transform_indices = @transform_9, window_bounds = array<i64: 8, 1>}, {pipeline_mode = #tpu.pipeline_mode<synchronous>, transform_indices = @transform_10, window_bounds = array<i64: 8, 8>}, {pipeline_mode = #tpu.pipeline_mode<synchronous>, transform_indices = @transform_11, window_bounds = array<i64: 8, 8>}, {pipeline_mode = #tpu.pipeline_mode<synchronous>, transform_indices = @transform_12, window_bounds = array<i64: 8, 1>}, {pipeline_mode = #tpu.pipeline_mode<synchronous>, transform_indices = @transform_13, window_bounds = array<i64: 8, 8>}, {pipeline_mode = #tpu.pipeline_mode<synchronous>, transform_indices = @transform_14, window_bounds = array<i64: 8, 8>}, {pipeline_mode = #tpu.pipeline_mode<synchronous>, transform_indices = @transform_15, window_bounds = array<i64: 8, 1>}, {pipeline_mode = #tpu.pipeline_mode<synchronous>, transform_indices = @transform_16, window_bounds = array<i64: 8, 8>}, {pipeline_mode = #tpu.pipeline_mode<synchronous>, transform_indices = @transform_17, window_bounds = array<i64: 8, 8>}, {pipeline_mode = #tpu.pipeline_mode<synchronous>, transform_indices = @transform_18, window_bounds = array<i64: 8, 1>}, {transform_indices = @transform_19, window_bounds = array<i64: 8, 512>}]} {
    %0 = tpu.iota {dimensions = array<i32: 1>} : vector<1x512xi32>
    %c128_i32 = arith.constant 128 : i32
    %1 = vector.broadcast %c128_i32 : i32 to vector<1x512xi32>
    %2 = arith.remsi %0, %1 : vector<1x512xi32>
    %c1_i32 = arith.constant 1 : i32
    %3 = vector.broadcast %c1_i32 : i32 to vector<1x512xi32>
    %4 = arith.cmpi sge, %2, %3 : vector<1x512xi32>
    %c2_i32 = arith.constant 2 : i32
    %5 = vector.broadcast %c2_i32 : i32 to vector<1x512xi32>
    %6 = arith.cmpi sge, %2, %5 : vector<1x512xi32>
    %c0 = arith.constant 0 : index
    %c0_0 = arith.constant 0 : index
    %7 = vector.load %arg1[%c0, %c0_0] : memref<8x512xf32, #tpu.memory_space<vmem>>, vector<8x512xf32>
    %c1_i32_1 = arith.constant 1 : i32
    %8 = tpu.dynamic_rotate %7 by %c1_i32_1 dim 1 : vector<8x512xf32>, i32 -> vector<8x512xf32>
    %cst = arith.constant 0.000000e+00 : f32
    %9 = vector.shape_cast %4 : vector<1x512xi1> to vector<1x512xi1>
    %10 = vector.broadcast %9 : vector<1x512xi1> to vector<8x512xi1>
    %11 = vector.broadcast %cst : f32 to vector<8x512xf32>
    %12 = arith.select %10, %8, %11 : vector<8x512xi1>, vector<8x512xf32>
    %c0_2 = arith.constant 0 : index
    %c0_3 = arith.constant 0 : index
    %13 = vector.load %arg2[%c0_2, %c0_3] : memref<16x8xf32, #tpu.memory_space<vmem>>, vector<16x8xf32>
    %cst_4 = arith.constant dense<0.000000e+00> : vector<16x512xf32>
    %14 = tpu.matmul %13, %12, %cst_4 {dimension_numbers = #tpu.dot_dimension_numbers<[1], [0], [0], [1], [0, 0, 1, 1], [], []>} : vector<16x8xf32>, vector<8x512xf32>, vector<16x512xf32> -> vector<16x512xf32>
    %c0_5 = arith.constant 0 : index
    %c0_6 = arith.constant 0 : index
    %15 = vector.load %arg3[%c0_5, %c0_6] : memref<16x8xf32, #tpu.memory_space<vmem>>, vector<16x8xf32>
    %cst_7 = arith.constant dense<0.000000e+00> : vector<16x512xf32>
    %16 = tpu.matmul %15, %7, %cst_7 {dimension_numbers = #tpu.dot_dimension_numbers<[1], [0], [0], [1], [0, 0, 1, 1], [], []>} : vector<16x8xf32>, vector<8x512xf32>, vector<16x512xf32> -> vector<16x512xf32>
    %17 = arith.addf %14, %16 : vector<16x512xf32>
    %c0_8 = arith.constant 0 : index
    %c0_9 = arith.constant 0 : index
    %18 = vector.load %arg4[%c0_8, %c0_9] : memref<16x1xf32, #tpu.memory_space<vmem>>, vector<16x1xf32>
    %19 = vector.broadcast %18 : vector<16x1xf32> to vector<16x512xf32>
    %20 = arith.addf %17, %19 : vector<16x512xf32>
    %21 = vector.extract_strided_slice %20 {offsets = [0, 0], sizes = [8, 512], strides = [1, 1]} : vector<16x512xf32> to vector<8x512xf32>
    %cst_10 = arith.constant 0.000000e+00 : f32
    %22 = vector.broadcast %cst_10 : f32 to vector<8x512xf32>
    %23 = arith.maximumf %21, %22 : vector<8x512xf32>
    %24 = vector.extract_strided_slice %20 {offsets = [8, 0], sizes = [8, 512], strides = [1, 1]} : vector<16x512xf32> to vector<8x512xf32>
    %c1_i32_11 = arith.constant 1 : i32
    %25 = tpu.dynamic_rotate %23 by %c1_i32_11 dim 1 : vector<8x512xf32>, i32 -> vector<8x512xf32>
    %cst_12 = arith.constant 0.000000e+00 : f32
    %26 = vector.shape_cast %4 : vector<1x512xi1> to vector<1x512xi1>
    %27 = vector.broadcast %26 : vector<1x512xi1> to vector<8x512xi1>
    %28 = vector.broadcast %cst_12 : f32 to vector<8x512xf32>
    %29 = arith.select %27, %25, %28 : vector<8x512xi1>, vector<8x512xf32>
    %c0_13 = arith.constant 0 : index
    %c0_14 = arith.constant 0 : index
    %30 = vector.load %arg5[%c0_13, %c0_14] : memref<8x8xf32, #tpu.memory_space<vmem>>, vector<8x8xf32>
    %cst_15 = arith.constant dense<0.000000e+00> : vector<8x512xf32>
    %31 = tpu.matmul %30, %29, %cst_15 {dimension_numbers = #tpu.dot_dimension_numbers<[1], [0], [0], [1], [0, 0, 1, 1], [], []>} : vector<8x8xf32>, vector<8x512xf32>, vector<8x512xf32> -> vector<8x512xf32>
    %c0_16 = arith.constant 0 : index
    %c0_17 = arith.constant 0 : index
    %32 = vector.load %arg6[%c0_16, %c0_17] : memref<8x8xf32, #tpu.memory_space<vmem>>, vector<8x8xf32>
    %cst_18 = arith.constant dense<0.000000e+00> : vector<8x512xf32>
    %33 = tpu.matmul %32, %23, %cst_18 {dimension_numbers = #tpu.dot_dimension_numbers<[1], [0], [0], [1], [0, 0, 1, 1], [], []>} : vector<8x8xf32>, vector<8x512xf32>, vector<8x512xf32> -> vector<8x512xf32>
    %34 = arith.addf %31, %33 : vector<8x512xf32>
    %c0_19 = arith.constant 0 : index
    %c0_20 = arith.constant 0 : index
    %35 = vector.load %arg7[%c0_19, %c0_20] : memref<8x1xf32, #tpu.memory_space<vmem>>, vector<8x1xf32>
    %36 = vector.broadcast %35 : vector<8x1xf32> to vector<8x512xf32>
    %37 = arith.addf %34, %36 : vector<8x512xf32>
    %cst_21 = arith.constant 0.000000e+00 : f32
    %38 = vector.broadcast %cst_21 : f32 to vector<8x512xf32>
    %39 = arith.maximumf %37, %38 : vector<8x512xf32>
    %c1_i32_22 = arith.constant 1 : i32
    %40 = tpu.dynamic_rotate %39 by %c1_i32_22 dim 1 : vector<8x512xf32>, i32 -> vector<8x512xf32>
    %cst_23 = arith.constant 0.000000e+00 : f32
    %41 = vector.shape_cast %4 : vector<1x512xi1> to vector<1x512xi1>
    %42 = vector.broadcast %41 : vector<1x512xi1> to vector<8x512xi1>
    %43 = vector.broadcast %cst_23 : f32 to vector<8x512xf32>
    %44 = arith.select %42, %40, %43 : vector<8x512xi1>, vector<8x512xf32>
    %c0_24 = arith.constant 0 : index
    %c0_25 = arith.constant 0 : index
    %45 = vector.load %arg8[%c0_24, %c0_25] : memref<8x8xf32, #tpu.memory_space<vmem>>, vector<8x8xf32>
    %cst_26 = arith.constant dense<0.000000e+00> : vector<8x512xf32>
    %46 = tpu.matmul %45, %44, %cst_26 {dimension_numbers = #tpu.dot_dimension_numbers<[1], [0], [0], [1], [0, 0, 1, 1], [], []>} : vector<8x8xf32>, vector<8x512xf32>, vector<8x512xf32> -> vector<8x512xf32>
    %c0_27 = arith.constant 0 : index
    %c0_28 = arith.constant 0 : index
    %47 = vector.load %arg9[%c0_27, %c0_28] : memref<8x8xf32, #tpu.memory_space<vmem>>, vector<8x8xf32>
    %cst_29 = arith.constant dense<0.000000e+00> : vector<8x512xf32>
    %48 = tpu.matmul %47, %39, %cst_29 {dimension_numbers = #tpu.dot_dimension_numbers<[1], [0], [0], [1], [0, 0, 1, 1], [], []>} : vector<8x8xf32>, vector<8x512xf32>, vector<8x512xf32> -> vector<8x512xf32>
    %49 = arith.addf %46, %48 : vector<8x512xf32>
    %c0_30 = arith.constant 0 : index
    %c0_31 = arith.constant 0 : index
    %50 = vector.load %arg10[%c0_30, %c0_31] : memref<8x1xf32, #tpu.memory_space<vmem>>, vector<8x1xf32>
    %51 = vector.broadcast %50 : vector<8x1xf32> to vector<8x512xf32>
    %52 = arith.addf %49, %51 : vector<8x512xf32>
    %cst_32 = arith.constant 0.000000e+00 : f32
    %53 = vector.broadcast %cst_32 : f32 to vector<8x512xf32>
    %54 = arith.maximumf %52, %53 : vector<8x512xf32>
    %55 = arith.addf %54, %24 : vector<8x512xf32>
    %cst_33 = arith.constant 0.000000e+00 : f32
    %56 = vector.broadcast %cst_33 : f32 to vector<8x512xf32>
    %57 = arith.maximumf %55, %56 : vector<8x512xf32>
    %c2_i32_34 = arith.constant 2 : i32
    %58 = tpu.dynamic_rotate %57 by %c2_i32_34 dim 1 : vector<8x512xf32>, i32 -> vector<8x512xf32>
    %cst_35 = arith.constant 0.000000e+00 : f32
    %59 = vector.shape_cast %6 : vector<1x512xi1> to vector<1x512xi1>
    %60 = vector.broadcast %59 : vector<1x512xi1> to vector<8x512xi1>
    %61 = vector.broadcast %cst_35 : f32 to vector<8x512xf32>
    %62 = arith.select %60, %58, %61 : vector<8x512xi1>, vector<8x512xf32>
    %c0_36 = arith.constant 0 : index
    %c0_37 = arith.constant 0 : index
    %63 = vector.load %arg11[%c0_36, %c0_37] : memref<8x8xf32, #tpu.memory_space<vmem>>, vector<8x8xf32>
    %cst_38 = arith.constant dense<0.000000e+00> : vector<8x512xf32>
    %64 = tpu.matmul %63, %62, %cst_38 {dimension_numbers = #tpu.dot_dimension_numbers<[1], [0], [0], [1], [0, 0, 1, 1], [], []>} : vector<8x8xf32>, vector<8x512xf32>, vector<8x512xf32> -> vector<8x512xf32>
    %c0_39 = arith.constant 0 : index
    %c0_40 = arith.constant 0 : index
    %65 = vector.load %arg12[%c0_39, %c0_40] : memref<8x8xf32, #tpu.memory_space<vmem>>, vector<8x8xf32>
    %cst_41 = arith.constant dense<0.000000e+00> : vector<8x512xf32>
    %66 = tpu.matmul %65, %57, %cst_41 {dimension_numbers = #tpu.dot_dimension_numbers<[1], [0], [0], [1], [0, 0, 1, 1], [], []>} : vector<8x8xf32>, vector<8x512xf32>, vector<8x512xf32> -> vector<8x512xf32>
    %67 = arith.addf %64, %66 : vector<8x512xf32>
    %c0_42 = arith.constant 0 : index
    %c0_43 = arith.constant 0 : index
    %68 = vector.load %arg13[%c0_42, %c0_43] : memref<8x1xf32, #tpu.memory_space<vmem>>, vector<8x1xf32>
    %69 = vector.broadcast %68 : vector<8x1xf32> to vector<8x512xf32>
    %70 = arith.addf %67, %69 : vector<8x512xf32>
    %cst_44 = arith.constant 0.000000e+00 : f32
    %71 = vector.broadcast %cst_44 : f32 to vector<8x512xf32>
    %72 = arith.maximumf %70, %71 : vector<8x512xf32>
    %c2_i32_45 = arith.constant 2 : i32
    %73 = tpu.dynamic_rotate %72 by %c2_i32_45 dim 1 : vector<8x512xf32>, i32 -> vector<8x512xf32>
    %cst_46 = arith.constant 0.000000e+00 : f32
    %74 = vector.shape_cast %6 : vector<1x512xi1> to vector<1x512xi1>
    %75 = vector.broadcast %74 : vector<1x512xi1> to vector<8x512xi1>
    %76 = vector.broadcast %cst_46 : f32 to vector<8x512xf32>
    %77 = arith.select %75, %73, %76 : vector<8x512xi1>, vector<8x512xf32>
    %c0_47 = arith.constant 0 : index
    %c0_48 = arith.constant 0 : index
    %78 = vector.load %arg14[%c0_47, %c0_48] : memref<8x8xf32, #tpu.memory_space<vmem>>, vector<8x8xf32>
    %cst_49 = arith.constant dense<0.000000e+00> : vector<8x512xf32>
    %79 = tpu.matmul %78, %77, %cst_49 {dimension_numbers = #tpu.dot_dimension_numbers<[1], [0], [0], [1], [0, 0, 1, 1], [], []>} : vector<8x8xf32>, vector<8x512xf32>, vector<8x512xf32> -> vector<8x512xf32>
    %c0_50 = arith.constant 0 : index
    %c0_51 = arith.constant 0 : index
    %80 = vector.load %arg15[%c0_50, %c0_51] : memref<8x8xf32, #tpu.memory_space<vmem>>, vector<8x8xf32>
    %cst_52 = arith.constant dense<0.000000e+00> : vector<8x512xf32>
    %81 = tpu.matmul %80, %72, %cst_52 {dimension_numbers = #tpu.dot_dimension_numbers<[1], [0], [0], [1], [0, 0, 1, 1], [], []>} : vector<8x8xf32>, vector<8x512xf32>, vector<8x512xf32> -> vector<8x512xf32>
    %82 = arith.addf %79, %81 : vector<8x512xf32>
    %c0_53 = arith.constant 0 : index
    %c0_54 = arith.constant 0 : index
    %83 = vector.load %arg16[%c0_53, %c0_54] : memref<8x1xf32, #tpu.memory_space<vmem>>, vector<8x1xf32>
    %84 = vector.broadcast %83 : vector<8x1xf32> to vector<8x512xf32>
    %85 = arith.addf %82, %84 : vector<8x512xf32>
    %cst_55 = arith.constant 0.000000e+00 : f32
    %86 = vector.broadcast %cst_55 : f32 to vector<8x512xf32>
    %87 = arith.maximumf %85, %86 : vector<8x512xf32>
    %c2_i32_56 = arith.constant 2 : i32
    %88 = tpu.dynamic_rotate %87 by %c2_i32_56 dim 1 : vector<8x512xf32>, i32 -> vector<8x512xf32>
    %cst_57 = arith.constant 0.000000e+00 : f32
    %89 = vector.shape_cast %6 : vector<1x512xi1> to vector<1x512xi1>
    %90 = vector.broadcast %89 : vector<1x512xi1> to vector<8x512xi1>
    %91 = vector.broadcast %cst_57 : f32 to vector<8x512xf32>
    %92 = arith.select %90, %88, %91 : vector<8x512xi1>, vector<8x512xf32>
    %c0_58 = arith.constant 0 : index
    %c0_59 = arith.constant 0 : index
    %93 = vector.load %arg17[%c0_58, %c0_59] : memref<8x8xf32, #tpu.memory_space<vmem>>, vector<8x8xf32>
    %cst_60 = arith.constant dense<0.000000e+00> : vector<8x512xf32>
    %94 = tpu.matmul %93, %92, %cst_60 {dimension_numbers = #tpu.dot_dimension_numbers<[1], [0], [0], [1], [0, 0, 1, 1], [], []>} : vector<8x8xf32>, vector<8x512xf32>, vector<8x512xf32> -> vector<8x512xf32>
    %c0_61 = arith.constant 0 : index
    %c0_62 = arith.constant 0 : index
    %95 = vector.load %arg18[%c0_61, %c0_62] : memref<8x8xf32, #tpu.memory_space<vmem>>, vector<8x8xf32>
    %cst_63 = arith.constant dense<0.000000e+00> : vector<8x512xf32>
    %96 = tpu.matmul %95, %87, %cst_63 {dimension_numbers = #tpu.dot_dimension_numbers<[1], [0], [0], [1], [0, 0, 1, 1], [], []>} : vector<8x8xf32>, vector<8x512xf32>, vector<8x512xf32> -> vector<8x512xf32>
    %97 = arith.addf %94, %96 : vector<8x512xf32>
    %c0_64 = arith.constant 0 : index
    %c0_65 = arith.constant 0 : index
    %98 = vector.load %arg19[%c0_64, %c0_65] : memref<8x1xf32, #tpu.memory_space<vmem>>, vector<8x1xf32>
    %99 = vector.broadcast %98 : vector<8x1xf32> to vector<8x512xf32>
    %100 = arith.addf %97, %99 : vector<8x512xf32>
    %cst_66 = arith.constant 0.000000e+00 : f32
    %101 = vector.broadcast %cst_66 : f32 to vector<8x512xf32>
    %102 = arith.maximumf %100, %101 : vector<8x512xf32>
    %103 = arith.addf %102, %57 : vector<8x512xf32>
    %cst_67 = arith.constant 0.000000e+00 : f32
    %104 = vector.broadcast %cst_67 : f32 to vector<8x512xf32>
    %105 = arith.maximumf %103, %104 : vector<8x512xf32>
    %c0_68 = arith.constant 0 : index
    %c0_69 = arith.constant 0 : index
    %106 = vector.load %arg20[%c0_68, %c0_69] : memref<8x512xf32, #tpu.memory_space<vmem>>, vector<8x512xf32>
    tpu.vector_store %arg20[%c0_68, %c0_69], %105 {strides = array<i32>} : memref<8x512xf32, #tpu.memory_space<vmem>>, vector<8x512xf32>,
    return
  }
  func.func @transform_0(%arg0: i32) -> (i32, i32) {
    %c0_i32 = arith.constant 0 : i32
    %c0_i32_0 = arith.constant 0 : i32
    return %c0_i32, %arg0 : i32, i32
  }
  func.func @transform_1(%arg0: i32) -> (i32, i32) {
    %c0_i32 = arith.constant 0 : i32
    %c0_i32_0 = arith.constant 0 : i32
    %c0_i32_1 = arith.constant 0 : i32
    return %c0_i32, %c0_i32_0 : i32, i32
  }
  func.func @transform_2(%arg0: i32) -> (i32, i32) {
    %c0_i32 = arith.constant 0 : i32
    %c0_i32_0 = arith.constant 0 : i32
    %c0_i32_1 = arith.constant 0 : i32
    return %c0_i32, %c0_i32_0 : i32, i32
  }
  func.func @transform_3(%arg0: i32) -> (i32, i32) {
    %c0_i32 = arith.constant 0 : i32
    %c0_i32_0 = arith.constant 0 : i32
    %c0_i32_1 = arith.constant 0 : i32
    return %c0_i32, %c0_i32_0 : i32, i32
  }
  func.func @transform_4(%arg0: i32) -> (i32, i32) {
    %c0_i32 = arith.constant 0 : i32
    %c0_i32_0 = arith.constant 0 : i32
    %c0_i32_1 = arith.constant 0 : i32
    return %c0_i32, %c0_i32_0 : i32, i32
  }
  func.func @transform_5(%arg0: i32) -> (i32, i32) {
    %c0_i32 = arith.constant 0 : i32
    %c0_i32_0 = arith.constant 0 : i32
    %c0_i32_1 = arith.constant 0 : i32
    return %c0_i32, %c0_i32_0 : i32, i32
  }
  func.func @transform_6(%arg0: i32) -> (i32, i32) {
    %c0_i32 = arith.constant 0 : i32
    %c0_i32_0 = arith.constant 0 : i32
    %c0_i32_1 = arith.constant 0 : i32
    return %c0_i32, %c0_i32_0 : i32, i32
  }
  func.func @transform_7(%arg0: i32) -> (i32, i32) {
    %c0_i32 = arith.constant 0 : i32
    %c0_i32_0 = arith.constant 0 : i32
    %c0_i32_1 = arith.constant 0 : i32
    return %c0_i32, %c0_i32_0 : i32, i32
  }
  func.func @transform_8(%arg0: i32) -> (i32, i32) {
    %c0_i32 = arith.constant 0 : i32
    %c0_i32_0 = arith.constant 0 : i32
    %c0_i32_1 = arith.constant 0 : i32
    return %c0_i32, %c0_i32_0 : i32, i32
  }
  func.func @transform_9(%arg0: i32) -> (i32, i32) {
    %c0_i32 = arith.constant 0 : i32
    %c0_i32_0 = arith.constant 0 : i32
    %c0_i32_1 = arith.constant 0 : i32
    return %c0_i32, %c0_i32_0 : i32, i32
  }
  func.func @transform_10(%arg0: i32) -> (i32, i32) {
    %c0_i32 = arith.constant 0 : i32
    %c0_i32_0 = arith.constant 0 : i32
    %c0_i32_1 = arith.constant 0 : i32
    return %c0_i32, %c0_i32_0 : i32, i32
  }
  func.func @transform_11(%arg0: i32) -> (i32, i32) {
    %c0_i32 = arith.constant 0 : i32
    %c0_i32_0 = arith.constant 0 : i32
    %c0_i32_1 = arith.constant 0 : i32
    return %c0_i32, %c0_i32_0 : i32, i32
  }
  func.func @transform_12(%arg0: i32) -> (i32, i32) {
    %c0_i32 = arith.constant 0 : i32
    %c0_i32_0 = arith.constant 0 : i32
    %c0_i32_1 = arith.constant 0 : i32
    return %c0_i32, %c0_i32_0 : i32, i32
  }
  func.func @transform_13(%arg0: i32) -> (i32, i32) {
    %c0_i32 = arith.constant 0 : i32
    %c0_i32_0 = arith.constant 0 : i32
    %c0_i32_1 = arith.constant 0 : i32
    return %c0_i32, %c0_i32_0 : i32, i32
  }
  func.func @transform_14(%arg0: i32) -> (i32, i32) {
    %c0_i32 = arith.constant 0 : i32
    %c0_i32_0 = arith.constant 0 : i32
    %c0_i32_1 = arith.constant 0 : i32
    return %c0_i32, %c0_i32_0 : i32, i32
  }
  func.func @transform_15(%arg0: i32) -> (i32, i32) {
    %c0_i32 = arith.constant 0 : i32
    %c0_i32_0 = arith.constant 0 : i32
    %c0_i32_1 = arith.constant 0 : i32
    return %c0_i32, %c0_i32_0 : i32, i32
  }
  func.func @transform_16(%arg0: i32) -> (i32, i32) {
    %c0_i32 = arith.constant 0 : i32
    %c0_i32_0 = arith.constant 0 : i32
    %c0_i32_1 = arith.constant 0 : i32
    return %c0_i32, %c0_i32_0 : i32, i32
  }
  func.func @transform_17(%arg0: i32) -> (i32, i32) {
    %c0_i32 = arith.constant 0 : i32
    %c0_i32_0 = arith.constant 0 : i32
    %c0_i32_1 = arith.constant 0 : i32
    return %c0_i32, %c0_i32_0 : i32, i32
  }
  func.func @transform_18(%arg0: i32) -> (i32, i32) {
    %c0_i32 = arith.constant 0 : i32
    %c0_i32_0 = arith.constant 0 : i32
    %c0_i32_1 = arith.constant 0 : i32
    return %c0_i32, %c0_i32_0 : i32, i32
  }
  func.func @transform_19(%arg0: i32) -> (i32, i32) {
    %c0_i32 = arith.constant 0 : i32
    %c0_i32_0 = arith.constant 0 : i32
    return %c0_i32, %arg0 : i32, i32
  }
}

</mosaic_0001>

<llo_original>
// kernel: tpu_custom_call.1
$region0: #{tpu_custom_call.1}
  #allocation0 [shape = 'u32[]', space=smem, size = 0x4, offset = 0x4, fixed_abs, tag = 'smem constant byte address 0x4 - core index']
  #allocation1 [shape = 'u32[144,128]{1,0:T(1,128)}', space=vmem, size = 0x12000, scoped, tag = 'internal scratch']
  %s0 = inlined_call_operand.vmem [shape: f32[8,512], index: 0, kind: input, shape index: {}]
  %s1 = inlined_call_operand.vmem [shape: f32[16,8], index: 1, kind: input, shape index: {}]
  %s2 = inlined_call_operand.vmem [shape: f32[16,8], index: 2, kind: input, shape index: {}]
  %s3 = inlined_call_operand.vmem [shape: f32[16,1], index: 3, kind: input, shape index: {}]
  %s4 = inlined_call_operand.vmem [shape: f32[8,8], index: 4, kind: input, shape index: {}]
  %s5 = inlined_call_operand.vmem [shape: f32[8,8], index: 5, kind: input, shape index: {}]
  %s6 = inlined_call_operand.vmem [shape: f32[8,1], index: 6, kind: input, shape index: {}]
  %s7 = inlined_call_operand.vmem [shape: f32[8,8], index: 7, kind: input, shape index: {}]
  %s8 = inlined_call_operand.vmem [shape: f32[8,8], index: 8, kind: input, shape index: {}]
  %s9 = inlined_call_operand.vmem [shape: f32[8,1], index: 9, kind: input, shape index: {}]
  %s10 = inlined_call_operand.vmem [shape: f32[8,8], index: 10, kind: input, shape index: {}]
  %s11 = inlined_call_operand.vmem [shape: f32[8,8], index: 11, kind: input, shape index: {}]
  %s12 = inlined_call_operand.vmem [shape: f32[8,1], index: 12, kind: input, shape index: {}]
  %s13 = inlined_call_operand.vmem [shape: f32[8,8], index: 13, kind: input, shape index: {}]
  %s14 = inlined_call_operand.vmem [shape: f32[8,8], index: 14, kind: input, shape index: {}]
  %s15 = inlined_call_operand.vmem [shape: f32[8,1], index: 15, kind: input, shape index: {}]
  %s16 = inlined_call_operand.vmem [shape: f32[8,8], index: 16, kind: input, shape index: {}]
  %s17 = inlined_call_operand.vmem [shape: f32[8,8], index: 17, kind: input, shape index: {}]
  %s18 = inlined_call_operand.vmem [shape: f32[8,1], index: 18, kind: input, shape index: {}]
  %s19 = inlined_call_operand.hbm [shape: f32[8,512], index: 19, kind: output, shape index: {}]
  %s20 = sld [smem:[#allocation0]]
  $region86: #{tpu_custom_call.1} parent=0
    _
  %s22 = ssub.s32 1, %s20
  %s23 = scalar_select 0, %s22, %s20
  $region1: #{tpu_custom_call.1} parent=0
    #allocation2 [shape = 'u8[16384]{0}', space=vmem, size = 0x4000, scoped, tag = 'output window, operand 0, single buffered']
    #allocation3 [shape = 's32[1]{0}', space=sflag, size = 0x4, scoped, tag = 'scoped memory for tpu_custom_call.1']
    %24 = vsyncpa [#allocation3], 0
    // Predicated region
    $region2: #{tpu_custom_call.1} parent=1 // pred_check
      _
    $region3: #{tpu_custom_call.1} parent=1 // pred_check_branch
      %26 = sbr.rel (0) target = $region5
    $region4: #{tpu_custom_call.1} parent=1 // pred_region
      _
    $region5: #{tpu_custom_call.1} parent=1 // pred_fallthru
      _
    // Predicated region
    $region6: #{tpu_custom_call.1} parent=1 // pred_check
      _
    $region7: #{tpu_custom_call.1} parent=1 // pred_check_branch
      %28 = sbr.rel (0) target = $region9
    $region8: #{tpu_custom_call.1} parent=1 // pred_region
      _
    $region9: #{tpu_custom_call.1} parent=1 // pred_fallthru
      _
    // Predicated region
    $region10: #{tpu_custom_call.1} parent=1 // pred_check
      _
    $region11: #{tpu_custom_call.1} parent=1 // pred_check_branch
      %30 = sbr.rel (0) target = $region13
    $region12: #{tpu_custom_call.1} parent=1 // pred_region
      _
    $region13: #{tpu_custom_call.1} parent=1 // pred_fallthru
      _
    // Predicated region
    $region14: #{tpu_custom_call.1} parent=1 // pred_check
      _
    $region15: #{tpu_custom_call.1} parent=1 // pred_check_branch
      %32 = sbr.rel (0) target = $region17
    $region16: #{tpu_custom_call.1} parent=1 // pred_region
      _
    $region17: #{tpu_custom_call.1} parent=1 // pred_fallthru
      _
    // Predicated region
    $region18: #{tpu_custom_call.1} parent=1 // pred_check
      _
    $region19: #{tpu_custom_call.1} parent=1 // pred_check_branch
      %34 = sbr.rel (0) target = $region21
    $region20: #{tpu_custom_call.1} parent=1 // pred_region
      _
    $region21: #{tpu_custom_call.1} parent=1 // pred_fallthru
      _
    // Predicated region
    $region22: #{tpu_custom_call.1} parent=1 // pred_check
      _
    $region23: #{tpu_custom_call.1} parent=1 // pred_check_branch
      %36 = sbr.rel (0) target = $region25
    $region24: #{tpu_custom_call.1} parent=1 // pred_region
      _
    $region25: #{tpu_custom_call.1} parent=1 // pred_fallthru
      _
    // Predicated region
    $region26: #{tpu_custom_call.1} parent=1 // pred_check
      _
    $region27: #{tpu_custom_call.1} parent=1 // pred_check_branch
      %38 = sbr.rel (0) target = $region29
    $region28: #{tpu_custom_call.1} parent=1 // pred_region
      _
    $region29: #{tpu_custom_call.1} parent=1 // pred_fallthru
      _
    // Predicated region
    $region30: #{tpu_custom_call.1} parent=1 // pred_check
      _
    $region31: #{tpu_custom_call.1} parent=1 // pred_check_branch
      %40 = sbr.rel (0) target = $region33
    $region32: #{tpu_custom_call.1} parent=1 // pred_region
      _
    $region33: #{tpu_custom_call.1} parent=1 // pred_fallthru
      _
    // Predicated region
    $region34: #{tpu_custom_call.1} parent=1 // pred_check
      _
    $region35: #{tpu_custom_call.1} parent=1 // pred_check_branch
      %42 = sbr.rel (0) target = $region37
    $region36: #{tpu_custom_call.1} parent=1 // pred_region
      _
    $region37: #{tpu_custom_call.1} parent=1 // pred_fallthru
      _
    // Predicated region
    $region38: #{tpu_custom_call.1} parent=1 // pred_check
      _
    $region39: #{tpu_custom_call.1} parent=1 // pred_check_branch
      %44 = sbr.rel (0) target = $region41
    $region40: #{tpu_custom_call.1} parent=1 // pred_region
      _
    $region41: #{tpu_custom_call.1} parent=1 // pred_fallthru
      _
    // Predicated region
    $region42: #{tpu_custom_call.1} parent=1 // pred_check
      _
    $region43: #{tpu_custom_call.1} parent=1 // pred_check_branch
      %46 = sbr.rel (0) target = $region45
    $region44: #{tpu_custom_call.1} parent=1 // pred_region
      _
    $region45: #{tpu_custom_call.1} parent=1 // pred_fallthru
      _
    // Predicated region
    $region46: #{tpu_custom_call.1} parent=1 // pred_check
      _
    $region47: #{tpu_custom_call.1} parent=1 // pred_check_branch
      %48 = sbr.rel (0) target = $region49
    $region48: #{tpu_custom_call.1} parent=1 // pred_region
      _
    $region49: #{tpu_custom_call.1} parent=1 // pred_fallthru
      _
    // Predicated region
    $region50: #{tpu_custom_call.1} parent=1 // pred_check
      _
    $region51: #{tpu_custom_call.1} parent=1 // pred_check_branch
      %50 = sbr.rel (0) target = $region53
    $region52: #{tpu_custom_call.1} parent=1 // pred_region
      _
    $region53: #{tpu_custom_call.1} parent=1 // pred_fallthru
      _
    // Predicated region
    $region54: #{tpu_custom_call.1} parent=1 // pred_check
      _
    $region55: #{tpu_custom_call.1} parent=1 // pred_check_branch
      %52 = sbr.rel (0) target = $region57
    $region56: #{tpu_custom_call.1} parent=1 // pred_region
      _
    $region57: #{tpu_custom_call.1} parent=1 // pred_fallthru
      _
    // Predicated region
    $region58: #{tpu_custom_call.1} parent=1 // pred_check
      _
    $region59: #{tpu_custom_call.1} parent=1 // pred_check_branch
      %54 = sbr.rel (0) target = $region61
    $region60: #{tpu_custom_call.1} parent=1 // pred_region
      _
    $region61: #{tpu_custom_call.1} parent=1 // pred_fallthru
      _
    // Predicated region
    $region62: #{tpu_custom_call.1} parent=1 // pred_check
      _
    $region63: #{tpu_custom_call.1} parent=1 // pred_check_branch
      %56 = sbr.rel (0) target = $region65
    $region64: #{tpu_custom_call.1} parent=1 // pred_region
      _
    $region65: #{tpu_custom_call.1} parent=1 // pred_fallthru
      _
    // Predicated region
    $region66: #{tpu_custom_call.1} parent=1 // pred_check
      _
    $region67: #{tpu_custom_call.1} parent=1 // pred_check_branch
      %58 = sbr.rel (0) target = $region69
    $region68: #{tpu_custom_call.1} parent=1 // pred_region
      _
    $region69: #{tpu_custom_call.1} parent=1 // pred_fallthru
      _
    // Predicated region
    $region70: #{tpu_custom_call.1} parent=1 // pred_check
      _
    $region71: #{tpu_custom_call.1} parent=1 // pred_check_branch
      %60 = sbr.rel (0) target = $region73
    $region72: #{tpu_custom_call.1} parent=1 // pred_region
      _
    $region73: #{tpu_custom_call.1} parent=1 // pred_fallthru
      _
    // Predicated region
    $region74: #{tpu_custom_call.1} parent=1 // pred_check
      _
    $region75: #{tpu_custom_call.1} parent=1 // pred_check_branch
      %62 = sbr.rel (0) target = $region77
    $region76: #{tpu_custom_call.1} parent=1 // pred_region
      _
    $region77: #{tpu_custom_call.1} parent=1 // pred_fallthru
      _
    %v63 = vlaneseq
    %v64 = vand.u32 %v63, 127
    %v65 = vadd.s32 %v64, 128
    %v66 = vadd.s32 %v64, 256
    %v67 = vadd.s32 %v64, 384
    %vm68 = vcmp.lt.s32.totalorder %v64, 0
    %v69 = vsub.s32 0, %v64
    %v70 = vsel %vm68, %v69, %v64
    %v71 = vshrl.u32 %v70, 7
    %v72 = vand.u32 %v70, 127
    %v73 = vsub.s32 0, %v72
    %v74 = vsel %vm68, %v73, %v72
    %vm75 = vcmp.lt.s32.totalorder %v65, 0
    %v76 = vsub.s32 0, %v65
    %v77 = vsel %vm75, %v76, %v65
    %v78 = vshrl.u32 %v77, 7
    %v79 = vand.u32 %v77, 127
    %v80 = vsub.s32 0, %v79
    %v81 = vsel %vm75, %v80, %v79
    %vm82 = vcmp.lt.s32.totalorder %v66, 0
    %v83 = vsub.s32 0, %v66
    %v84 = vsel %vm82, %v83, %v66
    %v85 = vshrl.u32 %v84, 7
    %v86 = vand.u32 %v84, 127
    %v87 = vsub.s32 0, %v86
    %v88 = vsel %vm82, %v87, %v86
    %vm89 = vcmp.lt.s32.totalorder %v67, 0
    %v90 = vsub.s32 0, %v67
    %v91 = vsel %vm89, %v90, %v67
    %v92 = vshrl.u32 %v91, 7
    %v93 = vand.u32 %v91, 127
    %v94 = vsub.s32 0, %v93
    %v95 = vsel %vm89, %v94, %v93
    %vm96 = vcmp.ge.s32.totalorder %v74, 1
    %vm97 = vcmp.ge.s32.totalorder %v81, 1
    %vm98 = vcmp.ge.s32.totalorder %v88, 1
    %vm99 = vcmp.ge.s32.totalorder %v95, 1
    %vm100 = vcmp.ge.s32.totalorder %v74, 2
    %vm101 = vcmp.ge.s32.totalorder %v81, 2
    %vm102 = vcmp.ge.s32.totalorder %v88, 2
    %vm103 = vcmp.ge.s32.totalorder %v95, 2
    %v104 = vld [vmem:[%s0] sm:$0xff]
    %v105 = vld [vmem:[%s0 + $0x8] sm:$0xff]
    %v106 = vld [vmem:[%s0 + $0x10] sm:$0xff]
    %v107 = vld [vmem:[%s0 + $0x18] sm:$0xff]
    %108 = vrot.lane.b32.xlu0 %v104, 1
    %v109 = vpop.permute.xlu0 %108
    %110 = vrot.lane.b32.xlu0 %v105, 1
    %v111 = vpop.permute.xlu0 %110
    %112 = vrot.lane.b32.xlu0 %v106, 1
    %v113 = vpop.permute.xlu0 %112
    %114 = vrot.lane.b32.xlu0 %v107, 1
    %v115 = vpop.permute.xlu0 %114
    %vm116 = vcmp.lt.s32.totalorder %v64, 1
    %v117 = vsel %vm116, %v113, %v115
    %v118 = vsel %vm116, %v111, %v113
    %v119 = vsel %vm116, %v109, %v111
    %v120 = vsel %vm116, %v115, %v109
    %v121 = vsel %vm96, 1, 0
    %v122 = vsel %vm97, 1, 0
    %v123 = vsel %vm98, 1, 0
    %v124 = vsel %vm99, 1, 0
    %vm125 = vcmp.eq.s32.totalorder %v121, 1
    %vm126 = vcmp.eq.s32.totalorder %v122, 1
    %vm127 = vcmp.eq.s32.totalorder %v123, 1
    %vm128 = vcmp.eq.s32.totalorder %v124, 1
    %v129 = vsel %vm125, %v120, 0.0
    %v130 = vsel %vm126, %v119, 0.0
    %v131 = vsel %vm127, %v118, 0.0
    %v132 = vsel %vm128, %v117, 0.0
    %v133 = vld [vmem:[%s1] sm:$0xff]
    %v134 = vld [vmem:[%s1 + $0x8] sm:$0xff]
    %v135 = vld [vmem:[%s2] sm:$0xff]
    %v136 = vld [vmem:[%s2 + $0x8] sm:$0xff]
    %vm137 = vcmask 64512
    %v139 = vsel %vm137, %v135, 0
    %v142 = vsel %vm137, %v136, 0
    %144 = vmatprep.subr.mxu0 0.0
    %145 = vmatpush1.msra.mxu0 0.0
    %146 = vmatprep.subr.mxu0 0.0
    %147 = vmatpush1.msra.mxu0 0.0
    %148 = vmatprep.subr.mxu0 0.0
    %149 = vmatpush1.msra.mxu0 0.0
    %150 = vmatprep.subr.mxu0 0.0
    %151 = vmatpush1.msra.mxu0 0.0
    %152 = vmatprep.subr.mxu0 0.0
    %153 = vmatpush1.msra.mxu0 0.0
    %154 = vmatprep.subr.mxu0 0.0
    %155 = vmatpush1.msra.mxu0 0.0
    %156 = vmatprep.subr.mxu0 0.0
    %157 = vmatpush1.msra.mxu0 0.0
    %158 = vmatprep.subr.mxu0 0.0
    %159 = vmatpush1.msra.mxu0 0.0
    %160 = vmatprep.subr.mxu0 0.0
    %161 = vmatpush1.msra.mxu0 0.0
    %162 = vmatprep.subr.mxu0 0.0
    %163 = vmatpush1.msra.mxu0 0.0
    %164 = vmatprep.subr.mxu0 0.0
    %165 = vmatpush1.msra.mxu0 0.0
    %166 = vmatprep.subr.mxu0 0.0
    %167 = vmatpush1.msra.mxu0 0.0
    %168 = vmatprep.subr.mxu0 0.0
    %169 = vmatpush1.msra.mxu0 0.0
    %170 = vmatprep.subr.mxu0 0.0
    %171 = vmatpush1.msra.mxu0 0.0
    %172 = vmatprep.subr.mxu0 0.0
    %173 = vmatpush1.msra.mxu0 0.0
    %174 = vmatprep.subr.mxu0 %v105
    %175 = vmatpush1.msra.mxu0 %v104
    %176 = vmatprep.subr.mxu0 0.0
    %177 = vmatpush2.msra.mxu0 0.0
    %178 = vmatprep.subr.mxu0 0.0
    %179 = vmatpush2.msra.mxu0 0.0
    %180 = vmatprep.subr.mxu0 0.0
    %181 = vmatpush2.msra.mxu0 0.0
    %182 = vmatprep.subr.mxu0 0.0
    %183 = vmatpush2.msra.mxu0 0.0
    %184 = vmatprep.subr.mxu0 0.0
    %185 = vmatpush2.msra.mxu0 0.0
    %186 = vmatprep.subr.mxu0 0.0
    %187 = vmatpush2.msra.mxu0 0.0
    %188 = vmatprep.subr.mxu0 0.0
    %189 = vmatpush2.msra.mxu0 0.0
    %190 = vmatprep.subr.mxu0 0.0
    %191 = vmatpush2.msra.mxu0 0.0
    %192 = vmatprep.subr.mxu0 0.0
    %193 = vmatpush2.msra.mxu0 0.0
    %194 = vmatprep.subr.mxu0 0.0
    %195 = vmatpush2.msra.mxu0 0.0
    %196 = vmatprep.subr.mxu0 0.0
    %197 = vmatpush2.msra.mxu0 0.0
    %198 = vmatprep.subr.mxu0 0.0
    %199 = vmatpush2.msra.mxu0 0.0
    %200 = vmatprep.subr.mxu0 0.0
    %201 = vmatpush2.msra.mxu0 0.0
    %202 = vmatprep.subr.mxu0 0.0
    %203 = vmatpush2.msra.mxu0 0.0
    %204 = vmatprep.subr.mxu0 0.0
    %205 = vmatpush2.msra.mxu0 0.0
    %206 = vmatprep.subr.mxu0 0.0
    %207 = vmatpush2.msra.mxu0 0.0
    %208 = vmatprep.mubr.f32.mxu0 0.0
    %209 = vmatmul.mubr.f32.gmra.mxu0 %v139
    %v210 = vpop.f32.mrf.mxu0
    %v211 = vadd.f32 0.0, %v210
    %v212 = vpop.f32.mrf.mxu0
    %v213 = vadd.f32 0.0, %v212
    %214 = vmatprep.mubr.f32.mxu0 0.0
    %215 = vmatmul.mubr.f32.gmra.mxu0 %v142
    %v216 = vpop.f32.mrf.mxu0
    %v217 = vadd.f32 0.0, %v216
    %v218 = vpop.f32.mrf.mxu0
    %v219 = vadd.f32 0.0, %v218
    %220 = vdwg.mxu0
    %221 = vmatprep.subr.mxu0 0.0
    %222 = vmatpush1.msra.mxu0 0.0
    %223 = vmatprep.subr.mxu0 0.0
    %224 = vmatpush1.msra.mxu0 0.0
    %225 = vmatprep.subr.mxu0 0.0
    %226 = vmatpush1.msra.mxu0 0.0
    %227 = vmatprep.subr.mxu0 0.0
    %228 = vmatpush1.msra.mxu0 0.0
    %229 = vmatprep.subr.mxu0 0.0
    %230 = vmatpush1.msra.mxu0 0.0
    %231 = vmatprep.subr.mxu0 0.0
    %232 = vmatpush1.msra.mxu0 0.0
    %233 = vmatprep.subr.mxu0 0.0
    %234 = vmatpush1.msra.mxu0 0.0
    %235 = vmatprep.subr.mxu0 0.0
    %236 = vmatpush1.msra.mxu0 0.0
    %237 = vmatprep.subr.mxu0 0.0
    %238 = vmatpush1.msra.mxu0 0.0
    %239 = vmatprep.subr.mxu0 0.0
    %240 = vmatpush1.msra.mxu0 0.0
    %241 = vmatprep.subr.mxu0 0.0
    %242 = vmatpush1.msra.mxu0 0.0
    %243 = vmatprep.subr.mxu0 0.0
    %244 = vmatpush1.msra.mxu0 0.0
    %245 = vmatprep.subr.mxu0 0.0
    %246 = vmatpush1.msra.mxu0 0.0
    %247 = vmatprep.subr.mxu0 0.0
    %248 = vmatpush1.msra.mxu0 0.0
    %249 = vmatprep.subr.mxu0 0.0
    %250 = vmatpush1.msra.mxu0 0.0
    %251 = vmatprep.subr.mxu0 %v107
    %252 = vmatpush1.msra.mxu0 %v106
    %253 = vmatprep.subr.mxu0 0.0
    %254 = vmatpush2.msra.mxu0 0.0
    %255 = vmatprep.subr.mxu0 0.0
    %256 = vmatpush2.msra.mxu0 0.0
    %257 = vmatprep.subr.mxu0 0.0
    %258 = vmatpush2.msra.mxu0 0.0
    %259 = vmatprep.subr.mxu0 0.0
    %260 = vmatpush2.msra.mxu0 0.0
    %261 = vmatprep.subr.mxu0 0.0
    %262 = vmatpush2.msra.mxu0 0.0
    %263 = vmatprep.subr.mxu0 0.0
    %264 = vmatpush2.msra.mxu0 0.0
    %265 = vmatprep.subr.mxu0 0.0
    %266 = vmatpush2.msra.mxu0 0.0
    %267 = vmatprep.subr.mxu0 0.0
    %268 = vmatpush2.msra.mxu0 0.0
    %269 = vmatprep.subr.mxu0 0.0
    %270 = vmatpush2.msra.mxu0 0.0
    %271 = vmatprep.subr.mxu0 0.0
    %272 = vmatpush2.msra.mxu0 0.0
    %273 = vmatprep.subr.mxu0 0.0
    %274 = vmatpush2.msra.mxu0 0.0
    %275 = vmatprep.subr.mxu0 0.0
    %276 = vmatpush2.msra.mxu0 0.0
    %277 = vmatprep.subr.mxu0 0.0
    %278 = vmatpush2.msra.mxu0 0.0
    %279 = vmatprep.subr.mxu0 0.0
    %280 = vmatpush2.msra.mxu0 0.0
    %281 = vmatprep.subr.mxu0 0.0
    %282 = vmatpush2.msra.mxu0 0.0
    %283 = vmatprep.subr.mxu0 0.0
    %284 = vmatpush2.msra.mxu0 0.0
    %285 = vmatprep.mubr.f32.mxu0 0.0
    %286 = vmatmul.mubr.f32.gmra.mxu0 %v139
    %v287 = vpop.f32.mrf.mxu0
    %v288 = vadd.f32 0.0, %v287
    %v289 = vpop.f32.mrf.mxu0
    %v290 = vadd.f32 0.0, %v289
    %291 = vmatprep.mubr.f32.mxu0 0.0
    %292 = vmatmul.mubr.f32.gmra.mxu0 %v142
    %v293 = vpop.f32.mrf.mxu0
    %v294 = vadd.f32 0.0, %v293
    %v295 = vpop.f32.mrf.mxu0
    %v296 = vadd.f32 0.0, %v295
    %297 = vdwg.mxu0
    %v299 = vsel %vm137, %v133, 0
    %v302 = vsel %vm137, %v134, 0
    %304 = vmatprep.subr.mxu0 0.0
    %305 = vmatpush1.msra.mxu0 0.0
    %306 = vmatprep.subr.mxu0 0.0
    %307 = vmatpush1.msra.mxu0 0.0
    %308 = vmatprep.subr.mxu0 0.0
    %309 = vmatpush1.msra.mxu0 0.0
    %310 = vmatprep.subr.mxu0 0.0
    %311 = vmatpush1.msra.mxu0 0.0
    %312 = vmatprep.subr.mxu0 0.0
    %313 = vmatpush1.msra.mxu0 0.0
    %314 = vmatprep.subr.mxu0 0.0
    %315 = vmatpush1.msra.mxu0 0.0
    %316 = vmatprep.subr.mxu0 0.0
    %317 = vmatpush1.msra.mxu0 0.0
    %318 = vmatprep.subr.mxu0 0.0
    %319 = vmatpush1.msra.mxu0 0.0
    %320 = vmatprep.subr.mxu0 0.0
    %321 = vmatpush1.msra.mxu0 0.0
    %322 = vmatprep.subr.mxu0 0.0
    %323 = vmatpush1.msra.mxu0 0.0
    %324 = vmatprep.subr.mxu0 0.0
    %325 = vmatpush1.msra.mxu0 0.0
    %326 = vmatprep.subr.mxu0 0.0
    %327 = vmatpush1.msra.mxu0 0.0
    %328 = vmatprep.subr.mxu0 0.0
    %329 = vmatpush1.msra.mxu0 0.0
    %330 = vmatprep.subr.mxu0 0.0
    %331 = vmatpush1.msra.mxu0 0.0
    %332 = vmatprep.subr.mxu0 0.0
    %333 = vmatpush1.msra.mxu0 0.0
    %334 = vmatprep.subr.mxu0 %v130
    %335 = vmatpush1.msra.mxu0 %v129
    %336 = vmatprep.subr.mxu0 0.0
    %337 = vmatpush2.msra.mxu0 0.0
    %338 = vmatprep.subr.mxu0 0.0
    %339 = vmatpush2.msra.mxu0 0.0
    %340 = vmatprep.subr.mxu0 0.0
    %341 = vmatpush2.msra.mxu0 0.0
    %342 = vmatprep.subr.mxu0 0.0
    %343 = vmatpush2.msra.mxu0 0.0
    %344 = vmatprep.subr.mxu0 0.0
    %345 = vmatpush2.msra.mxu0 0.0
    %346 = vmatprep.subr.mxu0 0.0
    %347 = vmatpush2.msra.mxu0 0.0
    %348 = vmatprep.subr.mxu0 0.0
    %349 = vmatpush2.msra.mxu0 0.0
    %350 = vmatprep.subr.mxu0 0.0
    %351 = vmatpush2.msra.mxu0 0.0
    %352 = vmatprep.subr.mxu0 0.0
    %353 = vmatpush2.msra.mxu0 0.0
    %354 = vmatprep.subr.mxu0 0.0
    %355 = vmatpush2.msra.mxu0 0.0
    %356 = vmatprep.subr.mxu0 0.0
    %357 = vmatpush2.msra.mxu0 0.0
    %358 = vmatprep.subr.mxu0 0.0
    %359 = vmatpush2.msra.mxu0 0.0
    %360 = vmatprep.subr.mxu0 0.0
    %361 = vmatpush2.msra.mxu0 0.0
    %362 = vmatprep.subr.mxu0 0.0
    %363 = vmatpush2.msra.mxu0 0.0
    %364 = vmatprep.subr.mxu0 0.0
    %365 = vmatpush2.msra.mxu0 0.0
    %366 = vmatprep.subr.mxu0 0.0
    %367 = vmatpush2.msra.mxu0 0.0
    %368 = vmatprep.mubr.f32.mxu0 0.0
    %369 = vmatmul.mubr.f32.gmra.mxu0 %v299
    %v370 = vpop.f32.mrf.mxu0
    %v371 = vadd.f32 %v211, %v370
    %v372 = vpop.f32.mrf.mxu0
    %v373 = vadd.f32 %v213, %v372
    %374 = vmatprep.mubr.f32.mxu0 0.0
    %375 = vmatmul.mubr.f32.gmra.mxu0 %v302
    %v376 = vpop.f32.mrf.mxu0
    %v377 = vadd.f32 %v217, %v376
    %v378 = vpop.f32.mrf.mxu0
    %v379 = vadd.f32 %v219, %v378
    %380 = vdwg.mxu0
    %381 = vmatprep.subr.mxu0 0.0
    %382 = vmatpush1.msra.mxu0 0.0
    %383 = vmatprep.subr.mxu0 0.0
    %384 = vmatpush1.msra.mxu0 0.0
    %385 = vmatprep.subr.mxu0 0.0
    %386 = vmatpush1.msra.mxu0 0.0
    %387 = vmatprep.subr.mxu0 0.0
    %388 = vmatpush1.msra.mxu0 0.0
    %389 = vmatprep.subr.mxu0 0.0
    %390 = vmatpush1.msra.mxu0 0.0
    %391 = vmatprep.subr.mxu0 0.0
    %392 = vmatpush1.msra.mxu0 0.0
    %393 = vmatprep.subr.mxu0 0.0
    %394 = vmatpush1.msra.mxu0 0.0
    %395 = vmatprep.subr.mxu0 0.0
    %396 = vmatpush1.msra.mxu0 0.0
    %397 = vmatprep.subr.mxu0 0.0
    %398 = vmatpush1.msra.mxu0 0.0
    %399 = vmatprep.subr.mxu0 0.0
    %400 = vmatpush1.msra.mxu0 0.0
    %401 = vmatprep.subr.mxu0 0.0
    %402 = vmatpush1.msra.mxu0 0.0
    %403 = vmatprep.subr.mxu0 0.0
    %404 = vmatpush1.msra.mxu0 0.0
    %405 = vmatprep.subr.mxu0 0.0
    %406 = vmatpush1.msra.mxu0 0.0
    %407 = vmatprep.subr.mxu0 0.0
    %408 = vmatpush1.msra.mxu0 0.0
    %409 = vmatprep.subr.mxu0 0.0
    %410 = vmatpush1.msra.mxu0 0.0
    %411 = vmatprep.subr.mxu0 %v132
    %412 = vmatpush1.msra.mxu0 %v131
    %413 = vmatprep.subr.mxu0 0.0
    %414 = vmatpush2.msra.mxu0 0.0
    %415 = vmatprep.subr.mxu0 0.0
    %416 = vmatpush2.msra.mxu0 0.0
    %417 = vmatprep.subr.mxu0 0.0
    %418 = vmatpush2.msra.mxu0 0.0
    %419 = vmatprep.subr.mxu0 0.0
    %420 = vmatpush2.msra.mxu0 0.0
    %421 = vmatprep.subr.mxu0 0.0
    %422 = vmatpush2.msra.mxu0 0.0
    %423 = vmatprep.subr.mxu0 0.0
    %424 = vmatpush2.msra.mxu0 0.0
    %425 = vmatprep.subr.mxu0 0.0
    %426 = vmatpush2.msra.mxu0 0.0
    %427 = vmatprep.subr.mxu0 0.0
    %428 = vmatpush2.msra.mxu0 0.0
    %429 = vmatprep.subr.mxu0 0.0
    %430 = vmatpush2.msra.mxu0 0.0
    %431 = vmatprep.subr.mxu0 0.0
    %432 = vmatpush2.msra.mxu0 0.0
    %433 = vmatprep.subr.mxu0 0.0
    %434 = vmatpush2.msra.mxu0 0.0
    %435 = vmatprep.subr.mxu0 0.0
    %436 = vmatpush2.msra.mxu0 0.0
    %437 = vmatprep.subr.mxu0 0.0
    %438 = vmatpush2.msra.mxu0 0.0
    %439 = vmatprep.subr.mxu0 0.0
    %440 = vmatpush2.msra.mxu0 0.0
    %441 = vmatprep.subr.mxu0 0.0
    %442 = vmatpush2.msra.mxu0 0.0
    %443 = vmatprep.subr.mxu0 0.0
    %444 = vmatpush2.msra.mxu0 0.0
    %445 = vmatprep.mubr.f32.mxu0 0.0
    %446 = vmatmul.mubr.f32.gmra.mxu0 %v299
    %v447 = vpop.f32.mrf.mxu0
    %v448 = vadd.f32 %v288, %v447
    %v449 = vpop.f32.mrf.mxu0
    %v450 = vadd.f32 %v290, %v449
    %451 = vmatprep.mubr.f32.mxu0 0.0
    %452 = vmatmul.mubr.f32.gmra.mxu0 %v302
    %v453 = vpop.f32.mrf.mxu0
    %v454 = vadd.f32 %v294, %v453
    %v455 = vpop.f32.mrf.mxu0
    %v456 = vadd.f32 %v296, %v455
    %457 = vdwg.mxu0
    %v458 = vld [vmem:[%s3] sm:$0xff]
    %v459 = vld [vmem:[%s3 + $0x8] sm:$0xff]
    %461 = vset.pattern.permute.xlu0 0
    %462 = vperm.xlu0 %461, %v458
    %v463 = vpop.permute.xlu0 %462
    %466 = vset.pattern.permute.xlu0 0
    %467 = vperm.xlu0 %466, %v459
    %v468 = vpop.permute.xlu0 %467
    %v470 = vadd.f32 %v371, %v463
    %v471 = vadd.f32 %v373, %v463
    %v472 = vadd.f32 %v448, %v463
    %v473 = vadd.f32 %v450, %v463
    %v474 = vadd.f32 %v377, %v468
    %v475 = vadd.f32 %v379, %v468
    %v476 = vadd.f32 %v454, %v468
    %v477 = vadd.f32 %v456, %v468
    %v478 = vmax.f32 %v470, 0.0
    %v479 = vmax.f32 %v471, 0.0
    %v480 = vmax.f32 %v472, 0.0
    %v481 = vmax.f32 %v473, 0.0
    %482 = vrot.lane.b32.xlu0 %v478, 1
    %v483 = vpop.permute.xlu0 %482
    %484 = vrot.lane.b32.xlu0 %v479, 1
    %v485 = vpop.permute.xlu0 %484
    %486 = vrot.lane.b32.xlu0 %v480, 1
    %v487 = vpop.permute.xlu0 %486
    %488 = vrot.lane.b32.xlu0 %v481, 1
    %v489 = vpop.permute.xlu0 %488
    %v490 = vsel %vm116, %v487, %v489
    %v491 = vsel %vm116, %v485, %v487
    %v492 = vsel %vm116, %v483, %v485
    %v493 = vsel %vm116, %v489, %v483
    %v494 = vsel %vm125, %v493, 0.0
    %v495 = vsel %vm126, %v492, 0.0
    %v496 = vsel %vm127, %v491, 0.0
    %v497 = vsel %vm128, %v490, 0.0
    %v498 = vld [vmem:[%s4] sm:$0xff]
    %v499 = vld [vmem:[%s5] sm:$0xff]
    %v501 = vsel %vm137, %v499, 0
    %503 = vmatprep.subr.mxu0 0.0
    %504 = vmatpush1.msra.mxu0 0.0
    %505 = vmatprep.subr.mxu0 0.0
    %506 = vmatpush1.msra.mxu0 0.0
    %507 = vmatprep.subr.mxu0 0.0
    %508 = vmatpush1.msra.mxu0 0.0
    %509 = vmatprep.subr.mxu0 0.0
    %510 = vmatpush1.msra.mxu0 0.0
    %511 = vmatprep.subr.mxu0 0.0
    %512 = vmatpush1.msra.mxu0 0.0
    %513 = vmatprep.subr.mxu0 0.0
    %514 = vmatpush1.msra.mxu0 0.0
    %515 = vmatprep.subr.mxu0 0.0
    %516 = vmatpush1.msra.mxu0 0.0
    %517 = vmatprep.subr.mxu0 0.0
    %518 = vmatpush1.msra.mxu0 0.0
    %519 = vmatprep.subr.mxu0 0.0
    %520 = vmatpush1.msra.mxu0 0.0
    %521 = vmatprep.subr.mxu0 0.0
    %522 = vmatpush1.msra.mxu0 0.0
    %523 = vmatprep.subr.mxu0 0.0
    %524 = vmatpush1.msra.mxu0 0.0
    %525 = vmatprep.subr.mxu0 0.0
    %526 = vmatpush1.msra.mxu0 0.0
    %527 = vmatprep.subr.mxu0 0.0
    %528 = vmatpush1.msra.mxu0 0.0
    %529 = vmatprep.subr.mxu0 0.0
    %530 = vmatpush1.msra.mxu0 0.0
    %531 = vmatprep.subr.mxu0 0.0
    %532 = vmatpush1.msra.mxu0 0.0
    %533 = vmatprep.subr.mxu0 %v479
    %534 = vmatpush1.msra.mxu0 %v478
    %535 = vmatprep.subr.mxu0 0.0
    %536 = vmatpush2.msra.mxu0 0.0
    %537 = vmatprep.subr.mxu0 0.0
    %538 = vmatpush2.msra.mxu0 0.0
    %539 = vmatprep.subr.mxu0 0.0
    %540 = vmatpush2.msra.mxu0 0.0
    %541 = vmatprep.subr.mxu0 0.0
    %542 = vmatpush2.msra.mxu0 0.0
    %543 = vmatprep.subr.mxu0 0.0
    %544 = vmatpush2.msra.mxu0 0.0
    %545 = vmatprep.subr.mxu0 0.0
    %546 = vmatpush2.msra.mxu0 0.0
    %547 = vmatprep.subr.mxu0 0.0
    %548 = vmatpush2.msra.mxu0 0.0
    %549 = vmatprep.subr.mxu0 0.0
    %550 = vmatpush2.msra.mxu0 0.0
    %551 = vmatprep.subr.mxu0 0.0
    %552 = vmatpush2.msra.mxu0 0.0
    %553 = vmatprep.subr.mxu0 0.0
    %554 = vmatpush2.msra.mxu0 0.0
    %555 = vmatprep.subr.mxu0 0.0
    %556 = vmatpush2.msra.mxu0 0.0
    %557 = vmatprep.subr.mxu0 0.0
    %558 = vmatpush2.msra.mxu0 0.0
    %559 = vmatprep.subr.mxu0 0.0
    %560 = vmatpush2.msra.mxu0 0.0
    %561 = vmatprep.subr.mxu0 0.0
    %562 = vmatpush2.msra.mxu0 0.0
    %563 = vmatprep.subr.mxu0 0.0
    %564 = vmatpush2.msra.mxu0 0.0
    %565 = vmatprep.subr.mxu0 0.0
    %566 = vmatpush2.msra.mxu0 0.0
    %567 = vmatprep.mubr.f32.mxu0 0.0
    %568 = vmatmul.mubr.f32.gmra.mxu0 %v501
    %v569 = vpop.f32.mrf.mxu0
    %v570 = vadd.f32 0.0, %v569
    %v571 = vpop.f32.mrf.mxu0
    %v572 = vadd.f32 0.0, %v571
    %573 = vdwg.mxu0
    %574 = vmatprep.subr.mxu0 0.0
    %575 = vmatpush1.msra.mxu0 0.0
    %576 = vmatprep.subr.mxu0 0.0
    %577 = vmatpush1.msra.mxu0 0.0
    %578 = vmatprep.subr.mxu0 0.0
    %579 = vmatpush1.msra.mxu0 0.0
    %580 = vmatprep.subr.mxu0 0.0
    %581 = vmatpush1.msra.mxu0 0.0
    %582 = vmatprep.subr.mxu0 0.0
    %583 = vmatpush1.msra.mxu0 0.0
    %584 = vmatprep.subr.mxu0 0.0
    %585 = vmatpush1.msra.mxu0 0.0
    %586 = vmatprep.subr.mxu0 0.0
    %587 = vmatpush1.msra.mxu0 0.0
    %588 = vmatprep.subr.mxu0 0.0
    %589 = vmatpush1.msra.mxu0 0.0
    %590 = vmatprep.subr.mxu0 0.0
    %591 = vmatpush1.msra.mxu0 0.0
    %592 = vmatprep.subr.mxu0 0.0
    %593 = vmatpush1.msra.mxu0 0.0
    %594 = vmatprep.subr.mxu0 0.0
    %595 = vmatpush1.msra.mxu0 0.0
    %596 = vmatprep.subr.mxu0 0.0
    %597 = vmatpush1.msra.mxu0 0.0
    %598 = vmatprep.subr.mxu0 0.0
    %599 = vmatpush1.msra.mxu0 0.0
    %600 = vmatprep.subr.mxu0 0.0
    %601 = vmatpush1.msra.mxu0 0.0
    %602 = vmatprep.subr.mxu0 0.0
    %603 = vmatpush1.msra.mxu0 0.0
    %604 = vmatprep.subr.mxu0 %v481
    %605 = vmatpush1.msra.mxu0 %v480
    %606 = vmatprep.subr.mxu0 0.0
    %607 = vmatpush2.msra.mxu0 0.0
    %608 = vmatprep.subr.mxu0 0.0
    %609 = vmatpush2.msra.mxu0 0.0
    %610 = vmatprep.subr.mxu0 0.0
    %611 = vmatpush2.msra.mxu0 0.0
    %612 = vmatprep.subr.mxu0 0.0
    %613 = vmatpush2.msra.mxu0 0.0
    %614 = vmatprep.subr.mxu0 0.0
    %615 = vmatpush2.msra.mxu0 0.0
    %616 = vmatprep.subr.mxu0 0.0
    %617 = vmatpush2.msra.mxu0 0.0
    %618 = vmatprep.subr.mxu0 0.0
    %619 = vmatpush2.msra.mxu0 0.0
    %620 = vmatprep.subr.mxu0 0.0
    %621 = vmatpush2.msra.mxu0 0.0
    %622 = vmatprep.subr.mxu0 0.0
    %623 = vmatpush2.msra.mxu0 0.0
    %624 = vmatprep.subr.mxu0 0.0
    %625 = vmatpush2.msra.mxu0 0.0
    %626 = vmatprep.subr.mxu0 0.0
    %627 = vmatpush2.msra.mxu0 0.0
    %628 = vmatprep.subr.mxu0 0.0
    %629 = vmatpush2.msra.mxu0 0.0
    %630 = vmatprep.subr.mxu0 0.0
    %631 = vmatpush2.msra.mxu0 0.0
    %632 = vmatprep.subr.mxu0 0.0
    %633 = vmatpush2.msra.mxu0 0.0
    %634 = vmatprep.subr.mxu0 0.0
    %635 = vmatpush2.msra.mxu0 0.0
    %636 = vmatprep.subr.mxu0 0.0
    %637 = vmatpush2.msra.mxu0 0.0
    %638 = vmatprep.mubr.f32.mxu0 0.0
    %639 = vmatmul.mubr.f32.gmra.mxu0 %v501
    %v640 = vpop.f32.mrf.mxu0
    %v641 = vadd.f32 0.0, %v640
    %v642 = vpop.f32.mrf.mxu0
    %v643 = vadd.f32 0.0, %v642
    %644 = vdwg.mxu0
    %v646 = vsel %vm137, %v498, 0
    %648 = vmatprep.subr.mxu0 0.0
    %649 = vmatpush1.msra.mxu0 0.0
    %650 = vmatprep.subr.mxu0 0.0
    %651 = vmatpush1.msra.mxu0 0.0
    %652 = vmatprep.subr.mxu0 0.0
    %653 = vmatpush1.msra.mxu0 0.0
    %654 = vmatprep.subr.mxu0 0.0
    %655 = vmatpush1.msra.mxu0 0.0
    %656 = vmatprep.subr.mxu0 0.0
    %657 = vmatpush1.msra.mxu0 0.0
    %658 = vmatprep.subr.mxu0 0.0
    %659 = vmatpush1.msra.mxu0 0.0
    %660 = vmatprep.subr.mxu0 0.0
    %661 = vmatpush1.msra.mxu0 0.0
    %662 = vmatprep.subr.mxu0 0.0
    %663 = vmatpush1.msra.mxu0 0.0
    %664 = vmatprep.subr.mxu0 0.0
    %665 = vmatpush1.msra.mxu0 0.0
    %666 = vmatprep.subr.mxu0 0.0
    %667 = vmatpush1.msra.mxu0 0.0
    %668 = vmatprep.subr.mxu0 0.0
    %669 = vmatpush1.msra.mxu0 0.0
    %670 = vmatprep.subr.mxu0 0.0
    %671 = vmatpush1.msra.mxu0 0.0
    %672 = vmatprep.subr.mxu0 0.0
    %673 = vmatpush1.msra.mxu0 0.0
    %674 = vmatprep.subr.mxu0 0.0
    %675 = vmatpush1.msra.mxu0 0.0
    %676 = vmatprep.subr.mxu0 0.0
    %677 = vmatpush1.msra.mxu0 0.0
    %678 = vmatprep.subr.mxu0 %v495
    %679 = vmatpush1.msra.mxu0 %v494
    %680 = vmatprep.subr.mxu0 0.0
    %681 = vmatpush2.msra.mxu0 0.0
    %682 = vmatprep.subr.mxu0 0.0
    %683 = vmatpush2.msra.mxu0 0.0
    %684 = vmatprep.subr.mxu0 0.0
    %685 = vmatpush2.msra.mxu0 0.0
    %686 = vmatprep.subr.mxu0 0.0
    %687 = vmatpush2.msra.mxu0 0.0
    %688 = vmatprep.subr.mxu0 0.0
    %689 = vmatpush2.msra.mxu0 0.0
    %690 = vmatprep.subr.mxu0 0.0
    %691 = vmatpush2.msra.mxu0 0.0
    %692 = vmatprep.subr.mxu0 0.0
    %693 = vmatpush2.msra.mxu0 0.0
    %694 = vmatprep.subr.mxu0 0.0
    %695 = vmatpush2.msra.mxu0 0.0
    %696 = vmatprep.subr.mxu0 0.0
    %697 = vmatpush2.msra.mxu0 0.0
    %698 = vmatprep.subr.mxu0 0.0
    %699 = vmatpush2.msra.mxu0 0.0
    %700 = vmatprep.subr.mxu0 0.0
    %701 = vmatpush2.msra.mxu0 0.0
    %702 = vmatprep.subr.mxu0 0.0
    %703 = vmatpush2.msra.mxu0 0.0
    %704 = vmatprep.subr.mxu0 0.0
    %705 = vmatpush2.msra.mxu0 0.0
    %706 = vmatprep.subr.mxu0 0.0
    %707 = vmatpush2.msra.mxu0 0.0
    %708 = vmatprep.subr.mxu0 0.0
    %709 = vmatpush2.msra.mxu0 0.0
    %710 = vmatprep.subr.mxu0 0.0
    %711 = vmatpush2.msra.mxu0 0.0
    %712 = vmatprep.mubr.f32.mxu0 0.0
    %713 = vmatmul.mubr.f32.gmra.mxu0 %v646
    %v714 = vpop.f32.mrf.mxu0
    %v715 = vadd.f32 %v570, %v714
    %v716 = vpop.f32.mrf.mxu0
    %v717 = vadd.f32 %v572, %v716
    %718 = vdwg.mxu0
    %719 = vmatprep.subr.mxu0 0.0
    %720 = vmatpush1.msra.mxu0 0.0
    %721 = vmatprep.subr.mxu0 0.0
    %722 = vmatpush1.msra.mxu0 0.0
    %723 = vmatprep.subr.mxu0 0.0
    %724 = vmatpush1.msra.mxu0 0.0
    %725 = vmatprep.subr.mxu0 0.0
    %726 = vmatpush1.msra.mxu0 0.0
    %727 = vmatprep.subr.mxu0 0.0
    %728 = vmatpush1.msra.mxu0 0.0
    %729 = vmatprep.subr.mxu0 0.0
    %730 = vmatpush1.msra.mxu0 0.0
    %731 = vmatprep.subr.mxu0 0.0
    %732 = vmatpush1.msra.mxu0 0.0
    %733 = vmatprep.subr.mxu0 0.0
    %734 = vmatpush1.msra.mxu0 0.0
    %735 = vmatprep.subr.mxu0 0.0
    %736 = vmatpush1.msra.mxu0 0.0
    %737 = vmatprep.subr.mxu0 0.0
    %738 = vmatpush1.msra.mxu0 0.0
    %739 = vmatprep.subr.mxu0 0.0
    %740 = vmatpush1.msra.mxu0 0.0
    %741 = vmatprep.subr.mxu0 0.0
    %742 = vmatpush1.msra.mxu0 0.0
    %743 = vmatprep.subr.mxu0 0.0
    %744 = vmatpush1.msra.mxu0 0.0
    %745 = vmatprep.subr.mxu0 0.0
    %746 = vmatpush1.msra.mxu0 0.0
    %747 = vmatprep.subr.mxu0 0.0
    %748 = vmatpush1.msra.mxu0 0.0
    %749 = vmatprep.subr.mxu0 %v497
    %750 = vmatpush1.msra.mxu0 %v496
    %751 = vmatprep.subr.mxu0 0.0
    %752 = vmatpush2.msra.mxu0 0.0
    %753 = vmatprep.subr.mxu0 0.0
    %754 = vmatpush2.msra.mxu0 0.0
    %755 = vmatprep.subr.mxu0 0.0
    %756 = vmatpush2.msra.mxu0 0.0
    %757 = vmatprep.subr.mxu0 0.0
    %758 = vmatpush2.msra.mxu0 0.0
    %759 = vmatprep.subr.mxu0 0.0
    %760 = vmatpush2.msra.mxu0 0.0
    %761 = vmatprep.subr.mxu0 0.0
    %762 = vmatpush2.msra.mxu0 0.0
    %763 = vmatprep.subr.mxu0 0.0
    %764 = vmatpush2.msra.mxu0 0.0
    %765 = vmatprep.subr.mxu0 0.0
    %766 = vmatpush2.msra.mxu0 0.0
    %767 = vmatprep.subr.mxu0 0.0
    %768 = vmatpush2.msra.mxu0 0.0
    %769 = vmatprep.subr.mxu0 0.0
    %770 = vmatpush2.msra.mxu0 0.0
    %771 = vmatprep.subr.mxu0 0.0
    %772 = vmatpush2.msra.mxu0 0.0
    %773 = vmatprep.subr.mxu0 0.0
    %774 = vmatpush2.msra.mxu0 0.0
    %775 = vmatprep.subr.mxu0 0.0
    %776 = vmatpush2.msra.mxu0 0.0
    %777 = vmatprep.subr.mxu0 0.0
    %778 = vmatpush2.msra.mxu0 0.0
    %779 = vmatprep.subr.mxu0 0.0
    %780 = vmatpush2.msra.mxu0 0.0
    %781 = vmatprep.subr.mxu0 0.0
    %782 = vmatpush2.msra.mxu0 0.0
    %783 = vmatprep.mubr.f32.mxu0 0.0
    %784 = vmatmul.mubr.f32.gmra.mxu0 %v646
    %v785 = vpop.f32.mrf.mxu0
    %v786 = vadd.f32 %v641, %v785
    %v787 = vpop.f32.mrf.mxu0
    %v788 = vadd.f32 %v643, %v787
    %789 = vdwg.mxu0
    %v790 = vld [vmem:[%s6] sm:$0xff]
    %792 = vset.pattern.permute.xlu0 0
    %793 = vperm.xlu0 %792, %v790
    %v794 = vpop.permute.xlu0 %793
    %v796 = vadd.f32 %v715, %v794
    %v797 = vadd.f32 %v717, %v794
    %v798 = vadd.f32 %v786, %v794
    %v799 = vadd.f32 %v788, %v794
    %v800 = vmax.f32 %v796, 0.0
    %v801 = vmax.f32 %v797, 0.0
    %v802 = vmax.f32 %v798, 0.0
    %v803 = vmax.f32 %v799, 0.0
    %804 = vrot.lane.b32.xlu0 %v800, 1
    %v805 = vpop.permute.xlu0 %804
    %806 = vrot.lane.b32.xlu0 %v801, 1
    %v807 = vpop.permute.xlu0 %806
    %808 = vrot.lane.b32.xlu0 %v802, 1
    %v809 = vpop.permute.xlu0 %808
    %810 = vrot.lane.b32.xlu0 %v803, 1
    %v811 = vpop.permute.xlu0 %810
    %v812 = vsel %vm116, %v809, %v811
    %v813 = vsel %vm116, %v807, %v809
    %v814 = vsel %vm116, %v805, %v807
    %v815 = vsel %vm116, %v811, %v805
    %v816 = vsel %vm125, %v815, 0.0
    %v817 = vsel %vm126, %v814, 0.0
    %v818 = vsel %vm127, %v813, 0.0
    %v819 = vsel %vm128, %v812, 0.0
    %v820 = vld [vmem:[%s7] sm:$0xff]
    %v821 = vld [vmem:[%s8] sm:$0xff]
    %v823 = vsel %vm137, %v821, 0
    %825 = vmatprep.subr.mxu0 0.0
    %826 = vmatpush1.msra.mxu0 0.0
    %827 = vmatprep.subr.mxu0 0.0
    %828 = vmatpush1.msra.mxu0 0.0
    %829 = vmatprep.subr.mxu0 0.0
    %830 = vmatpush1.msra.mxu0 0.0
    %831 = vmatprep.subr.mxu0 0.0
    %832 = vmatpush1.msra.mxu0 0.0
    %833 = vmatprep.subr.mxu0 0.0
    %834 = vmatpush1.msra.mxu0 0.0
    %835 = vmatprep.subr.mxu0 0.0
    %836 = vmatpush1.msra.mxu0 0.0
    %837 = vmatprep.subr.mxu0 0.0
    %838 = vmatpush1.msra.mxu0 0.0
    %839 = vmatprep.subr.mxu0 0.0
    %840 = vmatpush1.msra.mxu0 0.0
    %841 = vmatprep.subr.mxu0 0.0
    %842 = vmatpush1.msra.mxu0 0.0
    %843 = vmatprep.subr.mxu0 0.0
    %844 = vmatpush1.msra.mxu0 0.0
    %845 = vmatprep.subr.mxu0 0.0
    %846 = vmatpush1.msra.mxu0 0.0
    %847 = vmatprep.subr.mxu0 0.0
    %848 = vmatpush1.msra.mxu0 0.0
    %849 = vmatprep.subr.mxu0 0.0
    %850 = vmatpush1.msra.mxu0 0.0
    %851 = vmatprep.subr.mxu0 0.0
    %852 = vmatpush1.msra.mxu0 0.0
    %853 = vmatprep.subr.mxu0 0.0
    %854 = vmatpush1.msra.mxu0 0.0
    %855 = vmatprep.subr.mxu0 %v801
    %856 = vmatpush1.msra.mxu0 %v800
    %857 = vmatprep.subr.mxu0 0.0
    %858 = vmatpush2.msra.mxu0 0.0
    %859 = vmatprep.subr.mxu0 0.0
    %860 = vmatpush2.msra.mxu0 0.0
    %861 = vmatprep.subr.mxu0 0.0
    %862 = vmatpush2.msra.mxu0 0.0
    %863 = vmatprep.subr.mxu0 0.0
    %864 = vmatpush2.msra.mxu0 0.0
    %865 = vmatprep.subr.mxu0 0.0
    %866 = vmatpush2.msra.mxu0 0.0
    %867 = vmatprep.subr.mxu0 0.0
    %868 = vmatpush2.msra.mxu0 0.0
    %869 = vmatprep.subr.mxu0 0.0
    %870 = vmatpush2.msra.mxu0 0.0
    %871 = vmatprep.subr.mxu0 0.0
    %872 = vmatpush2.msra.mxu0 0.0
    %873 = vmatprep.subr.mxu0 0.0
    %874 = vmatpush2.msra.mxu0 0.0
    %875 = vmatprep.subr.mxu0 0.0
    %876 = vmatpush2.msra.mxu0 0.0
    %877 = vmatprep.subr.mxu0 0.0
    %878 = vmatpush2.msra.mxu0 0.0
    %879 = vmatprep.subr.mxu0 0.0
    %880 = vmatpush2.msra.mxu0 0.0
    %881 = vmatprep.subr.mxu0 0.0
    %882 = vmatpush2.msra.mxu0 0.0
    %883 = vmatprep.subr.mxu0 0.0
    %884 = vmatpush2.msra.mxu0 0.0
    %885 = vmatprep.subr.mxu0 0.0
    %886 = vmatpush2.msra.mxu0 0.0
    %887 = vmatprep.subr.mxu0 0.0
    %888 = vmatpush2.msra.mxu0 0.0
    %889 = vmatprep.mubr.f32.mxu0 0.0
    %890 = vmatmul.mubr.f32.gmra.mxu0 %v823
    %v891 = vpop.f32.mrf.mxu0
    %v892 = vadd.f32 0.0, %v891
    %v893 = vpop.f32.mrf.mxu0
    %v894 = vadd.f32 0.0, %v893
    %895 = vdwg.mxu0
    %896 = vmatprep.subr.mxu0 0.0
    %897 = vmatpush1.msra.mxu0 0.0
    %898 = vmatprep.subr.mxu0 0.0
    %899 = vmatpush1.msra.mxu0 0.0
    %900 = vmatprep.subr.mxu0 0.0
    %901 = vmatpush1.msra.mxu0 0.0
    %902 = vmatprep.subr.mxu0 0.0
    %903 = vmatpush1.msra.mxu0 0.0
    %904 = vmatprep.subr.mxu0 0.0
    %905 = vmatpush1.msra.mxu0 0.0
    %906 = vmatprep.subr.mxu0 0.0
    %907 = vmatpush1.msra.mxu0 0.0
    %908 = vmatprep.subr.mxu0 0.0
    %909 = vmatpush1.msra.mxu0 0.0
    %910 = vmatprep.subr.mxu0 0.0
    %911 = vmatpush1.msra.mxu0 0.0
    %912 = vmatprep.subr.mxu0 0.0
    %913 = vmatpush1.msra.mxu0 0.0
    %914 = vmatprep.subr.mxu0 0.0
    %915 = vmatpush1.msra.mxu0 0.0
    %916 = vmatprep.subr.mxu0 0.0
    %917 = vmatpush1.msra.mxu0 0.0
    %918 = vmatprep.subr.mxu0 0.0
    %919 = vmatpush1.msra.mxu0 0.0
    %920 = vmatprep.subr.mxu0 0.0
    %921 = vmatpush1.msra.mxu0 0.0
    %922 = vmatprep.subr.mxu0 0.0
    %923 = vmatpush1.msra.mxu0 0.0
    %924 = vmatprep.subr.mxu0 0.0
    %925 = vmatpush1.msra.mxu0 0.0
    %926 = vmatprep.subr.mxu0 %v803
    %927 = vmatpush1.msra.mxu0 %v802
    %928 = vmatprep.subr.mxu0 0.0
    %929 = vmatpush2.msra.mxu0 0.0
    %930 = vmatprep.subr.mxu0 0.0
    %931 = vmatpush2.msra.mxu0 0.0
    %932 = vmatprep.subr.mxu0 0.0
    %933 = vmatpush2.msra.mxu0 0.0
    %934 = vmatprep.subr.mxu0 0.0
    %935 = vmatpush2.msra.mxu0 0.0
    %936 = vmatprep.subr.mxu0 0.0
    %937 = vmatpush2.msra.mxu0 0.0
    %938 = vmatprep.subr.mxu0 0.0
    %939 = vmatpush2.msra.mxu0 0.0
    %940 = vmatprep.subr.mxu0 0.0
    %941 = vmatpush2.msra.mxu0 0.0
    %942 = vmatprep.subr.mxu0 0.0
    %943 = vmatpush2.msra.mxu0 0.0
    %944 = vmatprep.subr.mxu0 0.0
    %945 = vmatpush2.msra.mxu0 0.0
    %946 = vmatprep.subr.mxu0 0.0
    %947 = vmatpush2.msra.mxu0 0.0
    %948 = vmatprep.subr.mxu0 0.0
    %949 = vmatpush2.msra.mxu0 0.0
    %950 = vmatprep.subr.mxu0 0.0
    %951 = vmatpush2.msra.mxu0 0.0
    %952 = vmatprep.subr.mxu0 0.0
    %953 = vmatpush2.msra.mxu0 0.0
    %954 = vmatprep.subr.mxu0 0.0
    %955 = vmatpush2.msra.mxu0 0.0
    %956 = vmatprep.subr.mxu0 0.0
    %957 = vmatpush2.msra.mxu0 0.0
    %958 = vmatprep.subr.mxu0 0.0
    %959 = vmatpush2.msra.mxu0 0.0
    %960 = vmatprep.mubr.f32.mxu0 0.0
    %961 = vmatmul.mubr.f32.gmra.mxu0 %v823
    %v962 = vpop.f32.mrf.mxu0
    %v963 = vadd.f32 0.0, %v962
    %v964 = vpop.f32.mrf.mxu0
    %v965 = vadd.f32 0.0, %v964
    %966 = vdwg.mxu0
    %v968 = vsel %vm137, %v820, 0
    %970 = vmatprep.subr.mxu0 0.0
    %971 = vmatpush1.msra.mxu0 0.0
    %972 = vmatprep.subr.mxu0 0.0
    %973 = vmatpush1.msra.mxu0 0.0
    %974 = vmatprep.subr.mxu0 0.0
    %975 = vmatpush1.msra.mxu0 0.0
    %976 = vmatprep.subr.mxu0 0.0
    %977 = vmatpush1.msra.mxu0 0.0
    %978 = vmatprep.subr.mxu0 0.0
    %979 = vmatpush1.msra.mxu0 0.0
    %980 = vmatprep.subr.mxu0 0.0
    %981 = vmatpush1.msra.mxu0 0.0
    %982 = vmatprep.subr.mxu0 0.0
    %983 = vmatpush1.msra.mxu0 0.0
    %984 = vmatprep.subr.mxu0 0.0
    %985 = vmatpush1.msra.mxu0 0.0
    %986 = vmatprep.subr.mxu0 0.0
    %987 = vmatpush1.msra.mxu0 0.0
    %988 = vmatprep.subr.mxu0 0.0
    %989 = vmatpush1.msra.mxu0 0.0
    %990 = vmatprep.subr.mxu0 0.0
    %991 = vmatpush1.msra.mxu0 0.0
    %992 = vmatprep.subr.mxu0 0.0
    %993 = vmatpush1.msra.mxu0 0.0
    %994 = vmatprep.subr.mxu0 0.0
    %995 = vmatpush1.msra.mxu0 0.0
    %996 = vmatprep.subr.mxu0 0.0
    %997 = vmatpush1.msra.mxu0 0.0
    %998 = vmatprep.subr.mxu0 0.0
    %999 = vmatpush1.msra.mxu0 0.0
    %1000 = vmatprep.subr.mxu0 %v817
    %1001 = vmatpush1.msra.mxu0 %v816
    %1002 = vmatprep.subr.mxu0 0.0
    %1003 = vmatpush2.msra.mxu0 0.0
    %1004 = vmatprep.subr.mxu0 0.0
    %1005 = vmatpush2.msra.mxu0 0.0
    %1006 = vmatprep.subr.mxu0 0.0
    %1007 = vmatpush2.msra.mxu0 0.0
    %1008 = vmatprep.subr.mxu0 0.0
    %1009 = vmatpush2.msra.mxu0 0.0
    %1010 = vmatprep.subr.mxu0 0.0
    %1011 = vmatpush2.msra.mxu0 0.0
    %1012 = vmatprep.subr.mxu0 0.0
    %1013 = vmatpush2.msra.mxu0 0.0
    %1014 = vmatprep.subr.mxu0 0.0
    %1015 = vmatpush2.msra.mxu0 0.0
    %1016 = vmatprep.subr.mxu0 0.0
    %1017 = vmatpush2.msra.mxu0 0.0
    %1018 = vmatprep.subr.mxu0 0.0
    %1019 = vmatpush2.msra.mxu0 0.0
    %1020 = vmatprep.subr.mxu0 0.0
    %1021 = vmatpush2.msra.mxu0 0.0
    %1022 = vmatprep.subr.mxu0 0.0
    %1023 = vmatpush2.msra.mxu0 0.0
    %1024 = vmatprep.subr.mxu0 0.0
    %1025 = vmatpush2.msra.mxu0 0.0
    %1026 = vmatprep.subr.mxu0 0.0
    %1027 = vmatpush2.msra.mxu0 0.0
    %1028 = vmatprep.subr.mxu0 0.0
    %1029 = vmatpush2.msra.mxu0 0.0
    %1030 = vmatprep.subr.mxu0 0.0
    %1031 = vmatpush2.msra.mxu0 0.0
    %1032 = vmatprep.subr.mxu0 0.0
    %1033 = vmatpush2.msra.mxu0 0.0
    %1034 = vmatprep.mubr.f32.mxu0 0.0
    %1035 = vmatmul.mubr.f32.gmra.mxu0 %v968
    %v1036 = vpop.f32.mrf.mxu0
    %v1037 = vadd.f32 %v892, %v1036
    %v1038 = vpop.f32.mrf.mxu0
    %v1039 = vadd.f32 %v894, %v1038
    %1040 = vdwg.mxu0
    %1041 = vmatprep.subr.mxu0 0.0
    %1042 = vmatpush1.msra.mxu0 0.0
    %1043 = vmatprep.subr.mxu0 0.0
    %1044 = vmatpush1.msra.mxu0 0.0
    %1045 = vmatprep.subr.mxu0 0.0
    %1046 = vmatpush1.msra.mxu0 0.0
    %1047 = vmatprep.subr.mxu0 0.0
    %1048 = vmatpush1.msra.mxu0 0.0
    %1049 = vmatprep.subr.mxu0 0.0
    %1050 = vmatpush1.msra.mxu0 0.0
    %1051 = vmatprep.subr.mxu0 0.0
    %1052 = vmatpush1.msra.mxu0 0.0
    %1053 = vmatprep.subr.mxu0 0.0
    %1054 = vmatpush1.msra.mxu0 0.0
    %1055 = vmatprep.subr.mxu0 0.0
    %1056 = vmatpush1.msra.mxu0 0.0
    %1057 = vmatprep.subr.mxu0 0.0
    %1058 = vmatpush1.msra.mxu0 0.0
    %1059 = vmatprep.subr.mxu0 0.0
    %1060 = vmatpush1.msra.mxu0 0.0
    %1061 = vmatprep.subr.mxu0 0.0
    %1062 = vmatpush1.msra.mxu0 0.0
    %1063 = vmatprep.subr.mxu0 0.0
    %1064 = vmatpush1.msra.mxu0 0.0
    %1065 = vmatprep.subr.mxu0 0.0
    %1066 = vmatpush1.msra.mxu0 0.0
    %1067 = vmatprep.subr.mxu0 0.0
    %1068 = vmatpush1.msra.mxu0 0.0
    %1069 = vmatprep.subr.mxu0 0.0
    %1070 = vmatpush1.msra.mxu0 0.0
    %1071 = vmatprep.subr.mxu0 %v819
    %1072 = vmatpush1.msra.mxu0 %v818
    %1073 = vmatprep.subr.mxu0 0.0
    %1074 = vmatpush2.msra.mxu0 0.0
    %1075 = vmatprep.subr.mxu0 0.0
    %1076 = vmatpush2.msra.mxu0 0.0
    %1077 = vmatprep.subr.mxu0 0.0
    %1078 = vmatpush2.msra.mxu0 0.0
    %1079 = vmatprep.subr.mxu0 0.0
    %1080 = vmatpush2.msra.mxu0 0.0
    %1081 = vmatprep.subr.mxu0 0.0
    %1082 = vmatpush2.msra.mxu0 0.0
    %1083 = vmatprep.subr.mxu0 0.0
    %1084 = vmatpush2.msra.mxu0 0.0
    %1085 = vmatprep.subr.mxu0 0.0
    %1086 = vmatpush2.msra.mxu0 0.0
    %1087 = vmatprep.subr.mxu0 0.0
    %1088 = vmatpush2.msra.mxu0 0.0
    %1089 = vmatprep.subr.mxu0 0.0
    %1090 = vmatpush2.msra.mxu0 0.0
    %1091 = vmatprep.subr.mxu0 0.0
    %1092 = vmatpush2.msra.mxu0 0.0
    %1093 = vmatprep.subr.mxu0 0.0
    %1094 = vmatpush2.msra.mxu0 0.0
    %1095 = vmatprep.subr.mxu0 0.0
    %1096 = vmatpush2.msra.mxu0 0.0
    %1097 = vmatprep.subr.mxu0 0.0
    %1098 = vmatpush2.msra.mxu0 0.0
    %1099 = vmatprep.subr.mxu0 0.0
    %1100 = vmatpush2.msra.mxu0 0.0
    %1101 = vmatprep.subr.mxu0 0.0
    %1102 = vmatpush2.msra.mxu0 0.0
    %1103 = vmatprep.subr.mxu0 0.0
    %1104 = vmatpush2.msra.mxu0 0.0
    %1105 = vmatprep.mubr.f32.mxu0 0.0
    %1106 = vmatmul.mubr.f32.gmra.mxu0 %v968
    %v1107 = vpop.f32.mrf.mxu0
    %v1108 = vadd.f32 %v963, %v1107
    %v1109 = vpop.f32.mrf.mxu0
    %v1110 = vadd.f32 %v965, %v1109
    %1111 = vdwg.mxu0
    %v1112 = vld [vmem:[%s9] sm:$0xff]
    %1114 = vset.pattern.permute.xlu0 0
    %1115 = vperm.xlu0 %1114, %v1112
    %v1116 = vpop.permute.xlu0 %1115
    %v1118 = vadd.f32 %v1037, %v1116
    %v1119 = vadd.f32 %v1039, %v1116
    %v1120 = vadd.f32 %v1108, %v1116
    %v1121 = vadd.f32 %v1110, %v1116
    %v1122 = vmax.f32 %v1118, 0.0
    %v1123 = vmax.f32 %v1119, 0.0
    %v1124 = vmax.f32 %v1120, 0.0
    %v1125 = vmax.f32 %v1121, 0.0
    %v1126 = vadd.f32 %v1122, %v474
    %v1127 = vadd.f32 %v1123, %v475
    %v1128 = vadd.f32 %v1124, %v476
    %v1129 = vadd.f32 %v1125, %v477
    %v1130 = vmax.f32 %v1126, 0.0
    %v1131 = vmax.f32 %v1127, 0.0
    %v1132 = vmax.f32 %v1128, 0.0
    %v1133 = vmax.f32 %v1129, 0.0
    %1134 = vrot.lane.b32.xlu0 %v1130, 2
    %v1135 = vpop.permute.xlu0 %1134
    %1136 = vrot.lane.b32.xlu0 %v1131, 2
    %v1137 = vpop.permute.xlu0 %1136
    %1138 = vrot.lane.b32.xlu0 %v1132, 2
    %v1139 = vpop.permute.xlu0 %1138
    %1140 = vrot.lane.b32.xlu0 %v1133, 2
    %v1141 = vpop.permute.xlu0 %1140
    %vm1142 = vcmp.lt.s32.totalorder %v64, 2
    %v1143 = vsel %vm1142, %v1139, %v1141
    %v1144 = vsel %vm1142, %v1137, %v1139
    %v1145 = vsel %vm1142, %v1135, %v1137
    %v1146 = vsel %vm1142, %v1141, %v1135
    %v1147 = vsel %vm100, 1, 0
    %v1148 = vsel %vm101, 1, 0
    %v1149 = vsel %vm102, 1, 0
    %v1150 = vsel %vm103, 1, 0
    %vm1151 = vcmp.eq.s32.totalorder %v1147, 1
    %vm1152 = vcmp.eq.s32.totalorder %v1148, 1
    %vm1153 = vcmp.eq.s32.totalorder %v1149, 1
    %vm1154 = vcmp.eq.s32.totalorder %v1150, 1
    %v1155 = vsel %vm1151, %v1146, 0.0
    %v1156 = vsel %vm1152, %v1145, 0.0
    %v1157 = vsel %vm1153, %v1144, 0.0
    %v1158 = vsel %vm1154, %v1143, 0.0
    %v1159 = vld [vmem:[%s10] sm:$0xff]
    %v1160 = vld [vmem:[%s11] sm:$0xff]
    %v1162 = vsel %vm137, %v1160, 0
    %1164 = vmatprep.subr.mxu0 0.0
    %1165 = vmatpush1.msra.mxu0 0.0
    %1166 = vmatprep.subr.mxu0 0.0
    %1167 = vmatpush1.msra.mxu0 0.0
    %1168 = vmatprep.subr.mxu0 0.0
    %1169 = vmatpush1.msra.mxu0 0.0
    %1170 = vmatprep.subr.mxu0 0.0
    %1171 = vmatpush1.msra.mxu0 0.0
    %1172 = vmatprep.subr.mxu0 0.0
    %1173 = vmatpush1.msra.mxu0 0.0
    %1174 = vmatprep.subr.mxu0 0.0
    %1175 = vmatpush1.msra.mxu0 0.0
    %1176 = vmatprep.subr.mxu0 0.0
    %1177 = vmatpush1.msra.mxu0 0.0
    %1178 = vmatprep.subr.mxu0 0.0
    %1179 = vmatpush1.msra.mxu0 0.0
    %1180 = vmatprep.subr.mxu0 0.0
    %1181 = vmatpush1.msra.mxu0 0.0
    %1182 = vmatprep.subr.mxu0 0.0
    %1183 = vmatpush1.msra.mxu0 0.0
    %1184 = vmatprep.subr.mxu0 0.0
    %1185 = vmatpush1.msra.mxu0 0.0
    %1186 = vmatprep.subr.mxu0 0.0
    %1187 = vmatpush1.msra.mxu0 0.0
    %1188 = vmatprep.subr.mxu0 0.0
    %1189 = vmatpush1.msra.mxu0 0.0
    %1190 = vmatprep.subr.mxu0 0.0
    %1191 = vmatpush1.msra.mxu0 0.0
    %1192 = vmatprep.subr.mxu0 0.0
    %1193 = vmatpush1.msra.mxu0 0.0
    %1194 = vmatprep.subr.mxu0 %v1131
    %1195 = vmatpush1.msra.mxu0 %v1130
    %1196 = vmatprep.subr.mxu0 0.0
    %1197 = vmatpush2.msra.mxu0 0.0
    %1198 = vmatprep.subr.mxu0 0.0
    %1199 = vmatpush2.msra.mxu0 0.0
    %1200 = vmatprep.subr.mxu0 0.0
    %1201 = vmatpush2.msra.mxu0 0.0
    %1202 = vmatprep.subr.mxu0 0.0
    %1203 = vmatpush2.msra.mxu0 0.0
    %1204 = vmatprep.subr.mxu0 0.0
    %1205 = vmatpush2.msra.mxu0 0.0
    %1206 = vmatprep.subr.mxu0 0.0
    %1207 = vmatpush2.msra.mxu0 0.0
    %1208 = vmatprep.subr.mxu0 0.0
    %1209 = vmatpush2.msra.mxu0 0.0
    %1210 = vmatprep.subr.mxu0 0.0
    %1211 = vmatpush2.msra.mxu0 0.0
    %1212 = vmatprep.subr.mxu0 0.0
    %1213 = vmatpush2.msra.mxu0 0.0
    %1214 = vmatprep.subr.mxu0 0.0
    %1215 = vmatpush2.msra.mxu0 0.0
    %1216 = vmatprep.subr.mxu0 0.0
    %1217 = vmatpush2.msra.mxu0 0.0
    %1218 = vmatprep.subr.mxu0 0.0
    %1219 = vmatpush2.msra.mxu0 0.0
    %1220 = vmatprep.subr.mxu0 0.0
    %1221 = vmatpush2.msra.mxu0 0.0
    %1222 = vmatprep.subr.mxu0 0.0
    %1223 = vmatpush2.msra.mxu0 0.0
    %1224 = vmatprep.subr.mxu0 0.0
    %1225 = vmatpush2.msra.mxu0 0.0
    %1226 = vmatprep.subr.mxu0 0.0
    %1227 = vmatpush2.msra.mxu0 0.0
    %1228 = vmatprep.mubr.f32.mxu0 0.0
    %1229 = vmatmul.mubr.f32.gmra.mxu0 %v1162
    %v1230 = vpop.f32.mrf.mxu0
    %v1231 = vadd.f32 0.0, %v1230
    %v1232 = vpop.f32.mrf.mxu0
    %v1233 = vadd.f32 0.0, %v1232
    %1234 = vdwg.mxu0
    %1235 = vmatprep.subr.mxu0 0.0
    %1236 = vmatpush1.msra.mxu0 0.0
    %1237 = vmatprep.subr.mxu0 0.0
    %1238 = vmatpush1.msra.mxu0 0.0
    %1239 = vmatprep.subr.mxu0 0.0
    %1240 = vmatpush1.msra.mxu0 0.0
    %1241 = vmatprep.subr.mxu0 0.0
    %1242 = vmatpush1.msra.mxu0 0.0
    %1243 = vmatprep.subr.mxu0 0.0
    %1244 = vmatpush1.msra.mxu0 0.0
    %1245 = vmatprep.subr.mxu0 0.0
    %1246 = vmatpush1.msra.mxu0 0.0
    %1247 = vmatprep.subr.mxu0 0.0
    %1248 = vmatpush1.msra.mxu0 0.0
    %1249 = vmatprep.subr.mxu0 0.0
    %1250 = vmatpush1.msra.mxu0 0.0
    %1251 = vmatprep.subr.mxu0 0.0
    %1252 = vmatpush1.msra.mxu0 0.0
    %1253 = vmatprep.subr.mxu0 0.0
    %1254 = vmatpush1.msra.mxu0 0.0
    %1255 = vmatprep.subr.mxu0 0.0
    %1256 = vmatpush1.msra.mxu0 0.0
    %1257 = vmatprep.subr.mxu0 0.0
    %1258 = vmatpush1.msra.mxu0 0.0
    %1259 = vmatprep.subr.mxu0 0.0
    %1260 = vmatpush1.msra.mxu0 0.0
    %1261 = vmatprep.subr.mxu0 0.0
    %1262 = vmatpush1.msra.mxu0 0.0
    %1263 = vmatprep.subr.mxu0 0.0
    %1264 = vmatpush1.msra.mxu0 0.0
    %1265 = vmatprep.subr.mxu0 %v1133
    %1266 = vmatpush1.msra.mxu0 %v1132
    %1267 = vmatprep.subr.mxu0 0.0
    %1268 = vmatpush2.msra.mxu0 0.0
    %1269 = vmatprep.subr.mxu0 0.0
    %1270 = vmatpush2.msra.mxu0 0.0
    %1271 = vmatprep.subr.mxu0 0.0
    %1272 = vmatpush2.msra.mxu0 0.0
    %1273 = vmatprep.subr.mxu0 0.0
    %1274 = vmatpush2.msra.mxu0 0.0
    %1275 = vmatprep.subr.mxu0 0.0
    %1276 = vmatpush2.msra.mxu0 0.0
    %1277 = vmatprep.subr.mxu0 0.0
    %1278 = vmatpush2.msra.mxu0 0.0
    %1279 = vmatprep.subr.mxu0 0.0
    %1280 = vmatpush2.msra.mxu0 0.0
    %1281 = vmatprep.subr.mxu0 0.0
    %1282 = vmatpush2.msra.mxu0 0.0
    %1283 = vmatprep.subr.mxu0 0.0
    %1284 = vmatpush2.msra.mxu0 0.0
    %1285 = vmatprep.subr.mxu0 0.0
    %1286 = vmatpush2.msra.mxu0 0.0
    %1287 = vmatprep.subr.mxu0 0.0
    %1288 = vmatpush2.msra.mxu0 0.0
    %1289 = vmatprep.subr.mxu0 0.0
    %1290 = vmatpush2.msra.mxu0 0.0
    %1291 = vmatprep.subr.mxu0 0.0
    %1292 = vmatpush2.msra.mxu0 0.0
    %1293 = vmatprep.subr.mxu0 0.0
    %1294 = vmatpush2.msra.mxu0 0.0
    %1295 = vmatprep.subr.mxu0 0.0
    %1296 = vmatpush2.msra.mxu0 0.0
    %1297 = vmatprep.subr.mxu0 0.0
    %1298 = vmatpush2.msra.mxu0 0.0
    %1299 = vmatprep.mubr.f32.mxu0 0.0
    %1300 = vmatmul.mubr.f32.gmra.mxu0 %v1162
    %v1301 = vpop.f32.mrf.mxu0
    %v1302 = vadd.f32 0.0, %v1301
    %v1303 = vpop.f32.mrf.mxu0
    %v1304 = vadd.f32 0.0, %v1303
    %1305 = vdwg.mxu0
    %v1307 = vsel %vm137, %v1159, 0
    %1309 = vmatprep.subr.mxu0 0.0
    %1310 = vmatpush1.msra.mxu0 0.0
    %1311 = vmatprep.subr.mxu0 0.0
    %1312 = vmatpush1.msra.mxu0 0.0
    %1313 = vmatprep.subr.mxu0 0.0
    %1314 = vmatpush1.msra.mxu0 0.0
    %1315 = vmatprep.subr.mxu0 0.0
    %1316 = vmatpush1.msra.mxu0 0.0
    %1317 = vmatprep.subr.mxu0 0.0
    %1318 = vmatpush1.msra.mxu0 0.0
    %1319 = vmatprep.subr.mxu0 0.0
    %1320 = vmatpush1.msra.mxu0 0.0
    %1321 = vmatprep.subr.mxu0 0.0
    %1322 = vmatpush1.msra.mxu0 0.0
    %1323 = vmatprep.subr.mxu0 0.0
    %1324 = vmatpush1.msra.mxu0 0.0
    %1325 = vmatprep.subr.mxu0 0.0
    %1326 = vmatpush1.msra.mxu0 0.0
    %1327 = vmatprep.subr.mxu0 0.0
    %1328 = vmatpush1.msra.mxu0 0.0
    %1329 = vmatprep.subr.mxu0 0.0
    %1330 = vmatpush1.msra.mxu0 0.0
    %1331 = vmatprep.subr.mxu0 0.0
    %1332 = vmatpush1.msra.mxu0 0.0
    %1333 = vmatprep.subr.mxu0 0.0
    %1334 = vmatpush1.msra.mxu0 0.0
    %1335 = vmatprep.subr.mxu0 0.0
    %1336 = vmatpush1.msra.mxu0 0.0
    %1337 = vmatprep.subr.mxu0 0.0
    %1338 = vmatpush1.msra.mxu0 0.0
    %1339 = vmatprep.subr.mxu0 %v1156
    %1340 = vmatpush1.msra.mxu0 %v1155
    %1341 = vmatprep.subr.mxu0 0.0
    %1342 = vmatpush2.msra.mxu0 0.0
    %1343 = vmatprep.subr.mxu0 0.0
    %1344 = vmatpush2.msra.mxu0 0.0
    %1345 = vmatprep.subr.mxu0 0.0
    %1346 = vmatpush2.msra.mxu0 0.0
    %1347 = vmatprep.subr.mxu0 0.0
    %1348 = vmatpush2.msra.mxu0 0.0
    %1349 = vmatprep.subr.mxu0 0.0
    %1350 = vmatpush2.msra.mxu0 0.0
    %1351 = vmatprep.subr.mxu0 0.0
    %1352 = vmatpush2.msra.mxu0 0.0
    %1353 = vmatprep.subr.mxu0 0.0
    %1354 = vmatpush2.msra.mxu0 0.0
    %1355 = vmatprep.subr.mxu0 0.0
    %1356 = vmatpush2.msra.mxu0 0.0
    %1357 = vmatprep.subr.mxu0 0.0
    %1358 = vmatpush2.msra.mxu0 0.0
    %1359 = vmatprep.subr.mxu0 0.0
    %1360 = vmatpush2.msra.mxu0 0.0
    %1361 = vmatprep.subr.mxu0 0.0
    %1362 = vmatpush2.msra.mxu0 0.0
    %1363 = vmatprep.subr.mxu0 0.0
    %1364 = vmatpush2.msra.mxu0 0.0
    %1365 = vmatprep.subr.mxu0 0.0
    %1366 = vmatpush2.msra.mxu0 0.0
    %1367 = vmatprep.subr.mxu0 0.0
    %1368 = vmatpush2.msra.mxu0 0.0
    %1369 = vmatprep.subr.mxu0 0.0
    %1370 = vmatpush2.msra.mxu0 0.0
    %1371 = vmatprep.subr.mxu0 0.0
    %1372 = vmatpush2.msra.mxu0 0.0
    %1373 = vmatprep.mubr.f32.mxu0 0.0
    %1374 = vmatmul.mubr.f32.gmra.mxu0 %v1307
    %v1375 = vpop.f32.mrf.mxu0
    %v1376 = vadd.f32 %v1231, %v1375
    %v1377 = vpop.f32.mrf.mxu0
    %v1378 = vadd.f32 %v1233, %v1377
    %1379 = vdwg.mxu0
    %1380 = vmatprep.subr.mxu0 0.0
    %1381 = vmatpush1.msra.mxu0 0.0
    %1382 = vmatprep.subr.mxu0 0.0
    %1383 = vmatpush1.msra.mxu0 0.0
    %1384 = vmatprep.subr.mxu0 0.0
    %1385 = vmatpush1.msra.mxu0 0.0
    %1386 = vmatprep.subr.mxu0 0.0
    %1387 = vmatpush1.msra.mxu0 0.0
    %1388 = vmatprep.subr.mxu0 0.0
    %1389 = vmatpush1.msra.mxu0 0.0
    %1390 = vmatprep.subr.mxu0 0.0
    %1391 = vmatpush1.msra.mxu0 0.0
    %1392 = vmatprep.subr.mxu0 0.0
    %1393 = vmatpush1.msra.mxu0 0.0
    %1394 = vmatprep.subr.mxu0 0.0
    %1395 = vmatpush1.msra.mxu0 0.0
    %1396 = vmatprep.subr.mxu0 0.0
    %1397 = vmatpush1.msra.mxu0 0.0
    %1398 = vmatprep.subr.mxu0 0.0
    %1399 = vmatpush1.msra.mxu0 0.0
    %1400 = vmatprep.subr.mxu0 0.0
    %1401 = vmatpush1.msra.mxu0 0.0
    %1402 = vmatprep.subr.mxu0 0.0
    %1403 = vmatpush1.msra.mxu0 0.0
    %1404 = vmatprep.subr.mxu0 0.0
    %1405 = vmatpush1.msra.mxu0 0.0
    %1406 = vmatprep.subr.mxu0 0.0
    %1407 = vmatpush1.msra.mxu0 0.0
    %1408 = vmatprep.subr.mxu0 0.0
    %1409 = vmatpush1.msra.mxu0 0.0
    %1410 = vmatprep.subr.mxu0 %v1158
    %1411 = vmatpush1.msra.mxu0 %v1157
    %1412 = vmatprep.subr.mxu0 0.0
    %1413 = vmatpush2.msra.mxu0 0.0
    %1414 = vmatprep.subr.mxu0 0.0
    %1415 = vmatpush2.msra.mxu0 0.0
    %1416 = vmatprep.subr.mxu0 0.0
    %1417 = vmatpush2.msra.mxu0 0.0
    %1418 = vmatprep.subr.mxu0 0.0
    %1419 = vmatpush2.msra.mxu0 0.0
    %1420 = vmatprep.subr.mxu0 0.0
    %1421 = vmatpush2.msra.mxu0 0.0
    %1422 = vmatprep.subr.mxu0 0.0
    %1423 = vmatpush2.msra.mxu0 0.0
    %1424 = vmatprep.subr.mxu0 0.0
    %1425 = vmatpush2.msra.mxu0 0.0
    %1426 = vmatprep.subr.mxu0 0.0
    %1427 = vmatpush2.msra.mxu0 0.0
    %1428 = vmatprep.subr.mxu0 0.0
    %1429 = vmatpush2.msra.mxu0 0.0
    %1430 = vmatprep.subr.mxu0 0.0
    %1431 = vmatpush2.msra.mxu0 0.0
    %1432 = vmatprep.subr.mxu0 0.0
    %1433 = vmatpush2.msra.mxu0 0.0
    %1434 = vmatprep.subr.mxu0 0.0
    %1435 = vmatpush2.msra.mxu0 0.0
    %1436 = vmatprep.subr.mxu0 0.0
    %1437 = vmatpush2.msra.mxu0 0.0
    %1438 = vmatprep.subr.mxu0 0.0
    %1439 = vmatpush2.msra.mxu0 0.0
    %1440 = vmatprep.subr.mxu0 0.0
    %1441 = vmatpush2.msra.mxu0 0.0
    %1442 = vmatprep.subr.mxu0 0.0
    %1443 = vmatpush2.msra.mxu0 0.0
    %1444 = vmatprep.mubr.f32.mxu0 0.0
    %1445 = vmatmul.mubr.f32.gmra.mxu0 %v1307
    %v1446 = vpop.f32.mrf.mxu0
    %v1447 = vadd.f32 %v1302, %v1446
    %v1448 = vpop.f32.mrf.mxu0
    %v1449 = vadd.f32 %v1304, %v1448
    %1450 = vdwg.mxu0
    %v1451 = vld [vmem:[%s12] sm:$0xff]
    %1453 = vset.pattern.permute.xlu0 0
    %1454 = vperm.xlu0 %1453, %v1451
    %v1455 = vpop.permute.xlu0 %1454
    %v1457 = vadd.f32 %v1376, %v1455
    %v1458 = vadd.f32 %v1378, %v1455
    %v1459 = vadd.f32 %v1447, %v1455
    %v1460 = vadd.f32 %v1449, %v1455
    %v1461 = vmax.f32 %v1457, 0.0
    %v1462 = vmax.f32 %v1458, 0.0
    %v1463 = vmax.f32 %v1459, 0.0
    %v1464 = vmax.f32 %v1460, 0.0
    %1465 = vrot.lane.b32.xlu0 %v1461, 2
    %v1466 = vpop.permute.xlu0 %1465
    %1467 = vrot.lane.b32.xlu0 %v1462, 2
    %v1468 = vpop.permute.xlu0 %1467
    %1469 = vrot.lane.b32.xlu0 %v1463, 2
    %v1470 = vpop.permute.xlu0 %1469
    %1471 = vrot.lane.b32.xlu0 %v1464, 2
    %v1472 = vpop.permute.xlu0 %1471
    %v1473 = vsel %vm1142, %v1470, %v1472
    %v1474 = vsel %vm1142, %v1468, %v1470
    %v1475 = vsel %vm1142, %v1466, %v1468
    %v1476 = vsel %vm1142, %v1472, %v1466
    %v1477 = vsel %vm1151, %v1476, 0.0
    %v1478 = vsel %vm1152, %v1475, 0.0
    %v1479 = vsel %vm1153, %v1474, 0.0
    %v1480 = vsel %vm1154, %v1473, 0.0
    %v1481 = vld [vmem:[%s13] sm:$0xff]
    %v1482 = vld [vmem:[%s14] sm:$0xff]
    %v1484 = vsel %vm137, %v1482, 0
    %1486 = vmatprep.subr.mxu0 0.0
    %1487 = vmatpush1.msra.mxu0 0.0
    %1488 = vmatprep.subr.mxu0 0.0
    %1489 = vmatpush1.msra.mxu0 0.0
    %1490 = vmatprep.subr.mxu0 0.0
    %1491 = vmatpush1.msra.mxu0 0.0
    %1492 = vmatprep.subr.mxu0 0.0
    %1493 = vmatpush1.msra.mxu0 0.0
    %1494 = vmatprep.subr.mxu0 0.0
    %1495 = vmatpush1.msra.mxu0 0.0
    %1496 = vmatprep.subr.mxu0 0.0
    %1497 = vmatpush1.msra.mxu0 0.0
    %1498 = vmatprep.subr.mxu0 0.0
    %1499 = vmatpush1.msra.mxu0 0.0
    %1500 = vmatprep.subr.mxu0 0.0
    %1501 = vmatpush1.msra.mxu0 0.0
    %1502 = vmatprep.subr.mxu0 0.0
    %1503 = vmatpush1.msra.mxu0 0.0
    %1504 = vmatprep.subr.mxu0 0.0
    %1505 = vmatpush1.msra.mxu0 0.0
    %1506 = vmatprep.subr.mxu0 0.0
    %1507 = vmatpush1.msra.mxu0 0.0
    %1508 = vmatprep.subr.mxu0 0.0
    %1509 = vmatpush1.msra.mxu0 0.0
    %1510 = vmatprep.subr.mxu0 0.0
    %1511 = vmatpush1.msra.mxu0 0.0
    %1512 = vmatprep.subr.mxu0 0.0
    %1513 = vmatpush1.msra.mxu0 0.0
    %1514 = vmatprep.subr.mxu0 0.0
    %1515 = vmatpush1.msra.mxu0 0.0
    %1516 = vmatprep.subr.mxu0 %v1462
    %1517 = vmatpush1.msra.mxu0 %v1461
    %1518 = vmatprep.subr.mxu0 0.0
    %1519 = vmatpush2.msra.mxu0 0.0
    %1520 = vmatprep.subr.mxu0 0.0
    %1521 = vmatpush2.msra.mxu0 0.0
    %1522 = vmatprep.subr.mxu0 0.0
    %1523 = vmatpush2.msra.mxu0 0.0
    %1524 = vmatprep.subr.mxu0 0.0
    %1525 = vmatpush2.msra.mxu0 0.0
    %1526 = vmatprep.subr.mxu0 0.0
    %1527 = vmatpush2.msra.mxu0 0.0
    %1528 = vmatprep.subr.mxu0 0.0
    %1529 = vmatpush2.msra.mxu0 0.0
    %1530 = vmatprep.subr.mxu0 0.0
    %1531 = vmatpush2.msra.mxu0 0.0
    %1532 = vmatprep.subr.mxu0 0.0
    %1533 = vmatpush2.msra.mxu0 0.0
    %1534 = vmatprep.subr.mxu0 0.0
    %1535 = vmatpush2.msra.mxu0 0.0
    %1536 = vmatprep.subr.mxu0 0.0
    %1537 = vmatpush2.msra.mxu0 0.0
    %1538 = vmatprep.subr.mxu0 0.0
    %1539 = vmatpush2.msra.mxu0 0.0
    %1540 = vmatprep.subr.mxu0 0.0
    %1541 = vmatpush2.msra.mxu0 0.0
    %1542 = vmatprep.subr.mxu0 0.0
    %1543 = vmatpush2.msra.mxu0 0.0
    %1544 = vmatprep.subr.mxu0 0.0
    %1545 = vmatpush2.msra.mxu0 0.0
    %1546 = vmatprep.subr.mxu0 0.0
    %1547 = vmatpush2.msra.mxu0 0.0
    %1548 = vmatprep.subr.mxu0 0.0
    %1549 = vmatpush2.msra.mxu0 0.0
    %1550 = vmatprep.mubr.f32.mxu0 0.0
    %1551 = vmatmul.mubr.f32.gmra.mxu0 %v1484
    %v1552 = vpop.f32.mrf.mxu0
    %v1553 = vadd.f32 0.0, %v1552
    %v1554 = vpop.f32.mrf.mxu0
    %v1555 = vadd.f32 0.0, %v1554
    %1556 = vdwg.mxu0
    %1557 = vmatprep.subr.mxu0 0.0
    %1558 = vmatpush1.msra.mxu0 0.0
    %1559 = vmatprep.subr.mxu0 0.0
    %1560 = vmatpush1.msra.mxu0 0.0
    %1561 = vmatprep.subr.mxu0 0.0
    %1562 = vmatpush1.msra.mxu0 0.0
    %1563 = vmatprep.subr.mxu0 0.0
    %1564 = vmatpush1.msra.mxu0 0.0
    %1565 = vmatprep.subr.mxu0 0.0
    %1566 = vmatpush1.msra.mxu0 0.0
    %1567 = vmatprep.subr.mxu0 0.0
    %1568 = vmatpush1.msra.mxu0 0.0
    %1569 = vmatprep.subr.mxu0 0.0
    %1570 = vmatpush1.msra.mxu0 0.0
    %1571 = vmatprep.subr.mxu0 0.0
    %1572 = vmatpush1.msra.mxu0 0.0
    %1573 = vmatprep.subr.mxu0 0.0
    %1574 = vmatpush1.msra.mxu0 0.0
    %1575 = vmatprep.subr.mxu0 0.0
    %1576 = vmatpush1.msra.mxu0 0.0
    %1577 = vmatprep.subr.mxu0 0.0
    %1578 = vmatpush1.msra.mxu0 0.0
    %1579 = vmatprep.subr.mxu0 0.0
    %1580 = vmatpush1.msra.mxu0 0.0
    %1581 = vmatprep.subr.mxu0 0.0
    %1582 = vmatpush1.msra.mxu0 0.0
    %1583 = vmatprep.subr.mxu0 0.0
    %1584 = vmatpush1.msra.mxu0 0.0
    %1585 = vmatprep.subr.mxu0 0.0
    %1586 = vmatpush1.msra.mxu0 0.0
    %1587 = vmatprep.subr.mxu0 %v1464
    %1588 = vmatpush1.msra.mxu0 %v1463
    %1589 = vmatprep.subr.mxu0 0.0
    %1590 = vmatpush2.msra.mxu0 0.0
    %1591 = vmatprep.subr.mxu0 0.0
    %1592 = vmatpush2.msra.mxu0 0.0
    %1593 = vmatprep.subr.mxu0 0.0
    %1594 = vmatpush2.msra.mxu0 0.0
    %1595 = vmatprep.subr.mxu0 0.0
    %1596 = vmatpush2.msra.mxu0 0.0
    %1597 = vmatprep.subr.mxu0 0.0
    %1598 = vmatpush2.msra.mxu0 0.0
    %1599 = vmatprep.subr.mxu0 0.0
    %1600 = vmatpush2.msra.mxu0 0.0
    %1601 = vmatprep.subr.mxu0 0.0
    %1602 = vmatpush2.msra.mxu0 0.0
    %1603 = vmatprep.subr.mxu0 0.0
    %1604 = vmatpush2.msra.mxu0 0.0
    %1605 = vmatprep.subr.mxu0 0.0
    %1606 = vmatpush2.msra.mxu0 0.0
    %1607 = vmatprep.subr.mxu0 0.0
    %1608 = vmatpush2.msra.mxu0 0.0
    %1609 = vmatprep.subr.mxu0 0.0
    %1610 = vmatpush2.msra.mxu0 0.0
    %1611 = vmatprep.subr.mxu0 0.0
    %1612 = vmatpush2.msra.mxu0 0.0
    %1613 = vmatprep.subr.mxu0 0.0
    %1614 = vmatpush2.msra.mxu0 0.0
    %1615 = vmatprep.subr.mxu0 0.0
    %1616 = vmatpush2.msra.mxu0 0.0
    %1617 = vmatprep.subr.mxu0 0.0
    %1618 = vmatpush2.msra.mxu0 0.0
    %1619 = vmatprep.subr.mxu0 0.0
    %1620 = vmatpush2.msra.mxu0 0.0
    %1621 = vmatprep.mubr.f32.mxu0 0.0
    %1622 = vmatmul.mubr.f32.gmra.mxu0 %v1484
    %v1623 = vpop.f32.mrf.mxu0
    %v1624 = vadd.f32 0.0, %v1623
    %v1625 = vpop.f32.mrf.mxu0
    %v1626 = vadd.f32 0.0, %v1625
    %1627 = vdwg.mxu0
    %v1629 = vsel %vm137, %v1481, 0
    %1631 = vmatprep.subr.mxu0 0.0
    %1632 = vmatpush1.msra.mxu0 0.0
    %1633 = vmatprep.subr.mxu0 0.0
    %1634 = vmatpush1.msra.mxu0 0.0
    %1635 = vmatprep.subr.mxu0 0.0
    %1636 = vmatpush1.msra.mxu0 0.0
    %1637 = vmatprep.subr.mxu0 0.0
    %1638 = vmatpush1.msra.mxu0 0.0
    %1639 = vmatprep.subr.mxu0 0.0
    %1640 = vmatpush1.msra.mxu0 0.0
    %1641 = vmatprep.subr.mxu0 0.0
    %1642 = vmatpush1.msra.mxu0 0.0
    %1643 = vmatprep.subr.mxu0 0.0
    %1644 = vmatpush1.msra.mxu0 0.0
    %1645 = vmatprep.subr.mxu0 0.0
    %1646 = vmatpush1.msra.mxu0 0.0
    %1647 = vmatprep.subr.mxu0 0.0
    %1648 = vmatpush1.msra.mxu0 0.0
    %1649 = vmatprep.subr.mxu0 0.0
    %1650 = vmatpush1.msra.mxu0 0.0
    %1651 = vmatprep.subr.mxu0 0.0
    %1652 = vmatpush1.msra.mxu0 0.0
    %1653 = vmatprep.subr.mxu0 0.0
    %1654 = vmatpush1.msra.mxu0 0.0
    %1655 = vmatprep.subr.mxu0 0.0
    %1656 = vmatpush1.msra.mxu0 0.0
    %1657 = vmatprep.subr.mxu0 0.0
    %1658 = vmatpush1.msra.mxu0 0.0
    %1659 = vmatprep.subr.mxu0 0.0
    %1660 = vmatpush1.msra.mxu0 0.0
    %1661 = vmatprep.subr.mxu0 %v1478
    %1662 = vmatpush1.msra.mxu0 %v1477
    %1663 = vmatprep.subr.mxu0 0.0
    %1664 = vmatpush2.msra.mxu0 0.0
    %1665 = vmatprep.subr.mxu0 0.0
    %1666 = vmatpush2.msra.mxu0 0.0
    %1667 = vmatprep.subr.mxu0 0.0
    %1668 = vmatpush2.msra.mxu0 0.0
    %1669 = vmatprep.subr.mxu0 0.0
    %1670 = vmatpush2.msra.mxu0 0.0
    %1671 = vmatprep.subr.mxu0 0.0
    %1672 = vmatpush2.msra.mxu0 0.0
    %1673 = vmatprep.subr.mxu0 0.0
    %1674 = vmatpush2.msra.mxu0 0.0
    %1675 = vmatprep.subr.mxu0 0.0
    %1676 = vmatpush2.msra.mxu0 0.0
    %1677 = vmatprep.subr.mxu0 0.0
    %1678 = vmatpush2.msra.mxu0 0.0
    %1679 = vmatprep.subr.mxu0 0.0
    %1680 = vmatpush2.msra.mxu0 0.0
    %1681 = vmatprep.subr.mxu0 0.0
    %1682 = vmatpush2.msra.mxu0 0.0
    %1683 = vmatprep.subr.mxu0 0.0
    %1684 = vmatpush2.msra.mxu0 0.0
    %1685 = vmatprep.subr.mxu0 0.0
    %1686 = vmatpush2.msra.mxu0 0.0
    %1687 = vmatprep.subr.mxu0 0.0
    %1688 = vmatpush2.msra.mxu0 0.0
    %1689 = vmatprep.subr.mxu0 0.0
    %1690 = vmatpush2.msra.mxu0 0.0
    %1691 = vmatprep.subr.mxu0 0.0
    %1692 = vmatpush2.msra.mxu0 0.0
    %1693 = vmatprep.subr.mxu0 0.0
    %1694 = vmatpush2.msra.mxu0 0.0
    %1695 = vmatprep.mubr.f32.mxu0 0.0
    %1696 = vmatmul.mubr.f32.gmra.mxu0 %v1629
    %v1697 = vpop.f32.mrf.mxu0
    %v1698 = vadd.f32 %v1553, %v1697
    %v1699 = vpop.f32.mrf.mxu0
    %v1700 = vadd.f32 %v1555, %v1699
    %1701 = vdwg.mxu0
    %1702 = vmatprep.subr.mxu0 0.0
    %1703 = vmatpush1.msra.mxu0 0.0
    %1704 = vmatprep.subr.mxu0 0.0
    %1705 = vmatpush1.msra.mxu0 0.0
    %1706 = vmatprep.subr.mxu0 0.0
    %1707 = vmatpush1.msra.mxu0 0.0
    %1708 = vmatprep.subr.mxu0 0.0
    %1709 = vmatpush1.msra.mxu0 0.0
    %1710 = vmatprep.subr.mxu0 0.0
    %1711 = vmatpush1.msra.mxu0 0.0
    %1712 = vmatprep.subr.mxu0 0.0
    %1713 = vmatpush1.msra.mxu0 0.0
    %1714 = vmatprep.subr.mxu0 0.0
    %1715 = vmatpush1.msra.mxu0 0.0
    %1716 = vmatprep.subr.mxu0 0.0
    %1717 = vmatpush1.msra.mxu0 0.0
    %1718 = vmatprep.subr.mxu0 0.0
    %1719 = vmatpush1.msra.mxu0 0.0
    %1720 = vmatprep.subr.mxu0 0.0
    %1721 = vmatpush1.msra.mxu0 0.0
    %1722 = vmatprep.subr.mxu0 0.0
    %1723 = vmatpush1.msra.mxu0 0.0
    %1724 = vmatprep.subr.mxu0 0.0
    %1725 = vmatpush1.msra.mxu0 0.0
    %1726 = vmatprep.subr.mxu0 0.0
    %1727 = vmatpush1.msra.mxu0 0.0
    %1728 = vmatprep.subr.mxu0 0.0
    %1729 = vmatpush1.msra.mxu0 0.0
    %1730 = vmatprep.subr.mxu0 0.0
    %1731 = vmatpush1.msra.mxu0 0.0
    %1732 = vmatprep.subr.mxu0 %v1480
    %1733 = vmatpush1.msra.mxu0 %v1479
    %1734 = vmatprep.subr.mxu0 0.0
    %1735 = vmatpush2.msra.mxu0 0.0
    %1736 = vmatprep.subr.mxu0 0.0
    %1737 = vmatpush2.msra.mxu0 0.0
    %1738 = vmatprep.subr.mxu0 0.0
    %1739 = vmatpush2.msra.mxu0 0.0
    %1740 = vmatprep.subr.mxu0 0.0
    %1741 = vmatpush2.msra.mxu0 0.0
    %1742 = vmatprep.subr.mxu0 0.0
    %1743 = vmatpush2.msra.mxu0 0.0
    %1744 = vmatprep.subr.mxu0 0.0
    %1745 = vmatpush2.msra.mxu0 0.0
    %1746 = vmatprep.subr.mxu0 0.0
    %1747 = vmatpush2.msra.mxu0 0.0
    %1748 = vmatprep.subr.mxu0 0.0
    %1749 = vmatpush2.msra.mxu0 0.0
    %1750 = vmatprep.subr.mxu0 0.0
    %1751 = vmatpush2.msra.mxu0 0.0
    %1752 = vmatprep.subr.mxu0 0.0
    %1753 = vmatpush2.msra.mxu0 0.0
    %1754 = vmatprep.subr.mxu0 0.0
    %1755 = vmatpush2.msra.mxu0 0.0
    %1756 = vmatprep.subr.mxu0 0.0
    %1757 = vmatpush2.msra.mxu0 0.0
    %1758 = vmatprep.subr.mxu0 0.0
    %1759 = vmatpush2.msra.mxu0 0.0
    %1760 = vmatprep.subr.mxu0 0.0
    %1761 = vmatpush2.msra.mxu0 0.0
    %1762 = vmatprep.subr.mxu0 0.0
    %1763 = vmatpush2.msra.mxu0 0.0
    %1764 = vmatprep.subr.mxu0 0.0
    %1765 = vmatpush2.msra.mxu0 0.0
    %1766 = vmatprep.mubr.f32.mxu0 0.0
    %1767 = vmatmul.mubr.f32.gmra.mxu0 %v1629
    %v1768 = vpop.f32.mrf.mxu0
    %v1769 = vadd.f32 %v1624, %v1768
    %v1770 = vpop.f32.mrf.mxu0
    %v1771 = vadd.f32 %v1626, %v1770
    %1772 = vdwg.mxu0
    %v1773 = vld [vmem:[%s15] sm:$0xff]
    %1775 = vset.pattern.permute.xlu0 0
    %1776 = vperm.xlu0 %1775, %v1773
    %v1777 = vpop.permute.xlu0 %1776
    %v1779 = vadd.f32 %v1698, %v1777
    %v1780 = vadd.f32 %v1700, %v1777
    %v1781 = vadd.f32 %v1769, %v1777
    %v1782 = vadd.f32 %v1771, %v1777
    %v1783 = vmax.f32 %v1779, 0.0
    %v1784 = vmax.f32 %v1780, 0.0
    %v1785 = vmax.f32 %v1781, 0.0
    %v1786 = vmax.f32 %v1782, 0.0
    %1787 = vrot.lane.b32.xlu0 %v1783, 2
    %v1788 = vpop.permute.xlu0 %1787
    %1789 = vrot.lane.b32.xlu0 %v1784, 2
    %v1790 = vpop.permute.xlu0 %1789
    %1791 = vrot.lane.b32.xlu0 %v1785, 2
    %v1792 = vpop.permute.xlu0 %1791
    %1793 = vrot.lane.b32.xlu0 %v1786, 2
    %v1794 = vpop.permute.xlu0 %1793
    %v1795 = vsel %vm1142, %v1792, %v1794
    %v1796 = vsel %vm1142, %v1790, %v1792
    %v1797 = vsel %vm1142, %v1788, %v1790
    %v1798 = vsel %vm1142, %v1794, %v1788
    %v1799 = vsel %vm1151, %v1798, 0.0
    %v1800 = vsel %vm1152, %v1797, 0.0
    %v1801 = vsel %vm1153, %v1796, 0.0
    %v1802 = vsel %vm1154, %v1795, 0.0
    %v1803 = vld [vmem:[%s16] sm:$0xff]
    %v1804 = vld [vmem:[%s17] sm:$0xff]
    %v1806 = vsel %vm137, %v1804, 0
    %1808 = vmatprep.subr.mxu0 0.0
    %1809 = vmatpush1.msra.mxu0 0.0
    %1810 = vmatprep.subr.mxu0 0.0
    %1811 = vmatpush1.msra.mxu0 0.0
    %1812 = vmatprep.subr.mxu0 0.0
    %1813 = vmatpush1.msra.mxu0 0.0
    %1814 = vmatprep.subr.mxu0 0.0
    %1815 = vmatpush1.msra.mxu0 0.0
    %1816 = vmatprep.subr.mxu0 0.0
    %1817 = vmatpush1.msra.mxu0 0.0
    %1818 = vmatprep.subr.mxu0 0.0
    %1819 = vmatpush1.msra.mxu0 0.0
    %1820 = vmatprep.subr.mxu0 0.0
    %1821 = vmatpush1.msra.mxu0 0.0
    %1822 = vmatprep.subr.mxu0 0.0
    %1823 = vmatpush1.msra.mxu0 0.0
    %1824 = vmatprep.subr.mxu0 0.0
    %1825 = vmatpush1.msra.mxu0 0.0
    %1826 = vmatprep.subr.mxu0 0.0
    %1827 = vmatpush1.msra.mxu0 0.0
    %1828 = vmatprep.subr.mxu0 0.0
    %1829 = vmatpush1.msra.mxu0 0.0
    %1830 = vmatprep.subr.mxu0 0.0
    %1831 = vmatpush1.msra.mxu0 0.0
    %1832 = vmatprep.subr.mxu0 0.0
    %1833 = vmatpush1.msra.mxu0 0.0
    %1834 = vmatprep.subr.mxu0 0.0
    %1835 = vmatpush1.msra.mxu0 0.0
    %1836 = vmatprep.subr.mxu0 0.0
    %1837 = vmatpush1.msra.mxu0 0.0
    %1838 = vmatprep.subr.mxu0 %v1784
    %1839 = vmatpush1.msra.mxu0 %v1783
    %1840 = vmatprep.subr.mxu0 0.0
    %1841 = vmatpush2.msra.mxu0 0.0
    %1842 = vmatprep.subr.mxu0 0.0
    %1843 = vmatpush2.msra.mxu0 0.0
    %1844 = vmatprep.subr.mxu0 0.0
    %1845 = vmatpush2.msra.mxu0 0.0
    %1846 = vmatprep.subr.mxu0 0.0
    %1847 = vmatpush2.msra.mxu0 0.0
    %1848 = vmatprep.subr.mxu0 0.0
    %1849 = vmatpush2.msra.mxu0 0.0
    %1850 = vmatprep.subr.mxu0 0.0
    %1851 = vmatpush2.msra.mxu0 0.0
    %1852 = vmatprep.subr.mxu0 0.0
    %1853 = vmatpush2.msra.mxu0 0.0
    %1854 = vmatprep.subr.mxu0 0.0
    %1855 = vmatpush2.msra.mxu0 0.0
    %1856 = vmatprep.subr.mxu0 0.0
    %1857 = vmatpush2.msra.mxu0 0.0
    %1858 = vmatprep.subr.mxu0 0.0
    %1859 = vmatpush2.msra.mxu0 0.0
    %1860 = vmatprep.subr.mxu0 0.0
    %1861 = vmatpush2.msra.mxu0 0.0
    %1862 = vmatprep.subr.mxu0 0.0
    %1863 = vmatpush2.msra.mxu0 0.0
    %1864 = vmatprep.subr.mxu0 0.0
    %1865 = vmatpush2.msra.mxu0 0.0
    %1866 = vmatprep.subr.mxu0 0.0
    %1867 = vmatpush2.msra.mxu0 0.0
    %1868 = vmatprep.subr.mxu0 0.0
    %1869 = vmatpush2.msra.mxu0 0.0
    %1870 = vmatprep.subr.mxu0 0.0
    %1871 = vmatpush2.msra.mxu0 0.0
    %1872 = vmatprep.mubr.f32.mxu0 0.0
    %1873 = vmatmul.mubr.f32.gmra.mxu0 %v1806
    %v1874 = vpop.f32.mrf.mxu0
    %v1875 = vadd.f32 0.0, %v1874
    %v1876 = vpop.f32.mrf.mxu0
    %v1877 = vadd.f32 0.0, %v1876
    %1878 = vdwg.mxu0
    %1879 = vmatprep.subr.mxu0 0.0
    %1880 = vmatpush1.msra.mxu0 0.0
    %1881 = vmatprep.subr.mxu0 0.0
    %1882 = vmatpush1.msra.mxu0 0.0
    %1883 = vmatprep.subr.mxu0 0.0
    %1884 = vmatpush1.msra.mxu0 0.0
    %1885 = vmatprep.subr.mxu0 0.0
    %1886 = vmatpush1.msra.mxu0 0.0
    %1887 = vmatprep.subr.mxu0 0.0
    %1888 = vmatpush1.msra.mxu0 0.0
    %1889 = vmatprep.subr.mxu0 0.0
    %1890 = vmatpush1.msra.mxu0 0.0
    %1891 = vmatprep.subr.mxu0 0.0
    %1892 = vmatpush1.msra.mxu0 0.0
    %1893 = vmatprep.subr.mxu0 0.0
    %1894 = vmatpush1.msra.mxu0 0.0
    %1895 = vmatprep.subr.mxu0 0.0
    %1896 = vmatpush1.msra.mxu0 0.0
    %1897 = vmatprep.subr.mxu0 0.0
    %1898 = vmatpush1.msra.mxu0 0.0
    %1899 = vmatprep.subr.mxu0 0.0
    %1900 = vmatpush1.msra.mxu0 0.0
    %1901 = vmatprep.subr.mxu0 0.0
    %1902 = vmatpush1.msra.mxu0 0.0
    %1903 = vmatprep.subr.mxu0 0.0
    %1904 = vmatpush1.msra.mxu0 0.0
    %1905 = vmatprep.subr.mxu0 0.0
    %1906 = vmatpush1.msra.mxu0 0.0
    %1907 = vmatprep.subr.mxu0 0.0
    %1908 = vmatpush1.msra.mxu0 0.0
    %1909 = vmatprep.subr.mxu0 %v1786
    %1910 = vmatpush1.msra.mxu0 %v1785
    %1911 = vmatprep.subr.mxu0 0.0
    %1912 = vmatpush2.msra.mxu0 0.0
    %1913 = vmatprep.subr.mxu0 0.0
    %1914 = vmatpush2.msra.mxu0 0.0
    %1915 = vmatprep.subr.mxu0 0.0
    %1916 = vmatpush2.msra.mxu0 0.0
    %1917 = vmatprep.subr.mxu0 0.0
    %1918 = vmatpush2.msra.mxu0 0.0
    %1919 = vmatprep.subr.mxu0 0.0
    %1920 = vmatpush2.msra.mxu0 0.0
    %1921 = vmatprep.subr.mxu0 0.0
    %1922 = vmatpush2.msra.mxu0 0.0
    %1923 = vmatprep.subr.mxu0 0.0
    %1924 = vmatpush2.msra.mxu0 0.0
    %1925 = vmatprep.subr.mxu0 0.0
    %1926 = vmatpush2.msra.mxu0 0.0
    %1927 = vmatprep.subr.mxu0 0.0
    %1928 = vmatpush2.msra.mxu0 0.0
    %1929 = vmatprep.subr.mxu0 0.0
    %1930 = vmatpush2.msra.mxu0 0.0
    %1931 = vmatprep.subr.mxu0 0.0
    %1932 = vmatpush2.msra.mxu0 0.0
    %1933 = vmatprep.subr.mxu0 0.0
    %1934 = vmatpush2.msra.mxu0 0.0
    %1935 = vmatprep.subr.mxu0 0.0
    %1936 = vmatpush2.msra.mxu0 0.0
    %1937 = vmatprep.subr.mxu0 0.0
    %1938 = vmatpush2.msra.mxu0 0.0
    %1939 = vmatprep.subr.mxu0 0.0
    %1940 = vmatpush2.msra.mxu0 0.0
    %1941 = vmatprep.subr.mxu0 0.0
    %1942 = vmatpush2.msra.mxu0 0.0
    %1943 = vmatprep.mubr.f32.mxu0 0.0
    %1944 = vmatmul.mubr.f32.gmra.mxu0 %v1806
    %v1945 = vpop.f32.mrf.mxu0
    %v1946 = vadd.f32 0.0, %v1945
    %v1947 = vpop.f32.mrf.mxu0
    %v1948 = vadd.f32 0.0, %v1947
    %1949 = vdwg.mxu0
    %v1951 = vsel %vm137, %v1803, 0
    %1953 = vmatprep.subr.mxu0 0.0
    %1954 = vmatpush1.msra.mxu0 0.0
    %1955 = vmatprep.subr.mxu0 0.0
    %1956 = vmatpush1.msra.mxu0 0.0
    %1957 = vmatprep.subr.mxu0 0.0
    %1958 = vmatpush1.msra.mxu0 0.0
    %1959 = vmatprep.subr.mxu0 0.0
    %1960 = vmatpush1.msra.mxu0 0.0
    %1961 = vmatprep.subr.mxu0 0.0
    %1962 = vmatpush1.msra.mxu0 0.0
    %1963 = vmatprep.subr.mxu0 0.0
    %1964 = vmatpush1.msra.mxu0 0.0
    %1965 = vmatprep.subr.mxu0 0.0
    %1966 = vmatpush1.msra.mxu0 0.0
    %1967 = vmatprep.subr.mxu0 0.0
    %1968 = vmatpush1.msra.mxu0 0.0
    %1969 = vmatprep.subr.mxu0 0.0
    %1970 = vmatpush1.msra.mxu0 0.0
    %1971 = vmatprep.subr.mxu0 0.0
    %1972 = vmatpush1.msra.mxu0 0.0
    %1973 = vmatprep.subr.mxu0 0.0
    %1974 = vmatpush1.msra.mxu0 0.0
    %1975 = vmatprep.subr.mxu0 0.0
    %1976 = vmatpush1.msra.mxu0 0.0
    %1977 = vmatprep.subr.mxu0 0.0
    %1978 = vmatpush1.msra.mxu0 0.0
    %1979 = vmatprep.subr.mxu0 0.0
    %1980 = vmatpush1.msra.mxu0 0.0
    %1981 = vmatprep.subr.mxu0 0.0
    %1982 = vmatpush1.msra.mxu0 0.0
    %1983 = vmatprep.subr.mxu0 %v1800
    %1984 = vmatpush1.msra.mxu0 %v1799
    %1985 = vmatprep.subr.mxu0 0.0
    %1986 = vmatpush2.msra.mxu0 0.0
    %1987 = vmatprep.subr.mxu0 0.0
    %1988 = vmatpush2.msra.mxu0 0.0
    %1989 = vmatprep.subr.mxu0 0.0
    %1990 = vmatpush2.msra.mxu0 0.0
    %1991 = vmatprep.subr.mxu0 0.0
    %1992 = vmatpush2.msra.mxu0 0.0
    %1993 = vmatprep.subr.mxu0 0.0
    %1994 = vmatpush2.msra.mxu0 0.0
    %1995 = vmatprep.subr.mxu0 0.0
    %1996 = vmatpush2.msra.mxu0 0.0
    %1997 = vmatprep.subr.mxu0 0.0
    %1998 = vmatpush2.msra.mxu0 0.0
    %1999 = vmatprep.subr.mxu0 0.0
    %2000 = vmatpush2.msra.mxu0 0.0
    %2001 = vmatprep.subr.mxu0 0.0
    %2002 = vmatpush2.msra.mxu0 0.0
    %2003 = vmatprep.subr.mxu0 0.0
    %2004 = vmatpush2.msra.mxu0 0.0
    %2005 = vmatprep.subr.mxu0 0.0
    %2006 = vmatpush2.msra.mxu0 0.0
    %2007 = vmatprep.subr.mxu0 0.0
    %2008 = vmatpush2.msra.mxu0 0.0
    %2009 = vmatprep.subr.mxu0 0.0
    %2010 = vmatpush2.msra.mxu0 0.0
    %2011 = vmatprep.subr.mxu0 0.0
    %2012 = vmatpush2.msra.mxu0 0.0
    %2013 = vmatprep.subr.mxu0 0.0
    %2014 = vmatpush2.msra.mxu0 0.0
    %2015 = vmatprep.subr.mxu0 0.0
    %2016 = vmatpush2.msra.mxu0 0.0
    %2017 = vmatprep.mubr.f32.mxu0 0.0
    %2018 = vmatmul.mubr.f32.gmra.mxu0 %v1951
    %v2019 = vpop.f32.mrf.mxu0
    %v2020 = vadd.f32 %v1875, %v2019
    %v2021 = vpop.f32.mrf.mxu0
    %v2022 = vadd.f32 %v1877, %v2021
    %2023 = vdwg.mxu0
    %2024 = vmatprep.subr.mxu0 0.0
    %2025 = vmatpush1.msra.mxu0 0.0
    %2026 = vmatprep.subr.mxu0 0.0
    %2027 = vmatpush1.msra.mxu0 0.0
    %2028 = vmatprep.subr.mxu0 0.0
    %2029 = vmatpush1.msra.mxu0 0.0
    %2030 = vmatprep.subr.mxu0 0.0
    %2031 = vmatpush1.msra.mxu0 0.0
    %2032 = vmatprep.subr.mxu0 0.0
    %2033 = vmatpush1.msra.mxu0 0.0
    %2034 = vmatprep.subr.mxu0 0.0
    %2035 = vmatpush1.msra.mxu0 0.0
    %2036 = vmatprep.subr.mxu0 0.0
    %2037 = vmatpush1.msra.mxu0 0.0
    %2038 = vmatprep.subr.mxu0 0.0
    %2039 = vmatpush1.msra.mxu0 0.0
    %2040 = vmatprep.subr.mxu0 0.0
    %2041 = vmatpush1.msra.mxu0 0.0
    %2042 = vmatprep.subr.mxu0 0.0
    %2043 = vmatpush1.msra.mxu0 0.0
    %2044 = vmatprep.subr.mxu0 0.0
    %2045 = vmatpush1.msra.mxu0 0.0
    %2046 = vmatprep.subr.mxu0 0.0
    %2047 = vmatpush1.msra.mxu0 0.0
    %2048 = vmatprep.subr.mxu0 0.0
    %2049 = vmatpush1.msra.mxu0 0.0
    %2050 = vmatprep.subr.mxu0 0.0
    %2051 = vmatpush1.msra.mxu0 0.0
    %2052 = vmatprep.subr.mxu0 0.0
    %2053 = vmatpush1.msra.mxu0 0.0
    %2054 = vmatprep.subr.mxu0 %v1802
    %2055 = vmatpush1.msra.mxu0 %v1801
    %2056 = vmatprep.subr.mxu0 0.0
    %2057 = vmatpush2.msra.mxu0 0.0
    %2058 = vmatprep.subr.mxu0 0.0
    %2059 = vmatpush2.msra.mxu0 0.0
    %2060 = vmatprep.subr.mxu0 0.0
    %2061 = vmatpush2.msra.mxu0 0.0
    %2062 = vmatprep.subr.mxu0 0.0
    %2063 = vmatpush2.msra.mxu0 0.0
    %2064 = vmatprep.subr.mxu0 0.0
    %2065 = vmatpush2.msra.mxu0 0.0
    %2066 = vmatprep.subr.mxu0 0.0
    %2067 = vmatpush2.msra.mxu0 0.0
    %2068 = vmatprep.subr.mxu0 0.0
    %2069 = vmatpush2.msra.mxu0 0.0
    %2070 = vmatprep.subr.mxu0 0.0
    %2071 = vmatpush2.msra.mxu0 0.0
    %2072 = vmatprep.subr.mxu0 0.0
    %2073 = vmatpush2.msra.mxu0 0.0
    %2074 = vmatprep.subr.mxu0 0.0
    %2075 = vmatpush2.msra.mxu0 0.0
    %2076 = vmatprep.subr.mxu0 0.0
    %2077 = vmatpush2.msra.mxu0 0.0
    %2078 = vmatprep.subr.mxu0 0.0
    %2079 = vmatpush2.msra.mxu0 0.0
    %2080 = vmatprep.subr.mxu0 0.0
    %2081 = vmatpush2.msra.mxu0 0.0
    %2082 = vmatprep.subr.mxu0 0.0
    %2083 = vmatpush2.msra.mxu0 0.0
    %2084 = vmatprep.subr.mxu0 0.0
    %2085 = vmatpush2.msra.mxu0 0.0
    %2086 = vmatprep.subr.mxu0 0.0
    %2087 = vmatpush2.msra.mxu0 0.0
    %2088 = vmatprep.mubr.f32.mxu0 0.0
    %2089 = vmatmul.mubr.f32.gmra.mxu0 %v1951
    %v2090 = vpop.f32.mrf.mxu0
    %v2091 = vadd.f32 %v1946, %v2090
    %v2092 = vpop.f32.mrf.mxu0
    %v2093 = vadd.f32 %v1948, %v2092
    %2094 = vdwg.mxu0
    %v2095 = vld [vmem:[%s18] sm:$0xff]
    %2097 = vset.pattern.permute.xlu0 0
    %2098 = vperm.xlu0 %2097, %v2095
    %v2099 = vpop.permute.xlu0 %2098
    %v2101 = vadd.f32 %v2020, %v2099
    %v2102 = vadd.f32 %v2022, %v2099
    %v2103 = vadd.f32 %v2091, %v2099
    %v2104 = vadd.f32 %v2093, %v2099
    %v2105 = vmax.f32 %v2101, 0.0
    %v2106 = vmax.f32 %v2102, 0.0
    %v2107 = vmax.f32 %v2103, 0.0
    %v2108 = vmax.f32 %v2104, 0.0
    %v2109 = vadd.f32 %v2105, %v1130
    %v2110 = vadd.f32 %v2106, %v1131
    %v2111 = vadd.f32 %v2107, %v1132
    %v2112 = vadd.f32 %v2108, %v1133
    %v2113 = vmax.f32 %v2109, 0.0
    %v2114 = vmax.f32 %v2110, 0.0
    %v2115 = vmax.f32 %v2111, 0.0
    %v2116 = vmax.f32 %v2112, 0.0
    %2117 = vst [vmem:[#allocation2] sm:$0xff] %v2113
    %2118 = vst [vmem:[#allocation2 + $0x8] sm:$0xff] %v2114
    %2119 = vst [vmem:[#allocation2 + $0x10] sm:$0xff] %v2115
    %2120 = vst [vmem:[#allocation2 + $0x18] sm:$0xff] %v2116
    // Predicated region
    $region78: #{tpu_custom_call.1} parent=1 // pred_check
      _
    $region79: #{tpu_custom_call.1} parent=1 // pred_check_branch
      %2122 = sbr.rel (0) target = $region81
    $region80: #{tpu_custom_call.1} parent=1 // pred_region
      %s2124 = ssub.s32 512, 512
      %2125 = vsyncadd [#allocation3], %s2124
      %s2127 = sshll.u32 [#allocation2], 4
      %s2128 = int_to_ptr.vmem [resolvable:$true] %s2127
      %2130 = dma.vmem_to_hbm [thread:$0]  %s2128, 512, %s19, [#allocation3]
    $region81: #{tpu_custom_call.1} parent=1 // pred_fallthru
      _
    // Predicated region
    $region82: #{tpu_custom_call.1} parent=1 // pred_check
      _
    $region83: #{tpu_custom_call.1} parent=1 // pred_check_branch
      %2132 = sbr.rel (0) target = $region85
    $region84: #{tpu_custom_call.1} parent=1 // pred_region
      %2133 = dma.done [#allocation3], 512
    $region85: #{tpu_custom_call.1} parent=1 // pred_fallthru
      _
    %2134 = vsyncpa [#allocation3], 1

// kernel: tpu_custom_call.1
$region0: #{tpu_custom_call.1}
  #allocation0 [shape = 'u32[]', space=smem, size = 0x4, offset = 0x4, fixed_abs, tag = 'smem constant byte address 0x4 - core index']
  #allocation1 [shape = 'u32[144,128]{1,0:T(1,128)}', space=vmem, size = 0x12000, scoped, tag = 'internal scratch']
  %s0 = inlined_call_operand.vmem [shape: f32[8,512], index: 0, kind: input, shape index: {}]
  %s1 = inlined_call_operand.vmem [shape: f32[16,8], index: 1, kind: input, shape index: {}]
  %s2 = inlined_call_operand.vmem [shape: f32[16,8], index: 2, kind: input, shape index: {}]
  %s3 = inlined_call_operand.vmem [shape: f32[16,1], index: 3, kind: input, shape index: {}]
  %s4 = inlined_call_operand.vmem [shape: f32[8,8], index: 4, kind: input, shape index: {}]
  %s5 = inlined_call_operand.vmem [shape: f32[8,8], index: 5, kind: input, shape index: {}]
  %s6 = inlined_call_operand.vmem [shape: f32[8,1], index: 6, kind: input, shape index: {}]
  %s7 = inlined_call_operand.vmem [shape: f32[8,8], index: 7, kind: input, shape index: {}]
  %s8 = inlined_call_operand.vmem [shape: f32[8,8], index: 8, kind: input, shape index: {}]
  %s9 = inlined_call_operand.vmem [shape: f32[8,1], index: 9, kind: input, shape index: {}]
  %s10 = inlined_call_operand.vmem [shape: f32[8,8], index: 10, kind: input, shape index: {}]
  %s11 = inlined_call_operand.vmem [shape: f32[8,8], index: 11, kind: input, shape index: {}]
  %s12 = inlined_call_operand.vmem [shape: f32[8,1], index: 12, kind: input, shape index: {}]
  %s13 = inlined_call_operand.vmem [shape: f32[8,8], index: 13, kind: input, shape index: {}]
  %s14 = inlined_call_operand.vmem [shape: f32[8,8], index: 14, kind: input, shape index: {}]
  %s15 = inlined_call_operand.vmem [shape: f32[8,1], index: 15, kind: input, shape index: {}]
  %s16 = inlined_call_operand.vmem [shape: f32[8,8], index: 16, kind: input, shape index: {}]
  %s17 = inlined_call_operand.vmem [shape: f32[8,8], index: 17, kind: input, shape index: {}]
  %s18 = inlined_call_operand.vmem [shape: f32[8,1], index: 18, kind: input, shape index: {}]
  %s19 = inlined_call_operand.hbm [shape: f32[8,512], index: 19, kind: output, shape index: {}]
  %s20 = sld [smem:[#allocation0]]
  $region86: #{tpu_custom_call.1} parent=0
    _
  %s22 = ssub.s32 1, %s20
  %s23 = scalar_select 0, %s22, %s20
  $region1: #{tpu_custom_call.1} parent=0
    #allocation2 [shape = 'u8[16384]{0}', space=vmem, size = 0x4000, scoped, tag = 'output window, operand 0, single buffered']
    #allocation3 [shape = 's32[1]{0}', space=sflag, size = 0x4, scoped, tag = 'scoped memory for tpu_custom_call.1']
    %24 = vsyncpa [#allocation3], 0
    // Predicated region
    $region2: #{tpu_custom_call.1} parent=1 // pred_check
      _
    $region3: #{tpu_custom_call.1} parent=1 // pred_check_branch
      %26 = sbr.rel (0) target = $region5
    $region4: #{tpu_custom_call.1} parent=1 // pred_region
      _
    $region5: #{tpu_custom_call.1} parent=1 // pred_fallthru
      _
    // Predicated region
    $region6: #{tpu_custom_call.1} parent=1 // pred_check
      _
    $region7: #{tpu_custom_call.1} parent=1 // pred_check_branch
      %28 = sbr.rel (0) target = $region9
    $region8: #{tpu_custom_call.1} parent=1 // pred_region
      _
    $region9: #{tpu_custom_call.1} parent=1 // pred_fallthru
      _
    // Predicated region
    $region10: #{tpu_custom_call.1} parent=1 // pred_check
      _
    $region11: #{tpu_custom_call.1} parent=1 // pred_check_branch
      %30 = sbr.rel (0) target = $region13
    $region12: #{tpu_custom_call.1} parent=1 // pred_region
      _
    $region13: #{tpu_custom_call.1} parent=1 // pred_fallthru
      _
    // Predicated region
    $region14: #{tpu_custom_call.1} parent=1 // pred_check
      _
    $region15: #{tpu_custom_call.1} parent=1 // pred_check_branch
      %32 = sbr.rel (0) target = $region17
    $region16: #{tpu_custom_call.1} parent=1 // pred_region
      _
    $region17: #{tpu_custom_call.1} parent=1 // pred_fallthru
      _
    // Predicated region
    $region18: #{tpu_custom_call.1} parent=1 // pred_check
      _
    $region19: #{tpu_custom_call.1} parent=1 // pred_check_branch
      %34 = sbr.rel (0) target = $region21
    $region20: #{tpu_custom_call.1} parent=1 // pred_region
      _
    $region21: #{tpu_custom_call.1} parent=1 // pred_fallthru
      _
    // Predicated region
    $region22: #{tpu_custom_call.1} parent=1 // pred_check
      _
    $region23: #{tpu_custom_call.1} parent=1 // pred_check_branch
      %36 = sbr.rel (0) target = $region25
    $region24: #{tpu_custom_call.1} parent=1 // pred_region
      _
    $region25: #{tpu_custom_call.1} parent=1 // pred_fallthru
      _
    // Predicated region
    $region26: #{tpu_custom_call.1} parent=1 // pred_check
      _
    $region27: #{tpu_custom_call.1} parent=1 // pred_check_branch
      %38 = sbr.rel (0) target = $region29
    $region28: #{tpu_custom_call.1} parent=1 // pred_region
      _
    $region29: #{tpu_custom_call.1} parent=1 // pred_fallthru
      _
    // Predicated region
    $region30: #{tpu_custom_call.1} parent=1 // pred_check
      _
    $region31: #{tpu_custom_call.1} parent=1 // pred_check_branch
      %40 = sbr.rel (0) target = $region33
    $region32: #{tpu_custom_call.1} parent=1 // pred_region
      _
    $region33: #{tpu_custom_call.1} parent=1 // pred_fallthru
      _
    // Predicated region
    $region34: #{tpu_custom_call.1} parent=1 // pred_check
      _
    $region35: #{tpu_custom_call.1} parent=1 // pred_check_branch
      %42 = sbr.rel (0) target = $region37
    $region36: #{tpu_custom_call.1} parent=1 // pred_region
      _
    $region37: #{tpu_custom_call.1} parent=1 // pred_fallthru
      _
    // Predicated region
    $region38: #{tpu_custom_call.1} parent=1 // pred_check
      _
    $region39: #{tpu_custom_call.1} parent=1 // pred_check_branch
      %44 = sbr.rel (0) target = $region41
    $region40: #{tpu_custom_call.1} parent=1 // pred_region
      _
    $region41: #{tpu_custom_call.1} parent=1 // pred_fallthru
      _
    // Predicated region
    $region42: #{tpu_custom_call.1} parent=1 // pred_check
      _
    $region43: #{tpu_custom_call.1} parent=1 // pred_check_branch
      %46 = sbr.rel (0) target = $region45
    $region44: #{tpu_custom_call.1} parent=1 // pred_region
      _
    $region45: #{tpu_custom_call.1} parent=1 // pred_fallthru
      _
    // Predicated region
    $region46: #{tpu_custom_call.1} parent=1 // pred_check
      _
    $region47: #{tpu_custom_call.1} parent=1 // pred_check_branch
      %48 = sbr.rel (0) target = $region49
    $region48: #{tpu_custom_call.1} parent=1 // pred_region
      _
    $region49: #{tpu_custom_call.1} parent=1 // pred_fallthru
      _
    // Predicated region
    $region50: #{tpu_custom_call.1} parent=1 // pred_check
      _
    $region51: #{tpu_custom_call.1} parent=1 // pred_check_branch
      %50 = sbr.rel (0) target = $region53
    $region52: #{tpu_custom_call.1} parent=1 // pred_region
      _
    $region53: #{tpu_custom_call.1} parent=1 // pred_fallthru
      _
    // Predicated region
    $region54: #{tpu_custom_call.1} parent=1 // pred_check
      _
    $region55: #{tpu_custom_call.1} parent=1 // pred_check_branch
      %52 = sbr.rel (0) target = $region57
    $region56: #{tpu_custom_call.1} parent=1 // pred_region
      _
    $region57: #{tpu_custom_call.1} parent=1 // pred_fallthru
      _
    // Predicated region
    $region58: #{tpu_custom_call.1} parent=1 // pred_check
      _
    $region59: #{tpu_custom_call.1} parent=1 // pred_check_branch
      %54 = sbr.rel (0) target = $region61
    $region60: #{tpu_custom_call.1} parent=1 // pred_region
      _
    $region61: #{tpu_custom_call.1} parent=1 // pred_fallthru
      _
    // Predicated region
    $region62: #{tpu_custom_call.1} parent=1 // pred_check
      _
    $region63: #{tpu_custom_call.1} parent=1 // pred_check_branch
      %56 = sbr.rel (0) target = $region65
    $region64: #{tpu_custom_call.1} parent=1 // pred_region
      _
    $region65: #{tpu_custom_call.1} parent=1 // pred_fallthru
      _
    // Predicated region
    $region66: #{tpu_custom_call.1} parent=1 // pred_check
      _
    $region67: #{tpu_custom_call.1} parent=1 // pred_check_branch
      %58 = sbr.rel (0) target = $region69
    $region68: #{tpu_custom_call.1} parent=1 // pred_region
      _
    $region69: #{tpu_custom_call.1} parent=1 // pred_fallthru
      _
    // Predicated region
    $region70: #{tpu_custom_call.1} parent=1 // pred_check
      _
    $region71: #{tpu_custom_call.1} parent=1 // pred_check_branch
      %60 = sbr.rel (0) target = $region73
    $region72: #{tpu_custom_call.1} parent=1 // pred_region
      _
    $region73: #{tpu_custom_call.1} parent=1 // pred_fallthru
      _
    // Predicated region
    $region74: #{tpu_custom_call.1} parent=1 // pred_check
      _
    $region75: #{tpu_custom_call.1} parent=1 // pred_check_branch
      %62 = sbr.rel (0) target = $region77
    $region76: #{tpu_custom_call.1} parent=1 // pred_region
      _
    $region77: #{tpu_custom_call.1} parent=1 // pred_fallthru
      _
    %v63 = vlaneseq
    %v64 = vand.u32 %v63, 127
    %v65 = vadd.s32 %v64, 128
    %v66 = vadd.s32 %v64, 256
    %v67 = vadd.s32 %v64, 384
    %vm68 = vcmp.lt.s32.totalorder %v64, 0
    %v69 = vsub.s32 0, %v64
    %v70 = vsel %vm68, %v69, %v64
    %v71 = vshrl.u32 %v70, 7
    %v72 = vand.u32 %v70, 127
    %v73 = vsub.s32 0, %v72
    %v74 = vsel %vm68, %v73, %v72
    %vm75 = vcmp.lt.s32.totalorder %v65, 0
    %v76 = vsub.s32 0, %v65
    %v77 = vsel %vm75, %v76, %v65
    %v78 = vshrl.u32 %v77, 7
    %v79 = vand.u32 %v77, 127
    %v80 = vsub.s32 0, %v79
    %v81 = vsel %vm75, %v80, %v79
    %vm82 = vcmp.lt.s32.totalorder %v66, 0
    %v83 = vsub.s32 0, %v66
    %v84 = vsel %vm82, %v83, %v66
    %v85 = vshrl.u32 %v84, 7
    %v86 = vand.u32 %v84, 127
    %v87 = vsub.s32 0, %v86
    %v88 = vsel %vm82, %v87, %v86
    %vm89 = vcmp.lt.s32.totalorder %v67, 0
    %v90 = vsub.s32 0, %v67
    %v91 = vsel %vm89, %v90, %v67
    %v92 = vshrl.u32 %v91, 7
    %v93 = vand.u32 %v91, 127
    %v94 = vsub.s32 0, %v93
    %v95 = vsel %vm89, %v94, %v93
    %vm96 = vcmp.ge.s32.totalorder %v74, 1
    %vm97 = vcmp.ge.s32.totalorder %v81, 1
    %vm98 = vcmp.ge.s32.totalorder %v88, 1
    %vm99 = vcmp.ge.s32.totalorder %v95, 1
    %vm100 = vcmp.ge.s32.totalorder %v74, 2
    %vm101 = vcmp.ge.s32.totalorder %v81, 2
    %vm102 = vcmp.ge.s32.totalorder %v88, 2
    %vm103 = vcmp.ge.s32.totalorder %v95, 2
    %v104 = vld [vmem:[%s0] sm:$0xff]
    %v105 = vld [vmem:[%s0 + $0x8] sm:$0xff]
    %v106 = vld [vmem:[%s0 + $0x10] sm:$0xff]
    %v107 = vld [vmem:[%s0 + $0x18] sm:$0xff]
    %108 = vrot.lane.b32.xlu0 %v104, 1
    %v109 = vpop.permute.xlu0 %108
    %110 = vrot.lane.b32.xlu0 %v105, 1
    %v111 = vpop.permute.xlu0 %110
    %112 = vrot.lane.b32.xlu0 %v106, 1
    %v113 = vpop.permute.xlu0 %112
    %114 = vrot.lane.b32.xlu0 %v107, 1
    %v115 = vpop.permute.xlu0 %114
    %vm116 = vcmp.lt.s32.totalorder %v64, 1
    %v117 = vsel %vm116, %v113, %v115
    %v118 = vsel %vm116, %v111, %v113
    %v119 = vsel %vm116, %v109, %v111
    %v120 = vsel %vm116, %v115, %v109
    %v121 = vsel %vm96, 1, 0
    %v122 = vsel %vm97, 1, 0
    %v123 = vsel %vm98, 1, 0
    %v124 = vsel %vm99, 1, 0
    %vm125 = vcmp.eq.s32.totalorder %v121, 1
    %vm126 = vcmp.eq.s32.totalorder %v122, 1
    %vm127 = vcmp.eq.s32.totalorder %v123, 1
    %vm128 = vcmp.eq.s32.totalorder %v124, 1
    %v129 = vsel %vm125, %v120, 0.0
    %v130 = vsel %vm126, %v119, 0.0
    %v131 = vsel %vm127, %v118, 0.0
    %v132 = vsel %vm128, %v117, 0.0
    %v133 = vld [vmem:[%s1] sm:$0xff]
    %v134 = vld [vmem:[%s1 + $0x8] sm:$0xff]
    %v135 = vld [vmem:[%s2] sm:$0xff]
    %v136 = vld [vmem:[%s2 + $0x8] sm:$0xff]
    %vm137 = vcmask 64512
    %v139 = vsel %vm137, %v135, 0
    %v142 = vsel %vm137, %v136, 0
    %144 = vmatprep.subr.mxu0 0.0
    %145 = vmatpush1.msra.mxu0 0.0
    %146 = vmatprep.subr.mxu0 0.0
    %147 = vmatpush1.msra.mxu0 0.0
    %148 = vmatprep.subr.mxu0 0.0
    %149 = vmatpush1.msra.mxu0 0.0
    %150 = vmatprep.subr.mxu0 0.0
    %151 = vmatpush1.msra.mxu0 0.0
    %152 = vmatprep.subr.mxu0 0.0
    %153 = vmatpush1.msra.mxu0 0.0
    %154 = vmatprep.subr.mxu0 0.0
    %155 = vmatpush1.msra.mxu0 0.0
    %156 = vmatprep.subr.mxu0 0.0
    %157 = vmatpush1.msra.mxu0 0.0
    %158 = vmatprep.subr.mxu0 0.0
    %159 = vmatpush1.msra.mxu0 0.0
    %160 = vmatprep.subr.mxu0 0.0
    %161 = vmatpush1.msra.mxu0 0.0
    %162 = vmatprep.subr.mxu0 0.0
    %163 = vmatpush1.msra.mxu0 0.0
    %164 = vmatprep.subr.mxu0 0.0
    %165 = vmatpush1.msra.mxu0 0.0
    %166 = vmatprep.subr.mxu0 0.0
    %167 = vmatpush1.msra.mxu0 0.0
    %168 = vmatprep.subr.mxu0 0.0
    %169 = vmatpush1.msra.mxu0 0.0
    %170 = vmatprep.subr.mxu0 0.0
    %171 = vmatpush1.msra.mxu0 0.0
    %172 = vmatprep.subr.mxu0 0.0
    %173 = vmatpush1.msra.mxu0 0.0
    %174 = vmatprep.subr.mxu0 %v105
    %175 = vmatpush1.msra.mxu0 %v104
    %176 = vmatprep.subr.mxu0 0.0
    %177 = vmatpush2.msra.mxu0 0.0
    %178 = vmatprep.subr.mxu0 0.0
    %179 = vmatpush2.msra.mxu0 0.0
    %180 = vmatprep.subr.mxu0 0.0
    %181 = vmatpush2.msra.mxu0 0.0
    %182 = vmatprep.subr.mxu0 0.0
    %183 = vmatpush2.msra.mxu0 0.0
    %184 = vmatprep.subr.mxu0 0.0
    %185 = vmatpush2.msra.mxu0 0.0
    %186 = vmatprep.subr.mxu0 0.0
    %187 = vmatpush2.msra.mxu0 0.0
    %188 = vmatprep.subr.mxu0 0.0
    %189 = vmatpush2.msra.mxu0 0.0
    %190 = vmatprep.subr.mxu0 0.0
    %191 = vmatpush2.msra.mxu0 0.0
    %192 = vmatprep.subr.mxu0 0.0
    %193 = vmatpush2.msra.mxu0 0.0
    %194 = vmatprep.subr.mxu0 0.0
    %195 = vmatpush2.msra.mxu0 0.0
    %196 = vmatprep.subr.mxu0 0.0
    %197 = vmatpush2.msra.mxu0 0.0
    %198 = vmatprep.subr.mxu0 0.0
    %199 = vmatpush2.msra.mxu0 0.0
    %200 = vmatprep.subr.mxu0 0.0
    %201 = vmatpush2.msra.mxu0 0.0
    %202 = vmatprep.subr.mxu0 0.0
    %203 = vmatpush2.msra.mxu0 0.0
    %204 = vmatprep.subr.mxu0 0.0
    %205 = vmatpush2.msra.mxu0 0.0
    %206 = vmatprep.subr.mxu0 0.0
    %207 = vmatpush2.msra.mxu0 0.0
    %208 = vmatprep.mubr.f32.mxu0 0.0
    %209 = vmatmul.mubr.f32.gmra.mxu0 %v139
    %v210 = vpop.f32.mrf.mxu0
    %v211 = vadd.f32 0.0, %v210
    %v212 = vpop.f32.mrf.mxu0
    %v213 = vadd.f32 0.0, %v212
    %214 = vmatprep.mubr.f32.mxu0 0.0
    %215 = vmatmul.mubr.f32.gmra.mxu0 %v142
    %v216 = vpop.f32.mrf.mxu0
    %v217 = vadd.f32 0.0, %v216
    %v218 = vpop.f32.mrf.mxu0
    %v219 = vadd.f32 0.0, %v218
    %220 = vdwg.mxu0
    %221 = vmatprep.subr.mxu0 0.0
    %222 = vmatpush1.msra.mxu0 0.0
    %223 = vmatprep.subr.mxu0 0.0
    %224 = vmatpush1.msra.mxu0 0.0
    %225 = vmatprep.subr.mxu0 0.0
    %226 = vmatpush1.msra.mxu0 0.0
    %227 = vmatprep.subr.mxu0 0.0
    %228 = vmatpush1.msra.mxu0 0.0
    %229 = vmatprep.subr.mxu0 0.0
    %230 = vmatpush1.msra.mxu0 0.0
    %231 = vmatprep.subr.mxu0 0.0
    %232 = vmatpush1.msra.mxu0 0.0
    %233 = vmatprep.subr.mxu0 0.0
    %234 = vmatpush1.msra.mxu0 0.0
    %235 = vmatprep.subr.mxu0 0.0
    %236 = vmatpush1.msra.mxu0 0.0
    %237 = vmatprep.subr.mxu0 0.0
    %238 = vmatpush1.msra.mxu0 0.0
    %239 = vmatprep.subr.mxu0 0.0
    %240 = vmatpush1.msra.mxu0 0.0
    %241 = vmatprep.subr.mxu0 0.0
    %242 = vmatpush1.msra.mxu0 0.0
    %243 = vmatprep.subr.mxu0 0.0
    %244 = vmatpush1.msra.mxu0 0.0
    %245 = vmatprep.subr.mxu0 0.0
    %246 = vmatpush1.msra.mxu0 0.0
    %247 = vmatprep.subr.mxu0 0.0
    %248 = vmatpush1.msra.mxu0 0.0
    %249 = vmatprep.subr.mxu0 0.0
    %250 = vmatpush1.msra.mxu0 0.0
    %251 = vmatprep.subr.mxu0 %v107
    %252 = vmatpush1.msra.mxu0 %v106
    %253 = vmatprep.subr.mxu0 0.0
    %254 = vmatpush2.msra.mxu0 0.0
    %255 = vmatprep.subr.mxu0 0.0
    %256 = vmatpush2.msra.mxu0 0.0
    %257 = vmatprep.subr.mxu0 0.0
    %258 = vmatpush2.msra.mxu0 0.0
    %259 = vmatprep.subr.mxu0 0.0
    %260 = vmatpush2.msra.mxu0 0.0
    %261 = vmatprep.subr.mxu0 0.0
    %262 = vmatpush2.msra.mxu0 0.0
    %263 = vmatprep.subr.mxu0 0.0
    %264 = vmatpush2.msra.mxu0 0.0
    %265 = vmatprep.subr.mxu0 0.0
    %266 = vmatpush2.msra.mxu0 0.0
    %267 = vmatprep.subr.mxu0 0.0
    %268 = vmatpush2.msra.mxu0 0.0
    %269 = vmatprep.subr.mxu0 0.0
    %270 = vmatpush2.msra.mxu0 0.0
    %271 = vmatprep.subr.mxu0 0.0
    %272 = vmatpush2.msra.mxu0 0.0
    %273 = vmatprep.subr.mxu0 0.0
    %274 = vmatpush2.msra.mxu0 0.0
    %275 = vmatprep.subr.mxu0 0.0
    %276 = vmatpush2.msra.mxu0 0.0
    %277 = vmatprep.subr.mxu0 0.0
    %278 = vmatpush2.msra.mxu0 0.0
    %279 = vmatprep.subr.mxu0 0.0
    %280 = vmatpush2.msra.mxu0 0.0
    %281 = vmatprep.subr.mxu0 0.0
    %282 = vmatpush2.msra.mxu0 0.0
    %283 = vmatprep.subr.mxu0 0.0
    %284 = vmatpush2.msra.mxu0 0.0
    %285 = vmatprep.mubr.f32.mxu0 0.0
    %286 = vmatmul.mubr.f32.gmra.mxu0 %v139
    %v287 = vpop.f32.mrf.mxu0
    %v288 = vadd.f32 0.0, %v287
    %v289 = vpop.f32.mrf.mxu0
    %v290 = vadd.f32 0.0, %v289
    %291 = vmatprep.mubr.f32.mxu0 0.0
    %292 = vmatmul.mubr.f32.gmra.mxu0 %v142
    %v293 = vpop.f32.mrf.mxu0
    %v294 = vadd.f32 0.0, %v293
    %v295 = vpop.f32.mrf.mxu0
    %v296 = vadd.f32 0.0, %v295
    %297 = vdwg.mxu0
    %v299 = vsel %vm137, %v133, 0
    %v302 = vsel %vm137, %v134, 0
    %304 = vmatprep.subr.mxu0 0.0
    %305 = vmatpush1.msra.mxu0 0.0
    %306 = vmatprep.subr.mxu0 0.0
    %307 = vmatpush1.msra.mxu0 0.0
    %308 = vmatprep.subr.mxu0 0.0
    %309 = vmatpush1.msra.mxu0 0.0
    %310 = vmatprep.subr.mxu0 0.0
    %311 = vmatpush1.msra.mxu0 0.0
    %312 = vmatprep.subr.mxu0 0.0
    %313 = vmatpush1.msra.mxu0 0.0
    %314 = vmatprep.subr.mxu0 0.0
    %315 = vmatpush1.msra.mxu0 0.0
    %316 = vmatprep.subr.mxu0 0.0
    %317 = vmatpush1.msra.mxu0 0.0
    %318 = vmatprep.subr.mxu0 0.0
    %319 = vmatpush1.msra.mxu0 0.0
    %320 = vmatprep.subr.mxu0 0.0
    %321 = vmatpush1.msra.mxu0 0.0
    %322 = vmatprep.subr.mxu0 0.0
    %323 = vmatpush1.msra.mxu0 0.0
    %324 = vmatprep.subr.mxu0 0.0
    %325 = vmatpush1.msra.mxu0 0.0
    %326 = vmatprep.subr.mxu0 0.0
    %327 = vmatpush1.msra.mxu0 0.0
    %328 = vmatprep.subr.mxu0 0.0
    %329 = vmatpush1.msra.mxu0 0.0
    %330 = vmatprep.subr.mxu0 0.0
    %331 = vmatpush1.msra.mxu0 0.0
    %332 = vmatprep.subr.mxu0 0.0
    %333 = vmatpush1.msra.mxu0 0.0
    %334 = vmatprep.subr.mxu0 %v130
    %335 = vmatpush1.msra.mxu0 %v129
    %336 = vmatprep.subr.mxu0 0.0
    %337 = vmatpush2.msra.mxu0 0.0
    %338 = vmatprep.subr.mxu0 0.0
    %339 = vmatpush2.msra.mxu0 0.0
    %340 = vmatprep.subr.mxu0 0.0
    %341 = vmatpush2.msra.mxu0 0.0
    %342 = vmatprep.subr.mxu0 0.0
    %343 = vmatpush2.msra.mxu0 0.0
    %344 = vmatprep.subr.mxu0 0.0
    %345 = vmatpush2.msra.mxu0 0.0
    %346 = vmatprep.subr.mxu0 0.0
    %347 = vmatpush2.msra.mxu0 0.0
    %348 = vmatprep.subr.mxu0 0.0
    %349 = vmatpush2.msra.mxu0 0.0
    %350 = vmatprep.subr.mxu0 0.0
    %351 = vmatpush2.msra.mxu0 0.0
    %352 = vmatprep.subr.mxu0 0.0
    %353 = vmatpush2.msra.mxu0 0.0
    %354 = vmatprep.subr.mxu0 0.0
    %355 = vmatpush2.msra.mxu0 0.0
    %356 = vmatprep.subr.mxu0 0.0
    %357 = vmatpush2.msra.mxu0 0.0
    %358 = vmatprep.subr.mxu0 0.0
    %359 = vmatpush2.msra.mxu0 0.0
    %360 = vmatprep.subr.mxu0 0.0
    %361 = vmatpush2.msra.mxu0 0.0
    %362 = vmatprep.subr.mxu0 0.0
    %363 = vmatpush2.msra.mxu0 0.0
    %364 = vmatprep.subr.mxu0 0.0
    %365 = vmatpush2.msra.mxu0 0.0
    %366 = vmatprep.subr.mxu0 0.0
    %367 = vmatpush2.msra.mxu0 0.0
    %368 = vmatprep.mubr.f32.mxu0 0.0
    %369 = vmatmul.mubr.f32.gmra.mxu0 %v299
    %v370 = vpop.f32.mrf.mxu0
    %v371 = vadd.f32 %v211, %v370
    %v372 = vpop.f32.mrf.mxu0
    %v373 = vadd.f32 %v213, %v372
    %374 = vmatprep.mubr.f32.mxu0 0.0
    %375 = vmatmul.mubr.f32.gmra.mxu0 %v302
    %v376 = vpop.f32.mrf.mxu0
    %v377 = vadd.f32 %v217, %v376
    %v378 = vpop.f32.mrf.mxu0
    %v379 = vadd.f32 %v219, %v378
    %380 = vdwg.mxu0
    %381 = vmatprep.subr.mxu0 0.0
    %382 = vmatpush1.msra.mxu0 0.0
    %383 = vmatprep.subr.mxu0 0.0
    %384 = vmatpush1.msra.mxu0 0.0
    %385 = vmatprep.subr.mxu0 0.0
    %386 = vmatpush1.msra.mxu0 0.0
    %387 = vmatprep.subr.mxu0 0.0
    %388 = vmatpush1.msra.mxu0 0.0
    %389 = vmatprep.subr.mxu0 0.0
    %390 = vmatpush1.msra.mxu0 0.0
    %391 = vmatprep.subr.mxu0 0.0
    %392 = vmatpush1.msra.mxu0 0.0
    %393 = vmatprep.subr.mxu0 0.0
    %394 = vmatpush1.msra.mxu0 0.0
    %395 = vmatprep.subr.mxu0 0.0
    %396 = vmatpush1.msra.mxu0 0.0
    %397 = vmatprep.subr.mxu0 0.0
    %398 = vmatpush1.msra.mxu0 0.0
    %399 = vmatprep.subr.mxu0 0.0
    %400 = vmatpush1.msra.mxu0 0.0
    %401 = vmatprep.subr.mxu0 0.0
    %402 = vmatpush1.msra.mxu0 0.0
    %403 = vmatprep.subr.mxu0 0.0
    %404 = vmatpush1.msra.mxu0 0.0
    %405 = vmatprep.subr.mxu0 0.0
    %406 = vmatpush1.msra.mxu0 0.0
    %407 = vmatprep.subr.mxu0 0.0
    %408 = vmatpush1.msra.mxu0 0.0
    %409 = vmatprep.subr.mxu0 0.0
    %410 = vmatpush1.msra.mxu0 0.0
    %411 = vmatprep.subr.mxu0 %v132
    %412 = vmatpush1.msra.mxu0 %v131
    %413 = vmatprep.subr.mxu0 0.0
    %414 = vmatpush2.msra.mxu0 0.0
    %415 = vmatprep.subr.mxu0 0.0
    %416 = vmatpush2.msra.mxu0 0.0
    %417 = vmatprep.subr.mxu0 0.0
    %418 = vmatpush2.msra.mxu0 0.0
    %419 = vmatprep.subr.mxu0 0.0
    %420 = vmatpush2.msra.mxu0 0.0
    %421 = vmatprep.subr.mxu0 0.0
    %422 = vmatpush2.msra.mxu0 0.0
    %423 = vmatprep.subr.mxu0 0.0
    %424 = vmatpush2.msra.mxu0 0.0
    %425 = vmatprep.subr.mxu0 0.0
    %426 = vmatpush2.msra.mxu0 0.0
    %427 = vmatprep.subr.mxu0 0.0
    %428 = vmatpush2.msra.mxu0 0.0
    %429 = vmatprep.subr.mxu0 0.0
    %430 = vmatpush2.msra.mxu0 0.0
    %431 = vmatprep.subr.mxu0 0.0
    %432 = vmatpush2.msra.mxu0 0.0
    %433 = vmatprep.subr.mxu0 0.0
    %434 = vmatpush2.msra.mxu0 0.0
    %435 = vmatprep.subr.mxu0 0.0
    %436 = vmatpush2.msra.mxu0 0.0
    %437 = vmatprep.subr.mxu0 0.0
    %438 = vmatpush2.msra.mxu0 0.0
    %439 = vmatprep.subr.mxu0 0.0
    %440 = vmatpush2.msra.mxu0 0.0
    %441 = vmatprep.subr.mxu0 0.0
    %442 = vmatpush2.msra.mxu0 0.0
    %443 = vmatprep.subr.mxu0 0.0
    %444 = vmatpush2.msra.mxu0 0.0
    %445 = vmatprep.mubr.f32.mxu0 0.0
    %446 = vmatmul.mubr.f32.gmra.mxu0 %v299
    %v447 = vpop.f32.mrf.mxu0
    %v448 = vadd.f32 %v288, %v447
    %v449 = vpop.f32.mrf.mxu0
    %v450 = vadd.f32 %v290, %v449
    %451 = vmatprep.mubr.f32.mxu0 0.0
    %452 = vmatmul.mubr.f32.gmra.mxu0 %v302
    %v453 = vpop.f32.mrf.mxu0
    %v454 = vadd.f32 %v294, %v453
    %v455 = vpop.f32.mrf.mxu0
    %v456 = vadd.f32 %v296, %v455
    %457 = vdwg.mxu0
    %v458 = vld [vmem:[%s3] sm:$0xff]
    %v459 = vld [vmem:[%s3 + $0x8] sm:$0xff]
    %461 = vset.pattern.permute.xlu0 0
    %462 = vperm.xlu0 %461, %v458
    %v463 = vpop.permute.xlu0 %462
    %466 = vset.pattern.permute.xlu0 0
    %467 = vperm.xlu0 %466, %v459
    %v468 = vpop.permute.xlu0 %467
    %v470 = vadd.f32 %v371, %v463
    %v471 = vadd.f32 %v373, %v463
    %v472 = vadd.f32 %v448, %v463
    %v473 = vadd.f32 %v450, %v463
    %v474 = vadd.f32 %v377, %v468
    %v475 = vadd.f32 %v379, %v468
    %v476 = vadd.f32 %v454, %v468
    %v477 = vadd.f32 %v456, %v468
    %v478 = vmax.f32 %v470, 0.0
    %v479 = vmax.f32 %v471, 0.0
    %v480 = vmax.f32 %v472, 0.0
    %v481 = vmax.f32 %v473, 0.0
    %482 = vrot.lane.b32.xlu0 %v478, 1
    %v483 = vpop.permute.xlu0 %482
    %484 = vrot.lane.b32.xlu0 %v479, 1
    %v485 = vpop.permute.xlu0 %484
    %486 = vrot.lane.b32.xlu0 %v480, 1
    %v487 = vpop.permute.xlu0 %486
    %488 = vrot.lane.b32.xlu0 %v481, 1
    %v489 = vpop.permute.xlu0 %488
    %v490 = vsel %vm116, %v487, %v489
    %v491 = vsel %vm116, %v485, %v487
    %v492 = vsel %vm116, %v483, %v485
    %v493 = vsel %vm116, %v489, %v483
    %v494 = vsel %vm125, %v493, 0.0
    %v495 = vsel %vm126, %v492, 0.0
    %v496 = vsel %vm127, %v491, 0.0
    %v497 = vsel %vm128, %v490, 0.0
    %v498 = vld [vmem:[%s4] sm:$0xff]
    %v499 = vld [vmem:[%s5] sm:$0xff]
    %v501 = vsel %vm137, %v499, 0
    %503 = vmatprep.subr.mxu0 0.0
    %504 = vmatpush1.msra.mxu0 0.0
    %505 = vmatprep.subr.mxu0 0.0
    %506 = vmatpush1.msra.mxu0 0.0
    %507 = vmatprep.subr.mxu0 0.0
    %508 = vmatpush1.msra.mxu0 0.0
    %509 = vmatprep.subr.mxu0 0.0
    %510 = vmatpush1.msra.mxu0 0.0
    %511 = vmatprep.subr.mxu0 0.0
    %512 = vmatpush1.msra.mxu0 0.0
    %513 = vmatprep.subr.mxu0 0.0
    %514 = vmatpush1.msra.mxu0 0.0
    %515 = vmatprep.subr.mxu0 0.0
    %516 = vmatpush1.msra.mxu0 0.0
    %517 = vmatprep.subr.mxu0 0.0
    %518 = vmatpush1.msra.mxu0 0.0
    %519 = vmatprep.subr.mxu0 0.0
    %520 = vmatpush1.msra.mxu0 0.0
    %521 = vmatprep.subr.mxu0 0.0
    %522 = vmatpush1.msra.mxu0 0.0
    %523 = vmatprep.subr.mxu0 0.0
    %524 = vmatpush1.msra.mxu0 0.0
    %525 = vmatprep.subr.mxu0 0.0
    %526 = vmatpush1.msra.mxu0 0.0
    %527 = vmatprep.subr.mxu0 0.0
    %528 = vmatpush1.msra.mxu0 0.0
    %529 = vmatprep.subr.mxu0 0.0
    %530 = vmatpush1.msra.mxu0 0.0
    %531 = vmatprep.subr.mxu0 0.0
    %532 = vmatpush1.msra.mxu0 0.0
    %533 = vmatprep.subr.mxu0 %v479
    %534 = vmatpush1.msra.mxu0 %v478
    %535 = vmatprep.subr.mxu0 0.0
    %536 = vmatpush2.msra.mxu0 0.0
    %537 = vmatprep.subr.mxu0 0.0
    %538 = vmatpush2.msra.mxu0 0.0
    %539 = vmatprep.subr.mxu0 0.0
    %540 = vmatpush2.msra.mxu0 0.0
    %541 = vmatprep.subr.mxu0 0.0
    %542 = vmatpush2.msra.mxu0 0.0
    %543 = vmatprep.subr.mxu0 0.0
    %544 = vmatpush2.msra.mxu0 0.0
    %545 = vmatprep.subr.mxu0 0.0
    %546 = vmatpush2.msra.mxu0 0.0
    %547 = vmatprep.subr.mxu0 0.0
    %548 = vmatpush2.msra.mxu0 0.0
    %549 = vmatprep.subr.mxu0 0.0
    %550 = vmatpush2.msra.mxu0 0.0
    %551 = vmatprep.subr.mxu0 0.0
    %552 = vmatpush2.msra.mxu0 0.0
    %553 = vmatprep.subr.mxu0 0.0
    %554 = vmatpush2.msra.mxu0 0.0
    %555 = vmatprep.subr.mxu0 0.0
    %556 = vmatpush2.msra.mxu0 0.0
    %557 = vmatprep.subr.mxu0 0.0
    %558 = vmatpush2.msra.mxu0 0.0
    %559 = vmatprep.subr.mxu0 0.0
    %560 = vmatpush2.msra.mxu0 0.0
    %561 = vmatprep.subr.mxu0 0.0
    %562 = vmatpush2.msra.mxu0 0.0
    %563 = vmatprep.subr.mxu0 0.0
    %564 = vmatpush2.msra.mxu0 0.0
    %565 = vmatprep.subr.mxu0 0.0
    %566 = vmatpush2.msra.mxu0 0.0
    %567 = vmatprep.mubr.f32.mxu0 0.0
    %568 = vmatmul.mubr.f32.gmra.mxu0 %v501
    %v569 = vpop.f32.mrf.mxu0
    %v570 = vadd.f32 0.0, %v569
    %v571 = vpop.f32.mrf.mxu0
    %v572 = vadd.f32 0.0, %v571
    %573 = vdwg.mxu0
    %574 = vmatprep.subr.mxu0 0.0
    %575 = vmatpush1.msra.mxu0 0.0
    %576 = vmatprep.subr.mxu0 0.0
    %577 = vmatpush1.msra.mxu0 0.0
    %578 = vmatprep.subr.mxu0 0.0
    %579 = vmatpush1.msra.mxu0 0.0
    %580 = vmatprep.subr.mxu0 0.0
    %581 = vmatpush1.msra.mxu0 0.0
    %582 = vmatprep.subr.mxu0 0.0
    %583 = vmatpush1.msra.mxu0 0.0
    %584 = vmatprep.subr.mxu0 0.0
    %585 = vmatpush1.msra.mxu0 0.0
    %586 = vmatprep.subr.mxu0 0.0
    %587 = vmatpush1.msra.mxu0 0.0
    %588 = vmatprep.subr.mxu0 0.0
    %589 = vmatpush1.msra.mxu0 0.0
    %590 = vmatprep.subr.mxu0 0.0
    %591 = vmatpush1.msra.mxu0 0.0
    %592 = vmatprep.subr.mxu0 0.0
    %593 = vmatpush1.msra.mxu0 0.0
    %594 = vmatprep.subr.mxu0 0.0
    %595 = vmatpush1.msra.mxu0 0.0
    %596 = vmatprep.subr.mxu0 0.0
    %597 = vmatpush1.msra.mxu0 0.0
    %598 = vmatprep.subr.mxu0 0.0
    %599 = vmatpush1.msra.mxu0 0.0
    %600 = vmatprep.subr.mxu0 0.0
    %601 = vmatpush1.msra.mxu0 0.0
    %602 = vmatprep.subr.mxu0 0.0
    %603 = vmatpush1.msra.mxu0 0.0
    %604 = vmatprep.subr.mxu0 %v481
    %605 = vmatpush1.msra.mxu0 %v480
    %606 = vmatprep.subr.mxu0 0.0
    %607 = vmatpush2.msra.mxu0 0.0
    %608 = vmatprep.subr.mxu0 0.0
    %609 = vmatpush2.msra.mxu0 0.0
    %610 = vmatprep.subr.mxu0 0.0
    %611 = vmatpush2.msra.mxu0 0.0
    %612 = vmatprep.subr.mxu0 0.0
    %613 = vmatpush2.msra.mxu0 0.0
    %614 = vmatprep.subr.mxu0 0.0
    %615 = vmatpush2.msra.mxu0 0.0
    %616 = vmatprep.subr.mxu0 0.0
    %617 = vmatpush2.msra.mxu0 0.0
    %618 = vmatprep.subr.mxu0 0.0
    %619 = vmatpush2.msra.mxu0 0.0
    %620 = vmatprep.subr.mxu0 0.0
    %621 = vmatpush2.msra.mxu0 0.0
    %622 = vmatprep.subr.mxu0 0.0
    %623 = vmatpush2.msra.mxu0 0.0
    %624 = vmatprep.subr.mxu0 0.0
    %625 = vmatpush2.msra.mxu0 0.0
    %626 = vmatprep.subr.mxu0 0.0
    %627 = vmatpush2.msra.mxu0 0.0
    %628 = vmatprep.subr.mxu0 0.0
    %629 = vmatpush2.msra.mxu0 0.0
    %630 = vmatprep.subr.mxu0 0.0
    %631 = vmatpush2.msra.mxu0 0.0
    %632 = vmatprep.subr.mxu0 0.0
    %633 = vmatpush2.msra.mxu0 0.0
    %634 = vmatprep.subr.mxu0 0.0
    %635 = vmatpush2.msra.mxu0 0.0
    %636 = vmatprep.subr.mxu0 0.0
    %637 = vmatpush2.msra.mxu0 0.0
    %638 = vmatprep.mubr.f32.mxu0 0.0
    %639 = vmatmul.mubr.f32.gmra.mxu0 %v501
    %v640 = vpop.f32.mrf.mxu0
    %v641 = vadd.f32 0.0, %v640
    %v642 = vpop.f32.mrf.mxu0
    %v643 = vadd.f32 0.0, %v642
    %644 = vdwg.mxu0
    %v646 = vsel %vm137, %v498, 0
    %648 = vmatprep.subr.mxu0 0.0
    %649 = vmatpush1.msra.mxu0 0.0
    %650 = vmatprep.subr.mxu0 0.0
    %651 = vmatpush1.msra.mxu0 0.0
    %652 = vmatprep.subr.mxu0 0.0
    %653 = vmatpush1.msra.mxu0 0.0
    %654 = vmatprep.subr.mxu0 0.0
    %655 = vmatpush1.msra.mxu0 0.0
    %656 = vmatprep.subr.mxu0 0.0
    %657 = vmatpush1.msra.mxu0 0.0
    %658 = vmatprep.subr.mxu0 0.0
    %659 = vmatpush1.msra.mxu0 0.0
    %660 = vmatprep.subr.mxu0 0.0
    %661 = vmatpush1.msra.mxu0 0.0
    %662 = vmatprep.subr.mxu0 0.0
    %663 = vmatpush1.msra.mxu0 0.0
    %664 = vmatprep.subr.mxu0 0.0
    %665 = vmatpush1.msra.mxu0 0.0
    %666 = vmatprep.subr.mxu0 0.0
    %667 = vmatpush1.msra.mxu0 0.0
    %668 = vmatprep.subr.mxu0 0.0
    %669 = vmatpush1.msra.mxu0 0.0
    %670 = vmatprep.subr.mxu0 0.0
    %671 = vmatpush1.msra.mxu0 0.0
    %672 = vmatprep.subr.mxu0 0.0
    %673 = vmatpush1.msra.mxu0 0.0
    %674 = vmatprep.subr.mxu0 0.0
    %675 = vmatpush1.msra.mxu0 0.0
    %676 = vmatprep.subr.mxu0 0.0
    %677 = vmatpush1.msra.mxu0 0.0
    %678 = vmatprep.subr.mxu0 %v495
    %679 = vmatpush1.msra.mxu0 %v494
    %680 = vmatprep.subr.mxu0 0.0
    %681 = vmatpush2.msra.mxu0 0.0
    %682 = vmatprep.subr.mxu0 0.0
    %683 = vmatpush2.msra.mxu0 0.0
    %684 = vmatprep.subr.mxu0 0.0
    %685 = vmatpush2.msra.mxu0 0.0
    %686 = vmatprep.subr.mxu0 0.0
    %687 = vmatpush2.msra.mxu0 0.0
    %688 = vmatprep.subr.mxu0 0.0
    %689 = vmatpush2.msra.mxu0 0.0
    %690 = vmatprep.subr.mxu0 0.0
    %691 = vmatpush2.msra.mxu0 0.0
    %692 = vmatprep.subr.mxu0 0.0
    %693 = vmatpush2.msra.mxu0 0.0
    %694 = vmatprep.subr.mxu0 0.0
    %695 = vmatpush2.msra.mxu0 0.0
    %696 = vmatprep.subr.mxu0 0.0
    %697 = vmatpush2.msra.mxu0 0.0
    %698 = vmatprep.subr.mxu0 0.0
    %699 = vmatpush2.msra.mxu0 0.0
    %700 = vmatprep.subr.mxu0 0.0
    %701 = vmatpush2.msra.mxu0 0.0
    %702 = vmatprep.subr.mxu0 0.0
    %703 = vmatpush2.msra.mxu0 0.0
    %704 = vmatprep.subr.mxu0 0.0
    %705 = vmatpush2.msra.mxu0 0.0
    %706 = vmatprep.subr.mxu0 0.0
    %707 = vmatpush2.msra.mxu0 0.0
    %708 = vmatprep.subr.mxu0 0.0
    %709 = vmatpush2.msra.mxu0 0.0
    %710 = vmatprep.subr.mxu0 0.0
    %711 = vmatpush2.msra.mxu0 0.0
    %712 = vmatprep.mubr.f32.mxu0 0.0
    %713 = vmatmul.mubr.f32.gmra.mxu0 %v646
    %v714 = vpop.f32.mrf.mxu0
    %v715 = vadd.f32 %v570, %v714
    %v716 = vpop.f32.mrf.mxu0
    %v717 = vadd.f32 %v572, %v716
    %718 = vdwg.mxu0
    %719 = vmatprep.subr.mxu0 0.0
    %720 = vmatpush1.msra.mxu0 0.0
    %721 = vmatprep.subr.mxu0 0.0
    %722 = vmatpush1.msra.mxu0 0.0
    %723 = vmatprep.subr.mxu0 0.0
    %724 = vmatpush1.msra.mxu0 0.0
    %725 = vmatprep.subr.mxu0 0.0
    %726 = vmatpush1.msra.mxu0 0.0
    %727 = vmatprep.subr.mxu0 0.0
    %728 = vmatpush1.msra.mxu0 0.0
    %729 = vmatprep.subr.mxu0 0.0
    %730 = vmatpush1.msra.mxu0 0.0
    %731 = vmatprep.subr.mxu0 0.0
    %732 = vmatpush1.msra.mxu0 0.0
    %733 = vmatprep.subr.mxu0 0.0
    %734 = vmatpush1.msra.mxu0 0.0
    %735 = vmatprep.subr.mxu0 0.0
    %736 = vmatpush1.msra.mxu0 0.0
    %737 = vmatprep.subr.mxu0 0.0
    %738 = vmatpush1.msra.mxu0 0.0
    %739 = vmatprep.subr.mxu0 0.0
    %740 = vmatpush1.msra.mxu0 0.0
    %741 = vmatprep.subr.mxu0 0.0
    %742 = vmatpush1.msra.mxu0 0.0
    %743 = vmatprep.subr.mxu0 0.0
    %744 = vmatpush1.msra.mxu0 0.0
    %745 = vmatprep.subr.mxu0 0.0
    %746 = vmatpush1.msra.mxu0 0.0
    %747 = vmatprep.subr.mxu0 0.0
    %748 = vmatpush1.msra.mxu0 0.0
    %749 = vmatprep.subr.mxu0 %v497
    %750 = vmatpush1.msra.mxu0 %v496
    %751 = vmatprep.subr.mxu0 0.0
    %752 = vmatpush2.msra.mxu0 0.0
    %753 = vmatprep.subr.mxu0 0.0
    %754 = vmatpush2.msra.mxu0 0.0
    %755 = vmatprep.subr.mxu0 0.0
    %756 = vmatpush2.msra.mxu0 0.0
    %757 = vmatprep.subr.mxu0 0.0
    %758 = vmatpush2.msra.mxu0 0.0
    %759 = vmatprep.subr.mxu0 0.0
    %760 = vmatpush2.msra.mxu0 0.0
    %761 = vmatprep.subr.mxu0 0.0
    %762 = vmatpush2.msra.mxu0 0.0
    %763 = vmatprep.subr.mxu0 0.0
    %764 = vmatpush2.msra.mxu0 0.0
    %765 = vmatprep.subr.mxu0 0.0
    %766 = vmatpush2.msra.mxu0 0.0
    %767 = vmatprep.subr.mxu0 0.0
    %768 = vmatpush2.msra.mxu0 0.0
    %769 = vmatprep.subr.mxu0 0.0
    %770 = vmatpush2.msra.mxu0 0.0
    %771 = vmatprep.subr.mxu0 0.0
    %772 = vmatpush2.msra.mxu0 0.0
    %773 = vmatprep.subr.mxu0 0.0
    %774 = vmatpush2.msra.mxu0 0.0
    %775 = vmatprep.subr.mxu0 0.0
    %776 = vmatpush2.msra.mxu0 0.0
    %777 = vmatprep.subr.mxu0 0.0
    %778 = vmatpush2.msra.mxu0 0.0
    %779 = vmatprep.subr.mxu0 0.0
    %780 = vmatpush2.msra.mxu0 0.0
    %781 = vmatprep.subr.mxu0 0.0
    %782 = vmatpush2.msra.mxu0 0.0
    %783 = vmatprep.mubr.f32.mxu0 0.0
    %784 = vmatmul.mubr.f32.gmra.mxu0 %v646
    %v785 = vpop.f32.mrf.mxu0
    %v786 = vadd.f32 %v641, %v785
    %v787 = vpop.f32.mrf.mxu0
    %v788 = vadd.f32 %v643, %v787
    %789 = vdwg.mxu0
    %v790 = vld [vmem:[%s6] sm:$0xff]
    %792 = vset.pattern.permute.xlu0 0
    %793 = vperm.xlu0 %792, %v790
    %v794 = vpop.permute.xlu0 %793
    %v796 = vadd.f32 %v715, %v794
    %v797 = vadd.f32 %v717, %v794
    %v798 = vadd.f32 %v786, %v794
    %v799 = vadd.f32 %v788, %v794
    %v800 = vmax.f32 %v796, 0.0
    %v801 = vmax.f32 %v797, 0.0
    %v802 = vmax.f32 %v798, 0.0
    %v803 = vmax.f32 %v799, 0.0
    %804 = vrot.lane.b32.xlu0 %v800, 1
    %v805 = vpop.permute.xlu0 %804
    %806 = vrot.lane.b32.xlu0 %v801, 1
    %v807 = vpop.permute.xlu0 %806
    %808 = vrot.lane.b32.xlu0 %v802, 1
    %v809 = vpop.permute.xlu0 %808
    %810 = vrot.lane.b32.xlu0 %v803, 1
    %v811 = vpop.permute.xlu0 %810
    %v812 = vsel %vm116, %v809, %v811
    %v813 = vsel %vm116, %v807, %v809
    %v814 = vsel %vm116, %v805, %v807
    %v815 = vsel %vm116, %v811, %v805
    %v816 = vsel %vm125, %v815, 0.0
    %v817 = vsel %vm126, %v814, 0.0
    %v818 = vsel %vm127, %v813, 0.0
    %v819 = vsel %vm128, %v812, 0.0
    %v820 = vld [vmem:[%s7] sm:$0xff]
    %v821 = vld [vmem:[%s8] sm:$0xff]
    %v823 = vsel %vm137, %v821, 0
    %825 = vmatprep.subr.mxu0 0.0
    %826 = vmatpush1.msra.mxu0 0.0
    %827 = vmatprep.subr.mxu0 0.0
    %828 = vmatpush1.msra.mxu0 0.0
    %829 = vmatprep.subr.mxu0 0.0
    %830 = vmatpush1.msra.mxu0 0.0
    %831 = vmatprep.subr.mxu0 0.0
    %832 = vmatpush1.msra.mxu0 0.0
    %833 = vmatprep.subr.mxu0 0.0
    %834 = vmatpush1.msra.mxu0 0.0
    %835 = vmatprep.subr.mxu0 0.0
    %836 = vmatpush1.msra.mxu0 0.0
    %837 = vmatprep.subr.mxu0 0.0
    %838 = vmatpush1.msra.mxu0 0.0
    %839 = vmatprep.subr.mxu0 0.0
    %840 = vmatpush1.msra.mxu0 0.0
    %841 = vmatprep.subr.mxu0 0.0
    %842 = vmatpush1.msra.mxu0 0.0
    %843 = vmatprep.subr.mxu0 0.0
    %844 = vmatpush1.msra.mxu0 0.0
    %845 = vmatprep.subr.mxu0 0.0
    %846 = vmatpush1.msra.mxu0 0.0
    %847 = vmatprep.subr.mxu0 0.0
    %848 = vmatpush1.msra.mxu0 0.0
    %849 = vmatprep.subr.mxu0 0.0
    %850 = vmatpush1.msra.mxu0 0.0
    %851 = vmatprep.subr.mxu0 0.0
    %852 = vmatpush1.msra.mxu0 0.0
    %853 = vmatprep.subr.mxu0 0.0
    %854 = vmatpush1.msra.mxu0 0.0
    %855 = vmatprep.subr.mxu0 %v801
    %856 = vmatpush1.msra.mxu0 %v800
    %857 = vmatprep.subr.mxu0 0.0
    %858 = vmatpush2.msra.mxu0 0.0
    %859 = vmatprep.subr.mxu0 0.0
    %860 = vmatpush2.msra.mxu0 0.0
    %861 = vmatprep.subr.mxu0 0.0
    %862 = vmatpush2.msra.mxu0 0.0
    %863 = vmatprep.subr.mxu0 0.0
    %864 = vmatpush2.msra.mxu0 0.0
    %865 = vmatprep.subr.mxu0 0.0
    %866 = vmatpush2.msra.mxu0 0.0
    %867 = vmatprep.subr.mxu0 0.0
    %868 = vmatpush2.msra.mxu0 0.0
    %869 = vmatprep.subr.mxu0 0.0
    %870 = vmatpush2.msra.mxu0 0.0
    %871 = vmatprep.subr.mxu0 0.0
    %872 = vmatpush2.msra.mxu0 0.0
    %873 = vmatprep.subr.mxu0 0.0
    %874 = vmatpush2.msra.mxu0 0.0
    %875 = vmatprep.subr.mxu0 0.0
    %876 = vmatpush2.msra.mxu0 0.0
    %877 = vmatprep.subr.mxu0 0.0
    %878 = vmatpush2.msra.mxu0 0.0
    %879 = vmatprep.subr.mxu0 0.0
    %880 = vmatpush2.msra.mxu0 0.0
    %881 = vmatprep.subr.mxu0 0.0
    %882 = vmatpush2.msra.mxu0 0.0
    %883 = vmatprep.subr.mxu0 0.0
    %884 = vmatpush2.msra.mxu0 0.0
    %885 = vmatprep.subr.mxu0 0.0
    %886 = vmatpush2.msra.mxu0 0.0
    %887 = vmatprep.subr.mxu0 0.0
    %888 = vmatpush2.msra.mxu0 0.0
    %889 = vmatprep.mubr.f32.mxu0 0.0
    %890 = vmatmul.mubr.f32.gmra.mxu0 %v823
    %v891 = vpop.f32.mrf.mxu0
    %v892 = vadd.f32 0.0, %v891
    %v893 = vpop.f32.mrf.mxu0
    %v894 = vadd.f32 0.0, %v893
    %895 = vdwg.mxu0
    %896 = vmatprep.subr.mxu0 0.0
    %897 = vmatpush1.msra.mxu0 0.0
    %898 = vmatprep.subr.mxu0 0.0
    %899 = vmatpush1.msra.mxu0 0.0
    %900 = vmatprep.subr.mxu0 0.0
    %901 = vmatpush1.msra.mxu0 0.0
    %902 = vmatprep.subr.mxu0 0.0
    %903 = vmatpush1.msra.mxu0 0.0
    %904 = vmatprep.subr.mxu0 0.0
    %905 = vmatpush1.msra.mxu0 0.0
    %906 = vmatprep.subr.mxu0 0.0
    %907 = vmatpush1.msra.mxu0 0.0
    %908 = vmatprep.subr.mxu0 0.0
    %909 = vmatpush1.msra.mxu0 0.0
    %910 = vmatprep.subr.mxu0 0.0
    %911 = vmatpush1.msra.mxu0 0.0
    %912 = vmatprep.subr.mxu0 0.0
    %913 = vmatpush1.msra.mxu0 0.0
    %914 = vmatprep.subr.mxu0 0.0
    %915 = vmatpush1.msra.mxu0 0.0
    %916 = vmatprep.subr.mxu0 0.0
    %917 = vmatpush1.msra.mxu0 0.0
    %918 = vmatprep.subr.mxu0 0.0
    %919 = vmatpush1.msra.mxu0 0.0
    %920 = vmatprep.subr.mxu0 0.0
    %921 = vmatpush1.msra.mxu0 0.0
    %922 = vmatprep.subr.mxu0 0.0
    %923 = vmatpush1.msra.mxu0 0.0
    %924 = vmatprep.subr.mxu0 0.0
    %925 = vmatpush1.msra.mxu0 0.0
    %926 = vmatprep.subr.mxu0 %v803
    %927 = vmatpush1.msra.mxu0 %v802
    %928 = vmatprep.subr.mxu0 0.0
    %929 = vmatpush2.msra.mxu0 0.0
    %930 = vmatprep.subr.mxu0 0.0
    %931 = vmatpush2.msra.mxu0 0.0
    %932 = vmatprep.subr.mxu0 0.0
    %933 = vmatpush2.msra.mxu0 0.0
    %934 = vmatprep.subr.mxu0 0.0
    %935 = vmatpush2.msra.mxu0 0.0
    %936 = vmatprep.subr.mxu0 0.0
    %937 = vmatpush2.msra.mxu0 0.0
    %938 = vmatprep.subr.mxu0 0.0
    %939 = vmatpush2.msra.mxu0 0.0
    %940 = vmatprep.subr.mxu0 0.0
    %941 = vmatpush2.msra.mxu0 0.0
    %942 = vmatprep.subr.mxu0 0.0
    %943 = vmatpush2.msra.mxu0 0.0
    %944 = vmatprep.subr.mxu0 0.0
    %945 = vmatpush2.msra.mxu0 0.0
    %946 = vmatprep.subr.mxu0 0.0
    %947 = vmatpush2.msra.mxu0 0.0
    %948 = vmatprep.subr.mxu0 0.0
    %949 = vmatpush2.msra.mxu0 0.0
    %950 = vmatprep.subr.mxu0 0.0
    %951 = vmatpush2.msra.mxu0 0.0
    %952 = vmatprep.subr.mxu0 0.0
    %953 = vmatpush2.msra.mxu0 0.0
    %954 = vmatprep.subr.mxu0 0.0
    %955 = vmatpush2.msra.mxu0 0.0
    %956 = vmatprep.subr.mxu0 0.0
    %957 = vmatpush2.msra.mxu0 0.0
    %958 = vmatprep.subr.mxu0 0.0
    %959 = vmatpush2.msra.mxu0 0.0
    %960 = vmatprep.mubr.f32.mxu0 0.0
    %961 = vmatmul.mubr.f32.gmra.mxu0 %v823
    %v962 = vpop.f32.mrf.mxu0
    %v963 = vadd.f32 0.0, %v962
    %v964 = vpop.f32.mrf.mxu0
    %v965 = vadd.f32 0.0, %v964
    %966 = vdwg.mxu0
    %v968 = vsel %vm137, %v820, 0
    %970 = vmatprep.subr.mxu0 0.0
    %971 = vmatpush1.msra.mxu0 0.0
    %972 = vmatprep.subr.mxu0 0.0
    %973 = vmatpush1.msra.mxu0 0.0
    %974 = vmatprep.subr.mxu0 0.0
    %975 = vmatpush1.msra.mxu0 0.0
    %976 = vmatprep.subr.mxu0 0.0
    %977 = vmatpush1.msra.mxu0 0.0
    %978 = vmatprep.subr.mxu0 0.0
    %979 = vmatpush1.msra.mxu0 0.0
    %980 = vmatprep.subr.mxu0 0.0
    %981 = vmatpush1.msra.mxu0 0.0
    %982 = vmatprep.subr.mxu0 0.0
    %983 = vmatpush1.msra.mxu0 0.0
    %984 = vmatprep.subr.mxu0 0.0
    %985 = vmatpush1.msra.mxu0 0.0
    %986 = vmatprep.subr.mxu0 0.0
    %987 = vmatpush1.msra.mxu0 0.0
    %988 = vmatprep.subr.mxu0 0.0
    %989 = vmatpush1.msra.mxu0 0.0
    %990 = vmatprep.subr.mxu0 0.0
    %991 = vmatpush1.msra.mxu0 0.0
    %992 = vmatprep.subr.mxu0 0.0
    %993 = vmatpush1.msra.mxu0 0.0
    %994 = vmatprep.subr.mxu0 0.0
    %995 = vmatpush1.msra.mxu0 0.0
    %996 = vmatprep.subr.mxu0 0.0
    %997 = vmatpush1.msra.mxu0 0.0
    %998 = vmatprep.subr.mxu0 0.0
    %999 = vmatpush1.msra.mxu0 0.0
    %1000 = vmatprep.subr.mxu0 %v817
    %1001 = vmatpush1.msra.mxu0 %v816
    %1002 = vmatprep.subr.mxu0 0.0
    %1003 = vmatpush2.msra.mxu0 0.0
    %1004 = vmatprep.subr.mxu0 0.0
    %1005 = vmatpush2.msra.mxu0 0.0
    %1006 = vmatprep.subr.mxu0 0.0
    %1007 = vmatpush2.msra.mxu0 0.0
    %1008 = vmatprep.subr.mxu0 0.0
    %1009 = vmatpush2.msra.mxu0 0.0
    %1010 = vmatprep.subr.mxu0 0.0
    %1011 = vmatpush2.msra.mxu0 0.0
    %1012 = vmatprep.subr.mxu0 0.0
    %1013 = vmatpush2.msra.mxu0 0.0
    %1014 = vmatprep.subr.mxu0 0.0
    %1015 = vmatpush2.msra.mxu0 0.0
    %1016 = vmatprep.subr.mxu0 0.0
    %1017 = vmatpush2.msra.mxu0 0.0
    %1018 = vmatprep.subr.mxu0 0.0
    %1019 = vmatpush2.msra.mxu0 0.0
    %1020 = vmatprep.subr.mxu0 0.0
    %1021 = vmatpush2.msra.mxu0 0.0
    %1022 = vmatprep.subr.mxu0 0.0
    %1023 = vmatpush2.msra.mxu0 0.0
    %1024 = vmatprep.subr.mxu0 0.0
    %1025 = vmatpush2.msra.mxu0 0.0
    %1026 = vmatprep.subr.mxu0 0.0
    %1027 = vmatpush2.msra.mxu0 0.0
    %1028 = vmatprep.subr.mxu0 0.0
    %1029 = vmatpush2.msra.mxu0 0.0
    %1030 = vmatprep.subr.mxu0 0.0
    %1031 = vmatpush2.msra.mxu0 0.0
    %1032 = vmatprep.subr.mxu0 0.0
    %1033 = vmatpush2.msra.mxu0 0.0
    %1034 = vmatprep.mubr.f32.mxu0 0.0
    %1035 = vmatmul.mubr.f32.gmra.mxu0 %v968
    %v1036 = vpop.f32.mrf.mxu0
    %v1037 = vadd.f32 %v892, %v1036
    %v1038 = vpop.f32.mrf.mxu0
    %v1039 = vadd.f32 %v894, %v1038
    %1040 = vdwg.mxu0
    %1041 = vmatprep.subr.mxu0 0.0
    %1042 = vmatpush1.msra.mxu0 0.0
    %1043 = vmatprep.subr.mxu0 0.0
    %1044 = vmatpush1.msra.mxu0 0.0
    %1045 = vmatprep.subr.mxu0 0.0
    %1046 = vmatpush1.msra.mxu0 0.0
    %1047 = vmatprep.subr.mxu0 0.0
    %1048 = vmatpush1.msra.mxu0 0.0
    %1049 = vmatprep.subr.mxu0 0.0
    %1050 = vmatpush1.msra.mxu0 0.0
    %1051 = vmatprep.subr.mxu0 0.0
    %1052 = vmatpush1.msra.mxu0 0.0
    %1053 = vmatprep.subr.mxu0 0.0
    %1054 = vmatpush1.msra.mxu0 0.0
    %1055 = vmatprep.subr.mxu0 0.0
    %1056 = vmatpush1.msra.mxu0 0.0
    %1057 = vmatprep.subr.mxu0 0.0
    %1058 = vmatpush1.msra.mxu0 0.0
    %1059 = vmatprep.subr.mxu0 0.0
    %1060 = vmatpush1.msra.mxu0 0.0
    %1061 = vmatprep.subr.mxu0 0.0
    %1062 = vmatpush1.msra.mxu0 0.0
    %1063 = vmatprep.subr.mxu0 0.0
    %1064 = vmatpush1.msra.mxu0 0.0
    %1065 = vmatprep.subr.mxu0 0.0
    %1066 = vmatpush1.msra.mxu0 0.0
    %1067 = vmatprep.subr.mxu0 0.0
    %1068 = vmatpush1.msra.mxu0 0.0
    %1069 = vmatprep.subr.mxu0 0.0
    %1070 = vmatpush1.msra.mxu0 0.0
    %1071 = vmatprep.subr.mxu0 %v819
    %1072 = vmatpush1.msra.mxu0 %v818
    %1073 = vmatprep.subr.mxu0 0.0
    %1074 = vmatpush2.msra.mxu0 0.0
    %1075 = vmatprep.subr.mxu0 0.0
    %1076 = vmatpush2.msra.mxu0 0.0
    %1077 = vmatprep.subr.mxu0 0.0
    %1078 = vmatpush2.msra.mxu0 0.0
    %1079 = vmatprep.subr.mxu0 0.0
    %1080 = vmatpush2.msra.mxu0 0.0
    %1081 = vmatprep.subr.mxu0 0.0
    %1082 = vmatpush2.msra.mxu0 0.0
    %1083 = vmatprep.subr.mxu0 0.0
    %1084 = vmatpush2.msra.mxu0 0.0
    %1085 = vmatprep.subr.mxu0 0.0
    %1086 = vmatpush2.msra.mxu0 0.0
    %1087 = vmatprep.subr.mxu0 0.0
    %1088 = vmatpush2.msra.mxu0 0.0
    %1089 = vmatprep.subr.mxu0 0.0
    %1090 = vmatpush2.msra.mxu0 0.0
    %1091 = vmatprep.subr.mxu0 0.0
    %1092 = vmatpush2.msra.mxu0 0.0
    %1093 = vmatprep.subr.mxu0 0.0
    %1094 = vmatpush2.msra.mxu0 0.0
    %1095 = vmatprep.subr.mxu0 0.0
    %1096 = vmatpush2.msra.mxu0 0.0
    %1097 = vmatprep.subr.mxu0 0.0
    %1098 = vmatpush2.msra.mxu0 0.0
    %1099 = vmatprep.subr.mxu0 0.0
    %1100 = vmatpush2.msra.mxu0 0.0
    %1101 = vmatprep.subr.mxu0 0.0
    %1102 = vmatpush2.msra.mxu0 0.0
    %1103 = vmatprep.subr.mxu0 0.0
    %1104 = vmatpush2.msra.mxu0 0.0
    %1105 = vmatprep.mubr.f32.mxu0 0.0
    %1106 = vmatmul.mubr.f32.gmra.mxu0 %v968
    %v1107 = vpop.f32.mrf.mxu0
    %v1108 = vadd.f32 %v963, %v1107
    %v1109 = vpop.f32.mrf.mxu0
    %v1110 = vadd.f32 %v965, %v1109
    %1111 = vdwg.mxu0
    %v1112 = vld [vmem:[%s9] sm:$0xff]
    %1114 = vset.pattern.permute.xlu0 0
    %1115 = vperm.xlu0 %1114, %v1112
    %v1116 = vpop.permute.xlu0 %1115
    %v1118 = vadd.f32 %v1037, %v1116
    %v1119 = vadd.f32 %v1039, %v1116
    %v1120 = vadd.f32 %v1108, %v1116
    %v1121 = vadd.f32 %v1110, %v1116
    %v1122 = vmax.f32 %v1118, 0.0
    %v1123 = vmax.f32 %v1119, 0.0
    %v1124 = vmax.f32 %v1120, 0.0
    %v1125 = vmax.f32 %v1121, 0.0
    %v1126 = vadd.f32 %v1122, %v474
    %v1127 = vadd.f32 %v1123, %v475
    %v1128 = vadd.f32 %v1124, %v476
    %v1129 = vadd.f32 %v1125, %v477
    %v1130 = vmax.f32 %v1126, 0.0
    %v1131 = vmax.f32 %v1127, 0.0
    %v1132 = vmax.f32 %v1128, 0.0
    %v1133 = vmax.f32 %v1129, 0.0
    %1134 = vrot.lane.b32.xlu0 %v1130, 2
    %v1135 = vpop.permute.xlu0 %1134
    %1136 = vrot.lane.b32.xlu0 %v1131, 2
    %v1137 = vpop.permute.xlu0 %1136
    %1138 = vrot.lane.b32.xlu0 %v1132, 2
    %v1139 = vpop.permute.xlu0 %1138
    %1140 = vrot.lane.b32.xlu0 %v1133, 2
    %v1141 = vpop.permute.xlu0 %1140
    %vm1142 = vcmp.lt.s32.totalorder %v64, 2
    %v1143 = vsel %vm1142, %v1139, %v1141
    %v1144 = vsel %vm1142, %v1137, %v1139
    %v1145 = vsel %vm1142, %v1135, %v1137
    %v1146 = vsel %vm1142, %v1141, %v1135
    %v1147 = vsel %vm100, 1, 0
    %v1148 = vsel %vm101, 1, 0
    %v1149 = vsel %vm102, 1, 0
    %v1150 = vsel %vm103, 1, 0
    %vm1151 = vcmp.eq.s32.totalorder %v1147, 1
    %vm1152 = vcmp.eq.s32.totalorder %v1148, 1
    %vm1153 = vcmp.eq.s32.totalorder %v1149, 1
    %vm1154 = vcmp.eq.s32.totalorder %v1150, 1
    %v1155 = vsel %vm1151, %v1146, 0.0
    %v1156 = vsel %vm1152, %v1145, 0.0
    %v1157 = vsel %vm1153, %v1144, 0.0
    %v1158 = vsel %vm1154, %v1143, 0.0
    %v1159 = vld [vmem:[%s10] sm:$0xff]
    %v1160 = vld [vmem:[%s11] sm:$0xff]
    %v1162 = vsel %vm137, %v1160, 0
    %1164 = vmatprep.subr.mxu0 0.0
    %1165 = vmatpush1.msra.mxu0 0.0
    %1166 = vmatprep.subr.mxu0 0.0
    %1167 = vmatpush1.msra.mxu0 0.0
    %1168 = vmatprep.subr.mxu0 0.0
    %1169 = vmatpush1.msra.mxu0 0.0
    %1170 = vmatprep.subr.mxu0 0.0
    %1171 = vmatpush1.msra.mxu0 0.0
    %1172 = vmatprep.subr.mxu0 0.0
    %1173 = vmatpush1.msra.mxu0 0.0
    %1174 = vmatprep.subr.mxu0 0.0
    %1175 = vmatpush1.msra.mxu0 0.0
    %1176 = vmatprep.subr.mxu0 0.0
    %1177 = vmatpush1.msra.mxu0 0.0
    %1178 = vmatprep.subr.mxu0 0.0
    %1179 = vmatpush1.msra.mxu0 0.0
    %1180 = vmatprep.subr.mxu0 0.0
    %1181 = vmatpush1.msra.mxu0 0.0
    %1182 = vmatprep.subr.mxu0 0.0
    %1183 = vmatpush1.msra.mxu0 0.0
    %1184 = vmatprep.subr.mxu0 0.0
    %1185 = vmatpush1.msra.mxu0 0.0
    %1186 = vmatprep.subr.mxu0 0.0
    %1187 = vmatpush1.msra.mxu0 0.0
    %1188 = vmatprep.subr.mxu0 0.0
    %1189 = vmatpush1.msra.mxu0 0.0
    %1190 = vmatprep.subr.mxu0 0.0
    %1191 = vmatpush1.msra.mxu0 0.0
    %1192 = vmatprep.subr.mxu0 0.0
    %1193 = vmatpush1.msra.mxu0 0.0
    %1194 = vmatprep.subr.mxu0 %v1131
    %1195 = vmatpush1.msra.mxu0 %v1130
    %1196 = vmatprep.subr.mxu0 0.0
    %1197 = vmatpush2.msra.mxu0 0.0
    %1198 = vmatprep.subr.mxu0 0.0
    %1199 = vmatpush2.msra.mxu0 0.0
    %1200 = vmatprep.subr.mxu0 0.0
    %1201 = vmatpush2.msra.mxu0 0.0
    %1202 = vmatprep.subr.mxu0 0.0
    %1203 = vmatpush2.msra.mxu0 0.0
    %1204 = vmatprep.subr.mxu0 0.0
    %1205 = vmatpush2.msra.mxu0 0.0
    %1206 = vmatprep.subr.mxu0 0.0
    %1207 = vmatpush2.msra.mxu0 0.0
    %1208 = vmatprep.subr.mxu0 0.0
    %1209 = vmatpush2.msra.mxu0 0.0
    %1210 = vmatprep.subr.mxu0 0.0
    %1211 = vmatpush2.msra.mxu0 0.0
    %1212 = vmatprep.subr.mxu0 0.0
    %1213 = vmatpush2.msra.mxu0 0.0
    %1214 = vmatprep.subr.mxu0 0.0
    %1215 = vmatpush2.msra.mxu0 0.0
    %1216 = vmatprep.subr.mxu0 0.0
    %1217 = vmatpush2.msra.mxu0 0.0
    %1218 = vmatprep.subr.mxu0 0.0
    %1219 = vmatpush2.msra.mxu0 0.0
    %1220 = vmatprep.subr.mxu0 0.0
    %1221 = vmatpush2.msra.mxu0 0.0
    %1222 = vmatprep.subr.mxu0 0.0
    %1223 = vmatpush2.msra.mxu0 0.0
    %1224 = vmatprep.subr.mxu0 0.0
    %1225 = vmatpush2.msra.mxu0 0.0
    %1226 = vmatprep.subr.mxu0 0.0
    %1227 = vmatpush2.msra.mxu0 0.0
    %1228 = vmatprep.mubr.f32.mxu0 0.0
    %1229 = vmatmul.mubr.f32.gmra.mxu0 %v1162
    %v1230 = vpop.f32.mrf.mxu0
    %v1231 = vadd.f32 0.0, %v1230
    %v1232 = vpop.f32.mrf.mxu0
    %v1233 = vadd.f32 0.0, %v1232
    %1234 = vdwg.mxu0
    %1235 = vmatprep.subr.mxu0 0.0
    %1236 = vmatpush1.msra.mxu0 0.0
    %1237 = vmatprep.subr.mxu0 0.0
    %1238 = vmatpush1.msra.mxu0 0.0
    %1239 = vmatprep.subr.mxu0 0.0
    %1240 = vmatpush1.msra.mxu0 0.0
    %1241 = vmatprep.subr.mxu0 0.0
    %1242 = vmatpush1.msra.mxu0 0.0
    %1243 = vmatprep.subr.mxu0 0.0
    %1244 = vmatpush1.msra.mxu0 0.0
    %1245 = vmatprep.subr.mxu0 0.0
    %1246 = vmatpush1.msra.mxu0 0.0
    %1247 = vmatprep.subr.mxu0 0.0
    %1248 = vmatpush1.msra.mxu0 0.0
    %1249 = vmatprep.subr.mxu0 0.0
    %1250 = vmatpush1.msra.mxu0 0.0
    %1251 = vmatprep.subr.mxu0 0.0
    %1252 = vmatpush1.msra.mxu0 0.0
    %1253 = vmatprep.subr.mxu0 0.0
    %1254 = vmatpush1.msra.mxu0 0.0
    %1255 = vmatprep.subr.mxu0 0.0
    %1256 = vmatpush1.msra.mxu0 0.0
    %1257 = vmatprep.subr.mxu0 0.0
    %1258 = vmatpush1.msra.mxu0 0.0
    %1259 = vmatprep.subr.mxu0 0.0
    %1260 = vmatpush1.msra.mxu0 0.0
    %1261 = vmatprep.subr.mxu0 0.0
    %1262 = vmatpush1.msra.mxu0 0.0
    %1263 = vmatprep.subr.mxu0 0.0
    %1264 = vmatpush1.msra.mxu0 0.0
    %1265 = vmatprep.subr.mxu0 %v1133
    %1266 = vmatpush1.msra.mxu0 %v1132
    %1267 = vmatprep.subr.mxu0 0.0
    %1268 = vmatpush2.msra.mxu0 0.0
    %1269 = vmatprep.subr.mxu0 0.0
    %1270 = vmatpush2.msra.mxu0 0.0
    %1271 = vmatprep.subr.mxu0 0.0
    %1272 = vmatpush2.msra.mxu0 0.0
    %1273 = vmatprep.subr.mxu0 0.0
    %1274 = vmatpush2.msra.mxu0 0.0
    %1275 = vmatprep.subr.mxu0 0.0
    %1276 = vmatpush2.msra.mxu0 0.0
    %1277 = vmatprep.subr.mxu0 0.0
    %1278 = vmatpush2.msra.mxu0 0.0
    %1279 = vmatprep.subr.mxu0 0.0
    %1280 = vmatpush2.msra.mxu0 0.0
    %1281 = vmatprep.subr.mxu0 0.0
    %1282 = vmatpush2.msra.mxu0 0.0
    %1283 = vmatprep.subr.mxu0 0.0
    %1284 = vmatpush2.msra.mxu0 0.0
    %1285 = vmatprep.subr.mxu0 0.0
    %1286 = vmatpush2.msra.mxu0 0.0
    %1287 = vmatprep.subr.mxu0 0.0
    %1288 = vmatpush2.msra.mxu0 0.0
    %1289 = vmatprep.subr.mxu0 0.0
    %1290 = vmatpush2.msra.mxu0 0.0
    %1291 = vmatprep.subr.mxu0 0.0
    %1292 = vmatpush2.msra.mxu0 0.0
    %1293 = vmatprep.subr.mxu0 0.0
    %1294 = vmatpush2.msra.mxu0 0.0
    %1295 = vmatprep.subr.mxu0 0.0
    %1296 = vmatpush2.msra.mxu0 0.0
    %1297 = vmatprep.subr.mxu0 0.0
    %1298 = vmatpush2.msra.mxu0 0.0
    %1299 = vmatprep.mubr.f32.mxu0 0.0
    %1300 = vmatmul.mubr.f32.gmra.mxu0 %v1162
    %v1301 = vpop.f32.mrf.mxu0
    %v1302 = vadd.f32 0.0, %v1301
    %v1303 = vpop.f32.mrf.mxu0
    %v1304 = vadd.f32 0.0, %v1303
    %1305 = vdwg.mxu0
    %v1307 = vsel %vm137, %v1159, 0
    %1309 = vmatprep.subr.mxu0 0.0
    %1310 = vmatpush1.msra.mxu0 0.0
    %1311 = vmatprep.subr.mxu0 0.0
    %1312 = vmatpush1.msra.mxu0 0.0
    %1313 = vmatprep.subr.mxu0 0.0
    %1314 = vmatpush1.msra.mxu0 0.0
    %1315 = vmatprep.subr.mxu0 0.0
    %1316 = vmatpush1.msra.mxu0 0.0
    %1317 = vmatprep.subr.mxu0 0.0
    %1318 = vmatpush1.msra.mxu0 0.0
    %1319 = vmatprep.subr.mxu0 0.0
    %1320 = vmatpush1.msra.mxu0 0.0
    %1321 = vmatprep.subr.mxu0 0.0
    %1322 = vmatpush1.msra.mxu0 0.0
    %1323 = vmatprep.subr.mxu0 0.0
    %1324 = vmatpush1.msra.mxu0 0.0
    %1325 = vmatprep.subr.mxu0 0.0
    %1326 = vmatpush1.msra.mxu0 0.0
    %1327 = vmatprep.subr.mxu0 0.0
    %1328 = vmatpush1.msra.mxu0 0.0
    %1329 = vmatprep.subr.mxu0 0.0
    %1330 = vmatpush1.msra.mxu0 0.0
    %1331 = vmatprep.subr.mxu0 0.0
    %1332 = vmatpush1.msra.mxu0 0.0
    %1333 = vmatprep.subr.mxu0 0.0
    %1334 = vmatpush1.msra.mxu0 0.0
    %1335 = vmatprep.subr.mxu0 0.0
    %1336 = vmatpush1.msra.mxu0 0.0
    %1337 = vmatprep.subr.mxu0 0.0
    %1338 = vmatpush1.msra.mxu0 0.0
    %1339 = vmatprep.subr.mxu0 %v1156
    %1340 = vmatpush1.msra.mxu0 %v1155
    %1341 = vmatprep.subr.mxu0 0.0
    %1342 = vmatpush2.msra.mxu0 0.0
    %1343 = vmatprep.subr.mxu0 0.0
    %1344 = vmatpush2.msra.mxu0 0.0
    %1345 = vmatprep.subr.mxu0 0.0
    %1346 = vmatpush2.msra.mxu0 0.0
    %1347 = vmatprep.subr.mxu0 0.0
    %1348 = vmatpush2.msra.mxu0 0.0
    %1349 = vmatprep.subr.mxu0 0.0
    %1350 = vmatpush2.msra.mxu0 0.0
    %1351 = vmatprep.subr.mxu0 0.0
    %1352 = vmatpush2.msra.mxu0 0.0
    %1353 = vmatprep.subr.mxu0 0.0
    %1354 = vmatpush2.msra.mxu0 0.0
    %1355 = vmatprep.subr.mxu0 0.0
    %1356 = vmatpush2.msra.mxu0 0.0
    %1357 = vmatprep.subr.mxu0 0.0
    %1358 = vmatpush2.msra.mxu0 0.0
    %1359 = vmatprep.subr.mxu0 0.0
    %1360 = vmatpush2.msra.mxu0 0.0
    %1361 = vmatprep.subr.mxu0 0.0
    %1362 = vmatpush2.msra.mxu0 0.0
    %1363 = vmatprep.subr.mxu0 0.0
    %1364 = vmatpush2.msra.mxu0 0.0
    %1365 = vmatprep.subr.mxu0 0.0
    %1366 = vmatpush2.msra.mxu0 0.0
    %1367 = vmatprep.subr.mxu0 0.0
    %1368 = vmatpush2.msra.mxu0 0.0
    %1369 = vmatprep.subr.mxu0 0.0
    %1370 = vmatpush2.msra.mxu0 0.0
    %1371 = vmatprep.subr.mxu0 0.0
    %1372 = vmatpush2.msra.mxu0 0.0
    %1373 = vmatprep.mubr.f32.mxu0 0.0
    %1374 = vmatmul.mubr.f32.gmra.mxu0 %v1307
    %v1375 = vpop.f32.mrf.mxu0
    %v1376 = vadd.f32 %v1231, %v1375
    %v1377 = vpop.f32.mrf.mxu0
    %v1378 = vadd.f32 %v1233, %v1377
    %1379 = vdwg.mxu0
    %1380 = vmatprep.subr.mxu0 0.0
    %1381 = vmatpush1.msra.mxu0 0.0
    %1382 = vmatprep.subr.mxu0 0.0
    %1383 = vmatpush1.msra.mxu0 0.0
    %1384 = vmatprep.subr.mxu0 0.0
    %1385 = vmatpush1.msra.mxu0 0.0
    %1386 = vmatprep.subr.mxu0 0.0
    %1387 = vmatpush1.msra.mxu0 0.0
    %1388 = vmatprep.subr.mxu0 0.0
    %1389 = vmatpush1.msra.mxu0 0.0
    %1390 = vmatprep.subr.mxu0 0.0
    %1391 = vmatpush1.msra.mxu0 0.0
    %1392 = vmatprep.subr.mxu0 0.0
    %1393 = vmatpush1.msra.mxu0 0.0
    %1394 = vmatprep.subr.mxu0 0.0
    %1395 = vmatpush1.msra.mxu0 0.0
    %1396 = vmatprep.subr.mxu0 0.0
    %1397 = vmatpush1.msra.mxu0 0.0
    %1398 = vmatprep.subr.mxu0 0.0
    %1399 = vmatpush1.msra.mxu0 0.0
    %1400 = vmatprep.subr.mxu0 0.0
    %1401 = vmatpush1.msra.mxu0 0.0
    %1402 = vmatprep.subr.mxu0 0.0
    %1403 = vmatpush1.msra.mxu0 0.0
    %1404 = vmatprep.subr.mxu0 0.0
    %1405 = vmatpush1.msra.mxu0 0.0
    %1406 = vmatprep.subr.mxu0 0.0
    %1407 = vmatpush1.msra.mxu0 0.0
    %1408 = vmatprep.subr.mxu0 0.0
    %1409 = vmatpush1.msra.mxu0 0.0
    %1410 = vmatprep.subr.mxu0 %v1158
    %1411 = vmatpush1.msra.mxu0 %v1157
    %1412 = vmatprep.subr.mxu0 0.0
    %1413 = vmatpush2.msra.mxu0 0.0
    %1414 = vmatprep.subr.mxu0 0.0
    %1415 = vmatpush2.msra.mxu0 0.0
    %1416 = vmatprep.subr.mxu0 0.0
    %1417 = vmatpush2.msra.mxu0 0.0
    %1418 = vmatprep.subr.mxu0 0.0
    %1419 = vmatpush2.msra.mxu0 0.0
    %1420 = vmatprep.subr.mxu0 0.0
    %1421 = vmatpush2.msra.mxu0 0.0
    %1422 = vmatprep.subr.mxu0 0.0
    %1423 = vmatpush2.msra.mxu0 0.0
    %1424 = vmatprep.subr.mxu0 0.0
    %1425 = vmatpush2.msra.mxu0 0.0
    %1426 = vmatprep.subr.mxu0 0.0
    %1427 = vmatpush2.msra.mxu0 0.0
    %1428 = vmatprep.subr.mxu0 0.0
    %1429 = vmatpush2.msra.mxu0 0.0
    %1430 = vmatprep.subr.mxu0 0.0
    %1431 = vmatpush2.msra.mxu0 0.0
    %1432 = vmatprep.subr.mxu0 0.0
    %1433 = vmatpush2.msra.mxu0 0.0
    %1434 = vmatprep.subr.mxu0 0.0
    %1435 = vmatpush2.msra.mxu0 0.0
    %1436 = vmatprep.subr.mxu0 0.0
    %1437 = vmatpush2.msra.mxu0 0.0
    %1438 = vmatprep.subr.mxu0 0.0
    %1439 = vmatpush2.msra.mxu0 0.0
    %1440 = vmatprep.subr.mxu0 0.0
    %1441 = vmatpush2.msra.mxu0 0.0
    %1442 = vmatprep.subr.mxu0 0.0
    %1443 = vmatpush2.msra.mxu0 0.0
    %1444 = vmatprep.mubr.f32.mxu0 0.0
    %1445 = vmatmul.mubr.f32.gmra.mxu0 %v1307
    %v1446 = vpop.f32.mrf.mxu0
    %v1447 = vadd.f32 %v1302, %v1446
    %v1448 = vpop.f32.mrf.mxu0
    %v1449 = vadd.f32 %v1304, %v1448
    %1450 = vdwg.mxu0
    %v1451 = vld [vmem:[%s12] sm:$0xff]
    %1453 = vset.pattern.permute.xlu0 0
    %1454 = vperm.xlu0 %1453, %v1451
    %v1455 = vpop.permute.xlu0 %1454
    %v1457 = vadd.f32 %v1376, %v1455
    %v1458 = vadd.f32 %v1378, %v1455
    %v1459 = vadd.f32 %v1447, %v1455
    %v1460 = vadd.f32 %v1449, %v1455
    %v1461 = vmax.f32 %v1457, 0.0
    %v1462 = vmax.f32 %v1458, 0.0
    %v1463 = vmax.f32 %v1459, 0.0
    %v1464 = vmax.f32 %v1460, 0.0
    %1465 = vrot.lane.b32.xlu0 %v1461, 2
    %v1466 = vpop.permute.xlu0 %1465
    %1467 = vrot.lane.b32.xlu0 %v1462, 2
    %v1468 = vpop.permute.xlu0 %1467
    %1469 = vrot.lane.b32.xlu0 %v1463, 2
    %v1470 = vpop.permute.xlu0 %1469
    %1471 = vrot.lane.b32.xlu0 %v1464, 2
    %v1472 = vpop.permute.xlu0 %1471
    %v1473 = vsel %vm1142, %v1470, %v1472
    %v1474 = vsel %vm1142, %v1468, %v1470
    %v1475 = vsel %vm1142, %v1466, %v1468
    %v1476 = vsel %vm1142, %v1472, %v1466
    %v1477 = vsel %vm1151, %v1476, 0.0
    %v1478 = vsel %vm1152, %v1475, 0.0
    %v1479 = vsel %vm1153, %v1474, 0.0
    %v1480 = vsel %vm1154, %v1473, 0.0
    %v1481 = vld [vmem:[%s13] sm:$0xff]
    %v1482 = vld [vmem:[%s14] sm:$0xff]
    %v1484 = vsel %vm137, %v1482, 0
    %1486 = vmatprep.subr.mxu0 0.0
    %1487 = vmatpush1.msra.mxu0 0.0
    %1488 = vmatprep.subr.mxu0 0.0
    %1489 = vmatpush1.msra.mxu0 0.0
    %1490 = vmatprep.subr.mxu0 0.0
    %1491 = vmatpush1.msra.mxu0 0.0
    %1492 = vmatprep.subr.mxu0 0.0
    %1493 = vmatpush1.msra.mxu0 0.0
    %1494 = vmatprep.subr.mxu0 0.0
    %1495 = vmatpush1.msra.mxu0 0.0
    %1496 = vmatprep.subr.mxu0 0.0
    %1497 = vmatpush1.msra.mxu0 0.0
    %1498 = vmatprep.subr.mxu0 0.0
    %1499 = vmatpush1.msra.mxu0 0.0
    %1500 = vmatprep.subr.mxu0 0.0
    %1501 = vmatpush1.msra.mxu0 0.0
    %1502 = vmatprep.subr.mxu0 0.0
    %1503 = vmatpush1.msra.mxu0 0.0
    %1504 = vmatprep.subr.mxu0 0.0
    %1505 = vmatpush1.msra.mxu0 0.0
    %1506 = vmatprep.subr.mxu0 0.0
    %1507 = vmatpush1.msra.mxu0 0.0
    %1508 = vmatprep.subr.mxu0 0.0
    %1509 = vmatpush1.msra.mxu0 0.0
    %1510 = vmatprep.subr.mxu0 0.0
    %1511 = vmatpush1.msra.mxu0 0.0
    %1512 = vmatprep.subr.mxu0 0.0
    %1513 = vmatpush1.msra.mxu0 0.0
    %1514 = vmatprep.subr.mxu0 0.0
    %1515 = vmatpush1.msra.mxu0 0.0
    %1516 = vmatprep.subr.mxu0 %v1462
    %1517 = vmatpush1.msra.mxu0 %v1461
    %1518 = vmatprep.subr.mxu0 0.0
    %1519 = vmatpush2.msra.mxu0 0.0
    %1520 = vmatprep.subr.mxu0 0.0
    %1521 = vmatpush2.msra.mxu0 0.0
    %1522 = vmatprep.subr.mxu0 0.0
    %1523 = vmatpush2.msra.mxu0 0.0
    %1524 = vmatprep.subr.mxu0 0.0
    %1525 = vmatpush2.msra.mxu0 0.0
    %1526 = vmatprep.subr.mxu0 0.0
    %1527 = vmatpush2.msra.mxu0 0.0
    %1528 = vmatprep.subr.mxu0 0.0
    %1529 = vmatpush2.msra.mxu0 0.0
    %1530 = vmatprep.subr.mxu0 0.0
    %1531 = vmatpush2.msra.mxu0 0.0
    %1532 = vmatprep.subr.mxu0 0.0
    %1533 = vmatpush2.msra.mxu0 0.0
    %1534 = vmatprep.subr.mxu0 0.0
    %1535 = vmatpush2.msra.mxu0 0.0
    %1536 = vmatprep.subr.mxu0 0.0
    %1537 = vmatpush2.msra.mxu0 0.0
    %1538 = vmatprep.subr.mxu0 0.0
    %1539 = vmatpush2.msra.mxu0 0.0
    %1540 = vmatprep.subr.mxu0 0.0
    %1541 = vmatpush2.msra.mxu0 0.0
    %1542 = vmatprep.subr.mxu0 0.0
    %1543 = vmatpush2.msra.mxu0 0.0
    %1544 = vmatprep.subr.mxu0 0.0
    %1545 = vmatpush2.msra.mxu0 0.0
    %1546 = vmatprep.subr.mxu0 0.0
    %1547 = vmatpush2.msra.mxu0 0.0
    %1548 = vmatprep.subr.mxu0 0.0
    %1549 = vmatpush2.msra.mxu0 0.0
    %1550 = vmatprep.mubr.f32.mxu0 0.0
    %1551 = vmatmul.mubr.f32.gmra.mxu0 %v1484
    %v1552 = vpop.f32.mrf.mxu0
    %v1553 = vadd.f32 0.0, %v1552
    %v1554 = vpop.f32.mrf.mxu0
    %v1555 = vadd.f32 0.0, %v1554
    %1556 = vdwg.mxu0
    %1557 = vmatprep.subr.mxu0 0.0
    %1558 = vmatpush1.msra.mxu0 0.0
    %1559 = vmatprep.subr.mxu0 0.0
    %1560 = vmatpush1.msra.mxu0 0.0
    %1561 = vmatprep.subr.mxu0 0.0
    %1562 = vmatpush1.msra.mxu0 0.0
    %1563 = vmatprep.subr.mxu0 0.0
    %1564 = vmatpush1.msra.mxu0 0.0
    %1565 = vmatprep.subr.mxu0 0.0
    %1566 = vmatpush1.msra.mxu0 0.0
    %1567 = vmatprep.subr.mxu0 0.0
    %1568 = vmatpush1.msra.mxu0 0.0
    %1569 = vmatprep.subr.mxu0 0.0
    %1570 = vmatpush1.msra.mxu0 0.0
    %1571 = vmatprep.subr.mxu0 0.0
    %1572 = vmatpush1.msra.mxu0 0.0
    %1573 = vmatprep.subr.mxu0 0.0
    %1574 = vmatpush1.msra.mxu0 0.0
    %1575 = vmatprep.subr.mxu0 0.0
    %1576 = vmatpush1.msra.mxu0 0.0
    %1577 = vmatprep.subr.mxu0 0.0
    %1578 = vmatpush1.msra.mxu0 0.0
    %1579 = vmatprep.subr.mxu0 0.0
    %1580 = vmatpush1.msra.mxu0 0.0
    %1581 = vmatprep.subr.mxu0 0.0
    %1582 = vmatpush1.msra.mxu0 0.0
    %1583 = vmatprep.subr.mxu0 0.0
    %1584 = vmatpush1.msra.mxu0 0.0
    %1585 = vmatprep.subr.mxu0 0.0
    %1586 = vmatpush1.msra.mxu0 0.0
    %1587 = vmatprep.subr.mxu0 %v1464
    %1588 = vmatpush1.msra.mxu0 %v1463
    %1589 = vmatprep.subr.mxu0 0.0
    %1590 = vmatpush2.msra.mxu0 0.0
    %1591 = vmatprep.subr.mxu0 0.0
    %1592 = vmatpush2.msra.mxu0 0.0
    %1593 = vmatprep.subr.mxu0 0.0
    %1594 = vmatpush2.msra.mxu0 0.0
    %1595 = vmatprep.subr.mxu0 0.0
    %1596 = vmatpush2.msra.mxu0 0.0
    %1597 = vmatprep.subr.mxu0 0.0
    %1598 = vmatpush2.msra.mxu0 0.0
    %1599 = vmatprep.subr.mxu0 0.0
    %1600 = vmatpush2.msra.mxu0 0.0
    %1601 = vmatprep.subr.mxu0 0.0
    %1602 = vmatpush2.msra.mxu0 0.0
    %1603 = vmatprep.subr.mxu0 0.0
    %1604 = vmatpush2.msra.mxu0 0.0
    %1605 = vmatprep.subr.mxu0 0.0
    %1606 = vmatpush2.msra.mxu0 0.0
    %1607 = vmatprep.subr.mxu0 0.0
    %1608 = vmatpush2.msra.mxu0 0.0
    %1609 = vmatprep.subr.mxu0 0.0
    %1610 = vmatpush2.msra.mxu0 0.0
    %1611 = vmatprep.subr.mxu0 0.0
    %1612 = vmatpush2.msra.mxu0 0.0
    %1613 = vmatprep.subr.mxu0 0.0
    %1614 = vmatpush2.msra.mxu0 0.0
    %1615 = vmatprep.subr.mxu0 0.0
    %1616 = vmatpush2.msra.mxu0 0.0
    %1617 = vmatprep.subr.mxu0 0.0
    %1618 = vmatpush2.msra.mxu0 0.0
    %1619 = vmatprep.subr.mxu0 0.0
    %1620 = vmatpush2.msra.mxu0 0.0
    %1621 = vmatprep.mubr.f32.mxu0 0.0
    %1622 = vmatmul.mubr.f32.gmra.mxu0 %v1484
    %v1623 = vpop.f32.mrf.mxu0
    %v1624 = vadd.f32 0.0, %v1623
    %v1625 = vpop.f32.mrf.mxu0
    %v1626 = vadd.f32 0.0, %v1625
    %1627 = vdwg.mxu0
    %v1629 = vsel %vm137, %v1481, 0
    %1631 = vmatprep.subr.mxu0 0.0
    %1632 = vmatpush1.msra.mxu0 0.0
    %1633 = vmatprep.subr.mxu0 0.0
    %1634 = vmatpush1.msra.mxu0 0.0
    %1635 = vmatprep.subr.mxu0 0.0
    %1636 = vmatpush1.msra.mxu0 0.0
    %1637 = vmatprep.subr.mxu0 0.0
    %1638 = vmatpush1.msra.mxu0 0.0
    %1639 = vmatprep.subr.mxu0 0.0
    %1640 = vmatpush1.msra.mxu0 0.0
    %1641 = vmatprep.subr.mxu0 0.0
    %1642 = vmatpush1.msra.mxu0 0.0
    %1643 = vmatprep.subr.mxu0 0.0
    %1644 = vmatpush1.msra.mxu0 0.0
    %1645 = vmatprep.subr.mxu0 0.0
    %1646 = vmatpush1.msra.mxu0 0.0
    %1647 = vmatprep.subr.mxu0 0.0
    %1648 = vmatpush1.msra.mxu0 0.0
    %1649 = vmatprep.subr.mxu0 0.0
    %1650 = vmatpush1.msra.mxu0 0.0
    %1651 = vmatprep.subr.mxu0 0.0
    %1652 = vmatpush1.msra.mxu0 0.0
    %1653 = vmatprep.subr.mxu0 0.0
    %1654 = vmatpush1.msra.mxu0 0.0
    %1655 = vmatprep.subr.mxu0 0.0
    %1656 = vmatpush1.msra.mxu0 0.0
    %1657 = vmatprep.subr.mxu0 0.0
    %1658 = vmatpush1.msra.mxu0 0.0
    %1659 = vmatprep.subr.mxu0 0.0
    %1660 = vmatpush1.msra.mxu0 0.0
    %1661 = vmatprep.subr.mxu0 %v1478
    %1662 = vmatpush1.msra.mxu0 %v1477
    %1663 = vmatprep.subr.mxu0 0.0
    %1664 = vmatpush2.msra.mxu0 0.0
    %1665 = vmatprep.subr.mxu0 0.0
    %1666 = vmatpush2.msra.mxu0 0.0
    %1667 = vmatprep.subr.mxu0 0.0
    %1668 = vmatpush2.msra.mxu0 0.0
    %1669 = vmatprep.subr.mxu0 0.0
    %1670 = vmatpush2.msra.mxu0 0.0
    %1671 = vmatprep.subr.mxu0 0.0
    %1672 = vmatpush2.msra.mxu0 0.0
    %1673 = vmatprep.subr.mxu0 0.0
    %1674 = vmatpush2.msra.mxu0 0.0
    %1675 = vmatprep.subr.mxu0 0.0
    %1676 = vmatpush2.msra.mxu0 0.0
    %1677 = vmatprep.subr.mxu0 0.0
    %1678 = vmatpush2.msra.mxu0 0.0
    %1679 = vmatprep.subr.mxu0 0.0
    %1680 = vmatpush2.msra.mxu0 0.0
    %1681 = vmatprep.subr.mxu0 0.0
    %1682 = vmatpush2.msra.mxu0 0.0
    %1683 = vmatprep.subr.mxu0 0.0
    %1684 = vmatpush2.msra.mxu0 0.0
    %1685 = vmatprep.subr.mxu0 0.0
    %1686 = vmatpush2.msra.mxu0 0.0
    %1687 = vmatprep.subr.mxu0 0.0
    %1688 = vmatpush2.msra.mxu0 0.0
    %1689 = vmatprep.subr.mxu0 0.0
    %1690 = vmatpush2.msra.mxu0 0.0
    %1691 = vmatprep.subr.mxu0 0.0
    %1692 = vmatpush2.msra.mxu0 0.0
    %1693 = vmatprep.subr.mxu0 0.0
    %1694 = vmatpush2.msra.mxu0 0.0
    %1695 = vmatprep.mubr.f32.mxu0 0.0
    %1696 = vmatmul.mubr.f32.gmra.mxu0 %v1629
    %v1697 = vpop.f32.mrf.mxu0
    %v1698 = vadd.f32 %v1553, %v1697
    %v1699 = vpop.f32.mrf.mxu0
    %v1700 = vadd.f32 %v1555, %v1699
    %1701 = vdwg.mxu0
    %1702 = vmatprep.subr.mxu0 0.0
    %1703 = vmatpush1.msra.mxu0 0.0
    %1704 = vmatprep.subr.mxu0 0.0
    %1705 = vmatpush1.msra.mxu0 0.0
    %1706 = vmatprep.subr.mxu0 0.0
    %1707 = vmatpush1.msra.mxu0 0.0
    %1708 = vmatprep.subr.mxu0 0.0
    %1709 = vmatpush1.msra.mxu0 0.0
    %1710 = vmatprep.subr.mxu0 0.0
    %1711 = vmatpush1.msra.mxu0 0.0
    %1712 = vmatprep.subr.mxu0 0.0
    %1713 = vmatpush1.msra.mxu0 0.0
    %1714 = vmatprep.subr.mxu0 0.0
    %1715 = vmatpush1.msra.mxu0 0.0
    %1716 = vmatprep.subr.mxu0 0.0
    %1717 = vmatpush1.msra.mxu0 0.0
    %1718 = vmatprep.subr.mxu0 0.0
    %1719 = vmatpush1.msra.mxu0 0.0
    %1720 = vmatprep.subr.mxu0 0.0
    %1721 = vmatpush1.msra.mxu0 0.0
    %1722 = vmatprep.subr.mxu0 0.0
    %1723 = vmatpush1.msra.mxu0 0.0
    %1724 = vmatprep.subr.mxu0 0.0
    %1725 = vmatpush1.msra.mxu0 0.0
    %1726 = vmatprep.subr.mxu0 0.0
    %1727 = vmatpush1.msra.mxu0 0.0
    %1728 = vmatprep.subr.mxu0 0.0
    %1729 = vmatpush1.msra.mxu0 0.0
    %1730 = vmatprep.subr.mxu0 0.0
    %1731 = vmatpush1.msra.mxu0 0.0
    %1732 = vmatprep.subr.mxu0 %v1480
    %1733 = vmatpush1.msra.mxu0 %v1479
    %1734 = vmatprep.subr.mxu0 0.0
    %1735 = vmatpush2.msra.mxu0 0.0
    %1736 = vmatprep.subr.mxu0 0.0
    %1737 = vmatpush2.msra.mxu0 0.0
    %1738 = vmatprep.subr.mxu0 0.0
    %1739 = vmatpush2.msra.mxu0 0.0
    %1740 = vmatprep.subr.mxu0 0.0
    %1741 = vmatpush2.msra.mxu0 0.0
    %1742 = vmatprep.subr.mxu0 0.0
    %1743 = vmatpush2.msra.mxu0 0.0
    %1744 = vmatprep.subr.mxu0 0.0
    %1745 = vmatpush2.msra.mxu0 0.0
    %1746 = vmatprep.subr.mxu0 0.0
    %1747 = vmatpush2.msra.mxu0 0.0
    %1748 = vmatprep.subr.mxu0 0.0
    %1749 = vmatpush2.msra.mxu0 0.0
    %1750 = vmatprep.subr.mxu0 0.0
    %1751 = vmatpush2.msra.mxu0 0.0
    %1752 = vmatprep.subr.mxu0 0.0
    %1753 = vmatpush2.msra.mxu0 0.0
    %1754 = vmatprep.subr.mxu0 0.0
    %1755 = vmatpush2.msra.mxu0 0.0
    %1756 = vmatprep.subr.mxu0 0.0
    %1757 = vmatpush2.msra.mxu0 0.0
    %1758 = vmatprep.subr.mxu0 0.0
    %1759 = vmatpush2.msra.mxu0 0.0
    %1760 = vmatprep.subr.mxu0 0.0
    %1761 = vmatpush2.msra.mxu0 0.0
    %1762 = vmatprep.subr.mxu0 0.0
    %1763 = vmatpush2.msra.mxu0 0.0
    %1764 = vmatprep.subr.mxu0 0.0
    %1765 = vmatpush2.msra.mxu0 0.0
    %1766 = vmatprep.mubr.f32.mxu0 0.0
    %1767 = vmatmul.mubr.f32.gmra.mxu0 %v1629
    %v1768 = vpop.f32.mrf.mxu0
    %v1769 = vadd.f32 %v1624, %v1768
    %v1770 = vpop.f32.mrf.mxu0
    %v1771 = vadd.f32 %v1626, %v1770
    %1772 = vdwg.mxu0
    %v1773 = vld [vmem:[%s15] sm:$0xff]
    %1775 = vset.pattern.permute.xlu0 0
    %1776 = vperm.xlu0 %1775, %v1773
    %v1777 = vpop.permute.xlu0 %1776
    %v1779 = vadd.f32 %v1698, %v1777
    %v1780 = vadd.f32 %v1700, %v1777
    %v1781 = vadd.f32 %v1769, %v1777
    %v1782 = vadd.f32 %v1771, %v1777
    %v1783 = vmax.f32 %v1779, 0.0
    %v1784 = vmax.f32 %v1780, 0.0
    %v1785 = vmax.f32 %v1781, 0.0
    %v1786 = vmax.f32 %v1782, 0.0
    %1787 = vrot.lane.b32.xlu0 %v1783, 2
    %v1788 = vpop.permute.xlu0 %1787
    %1789 = vrot.lane.b32.xlu0 %v1784, 2
    %v1790 = vpop.permute.xlu0 %1789
    %1791 = vrot.lane.b32.xlu0 %v1785, 2
    %v1792 = vpop.permute.xlu0 %1791
    %1793 = vrot.lane.b32.xlu0 %v1786, 2
    %v1794 = vpop.permute.xlu0 %1793
    %v1795 = vsel %vm1142, %v1792, %v1794
    %v1796 = vsel %vm1142, %v1790, %v1792
    %v1797 = vsel %vm1142, %v1788, %v1790
    %v1798 = vsel %vm1142, %v1794, %v1788
    %v1799 = vsel %vm1151, %v1798, 0.0
    %v1800 = vsel %vm1152, %v1797, 0.0
    %v1801 = vsel %vm1153, %v1796, 0.0
    %v1802 = vsel %vm1154, %v1795, 0.0
    %v1803 = vld [vmem:[%s16] sm:$0xff]
    %v1804 = vld [vmem:[%s17] sm:$0xff]
    %v1806 = vsel %vm137, %v1804, 0
    %1808 = vmatprep.subr.mxu0 0.0
    %1809 = vmatpush1.msra.mxu0 0.0
    %1810 = vmatprep.subr.mxu0 0.0
    %1811 = vmatpush1.msra.mxu0 0.0
    %1812 = vmatprep.subr.mxu0 0.0
    %1813 = vmatpush1.msra.mxu0 0.0
    %1814 = vmatprep.subr.mxu0 0.0
    %1815 = vmatpush1.msra.mxu0 0.0
    %1816 = vmatprep.subr.mxu0 0.0
    %1817 = vmatpush1.msra.mxu0 0.0
    %1818 = vmatprep.subr.mxu0 0.0
    %1819 = vmatpush1.msra.mxu0 0.0
    %1820 = vmatprep.subr.mxu0 0.0
    %1821 = vmatpush1.msra.mxu0 0.0
    %1822 = vmatprep.subr.mxu0 0.0
    %1823 = vmatpush1.msra.mxu0 0.0
    %1824 = vmatprep.subr.mxu0 0.0
    %1825 = vmatpush1.msra.mxu0 0.0
    %1826 = vmatprep.subr.mxu0 0.0
    %1827 = vmatpush1.msra.mxu0 0.0
    %1828 = vmatprep.subr.mxu0 0.0
    %1829 = vmatpush1.msra.mxu0 0.0
    %1830 = vmatprep.subr.mxu0 0.0
    %1831 = vmatpush1.msra.mxu0 0.0
    %1832 = vmatprep.subr.mxu0 0.0
    %1833 = vmatpush1.msra.mxu0 0.0
    %1834 = vmatprep.subr.mxu0 0.0
    %1835 = vmatpush1.msra.mxu0 0.0
    %1836 = vmatprep.subr.mxu0 0.0
    %1837 = vmatpush1.msra.mxu0 0.0
    %1838 = vmatprep.subr.mxu0 %v1784
    %1839 = vmatpush1.msra.mxu0 %v1783
    %1840 = vmatprep.subr.mxu0 0.0
    %1841 = vmatpush2.msra.mxu0 0.0
    %1842 = vmatprep.subr.mxu0 0.0
    %1843 = vmatpush2.msra.mxu0 0.0
    %1844 = vmatprep.subr.mxu0 0.0
    %1845 = vmatpush2.msra.mxu0 0.0
    %1846 = vmatprep.subr.mxu0 0.0
    %1847 = vmatpush2.msra.mxu0 0.0
    %1848 = vmatprep.subr.mxu0 0.0
    %1849 = vmatpush2.msra.mxu0 0.0
    %1850 = vmatprep.subr.mxu0 0.0
    %1851 = vmatpush2.msra.mxu0 0.0
    %1852 = vmatprep.subr.mxu0 0.0
    %1853 = vmatpush2.msra.mxu0 0.0
    %1854 = vmatprep.subr.mxu0 0.0
    %1855 = vmatpush2.msra.mxu0 0.0
    %1856 = vmatprep.subr.mxu0 0.0
    %1857 = vmatpush2.msra.mxu0 0.0
    %1858 = vmatprep.subr.mxu0 0.0
    %1859 = vmatpush2.msra.mxu0 0.0
    %1860 = vmatprep.subr.mxu0 0.0
    %1861 = vmatpush2.msra.mxu0 0.0
    %1862 = vmatprep.subr.mxu0 0.0
    %1863 = vmatpush2.msra.mxu0 0.0
    %1864 = vmatprep.subr.mxu0 0.0
    %1865 = vmatpush2.msra.mxu0 0.0
    %1866 = vmatprep.subr.mxu0 0.0
    %1867 = vmatpush2.msra.mxu0 0.0
    %1868 = vmatprep.subr.mxu0 0.0
    %1869 = vmatpush2.msra.mxu0 0.0
    %1870 = vmatprep.subr.mxu0 0.0
    %1871 = vmatpush2.msra.mxu0 0.0
    %1872 = vmatprep.mubr.f32.mxu0 0.0
    %1873 = vmatmul.mubr.f32.gmra.mxu0 %v1806
    %v1874 = vpop.f32.mrf.mxu0
    %v1875 = vadd.f32 0.0, %v1874
    %v1876 = vpop.f32.mrf.mxu0
    %v1877 = vadd.f32 0.0, %v1876
    %1878 = vdwg.mxu0
    %1879 = vmatprep.subr.mxu0 0.0
    %1880 = vmatpush1.msra.mxu0 0.0
    %1881 = vmatprep.subr.mxu0 0.0
    %1882 = vmatpush1.msra.mxu0 0.0
    %1883 = vmatprep.subr.mxu0 0.0
    %1884 = vmatpush1.msra.mxu0 0.0
    %1885 = vmatprep.subr.mxu0 0.0
    %1886 = vmatpush1.msra.mxu0 0.0
    %1887 = vmatprep.subr.mxu0 0.0
    %1888 = vmatpush1.msra.mxu0 0.0
    %1889 = vmatprep.subr.mxu0 0.0
    %1890 = vmatpush1.msra.mxu0 0.0
    %1891 = vmatprep.subr.mxu0 0.0
    %1892 = vmatpush1.msra.mxu0 0.0
    %1893 = vmatprep.subr.mxu0 0.0
    %1894 = vmatpush1.msra.mxu0 0.0
    %1895 = vmatprep.subr.mxu0 0.0
    %1896 = vmatpush1.msra.mxu0 0.0
    %1897 = vmatprep.subr.mxu0 0.0
    %1898 = vmatpush1.msra.mxu0 0.0
    %1899 = vmatprep.subr.mxu0 0.0
    %1900 = vmatpush1.msra.mxu0 0.0
    %1901 = vmatprep.subr.mxu0 0.0
    %1902 = vmatpush1.msra.mxu0 0.0
    %1903 = vmatprep.subr.mxu0 0.0
    %1904 = vmatpush1.msra.mxu0 0.0
    %1905 = vmatprep.subr.mxu0 0.0
    %1906 = vmatpush1.msra.mxu0 0.0
    %1907 = vmatprep.subr.mxu0 0.0
    %1908 = vmatpush1.msra.mxu0 0.0
    %1909 = vmatprep.subr.mxu0 %v1786
    %1910 = vmatpush1.msra.mxu0 %v1785
    %1911 = vmatprep.subr.mxu0 0.0
    %1912 = vmatpush2.msra.mxu0 0.0
    %1913 = vmatprep.subr.mxu0 0.0
    %1914 = vmatpush2.msra.mxu0 0.0
    %1915 = vmatprep.subr.mxu0 0.0
    %1916 = vmatpush2.msra.mxu0 0.0
    %1917 = vmatprep.subr.mxu0 0.0
    %1918 = vmatpush2.msra.mxu0 0.0
    %1919 = vmatprep.subr.mxu0 0.0
    %1920 = vmatpush2.msra.mxu0 0.0
    %1921 = vmatprep.subr.mxu0 0.0
    %1922 = vmatpush2.msra.mxu0 0.0
    %1923 = vmatprep.subr.mxu0 0.0
    %1924 = vmatpush2.msra.mxu0 0.0
    %1925 = vmatprep.subr.mxu0 0.0
    %1926 = vmatpush2.msra.mxu0 0.0
    %1927 = vmatprep.subr.mxu0 0.0
    %1928 = vmatpush2.msra.mxu0 0.0
    %1929 = vmatprep.subr.mxu0 0.0
    %1930 = vmatpush2.msra.mxu0 0.0
    %1931 = vmatprep.subr.mxu0 0.0
    %1932 = vmatpush2.msra.mxu0 0.0
    %1933 = vmatprep.subr.mxu0 0.0
    %1934 = vmatpush2.msra.mxu0 0.0
    %1935 = vmatprep.subr.mxu0 0.0
    %1936 = vmatpush2.msra.mxu0 0.0
    %1937 = vmatprep.subr.mxu0 0.0
    %1938 = vmatpush2.msra.mxu0 0.0
    %1939 = vmatprep.subr.mxu0 0.0
    %1940 = vmatpush2.msra.mxu0 0.0
    %1941 = vmatprep.subr.mxu0 0.0
    %1942 = vmatpush2.msra.mxu0 0.0
    %1943 = vmatprep.mubr.f32.mxu0 0.0
    %1944 = vmatmul.mubr.f32.gmra.mxu0 %v1806
    %v1945 = vpop.f32.mrf.mxu0
    %v1946 = vadd.f32 0.0, %v1945
    %v1947 = vpop.f32.mrf.mxu0
    %v1948 = vadd.f32 0.0, %v1947
    %1949 = vdwg.mxu0
    %v1951 = vsel %vm137, %v1803, 0
    %1953 = vmatprep.subr.mxu0 0.0
    %1954 = vmatpush1.msra.mxu0 0.0
    %1955 = vmatprep.subr.mxu0 0.0
    %1956 = vmatpush1.msra.mxu0 0.0
    %1957 = vmatprep.subr.mxu0 0.0
    %1958 = vmatpush1.msra.mxu0 0.0
    %1959 = vmatprep.subr.mxu0 0.0
    %1960 = vmatpush1.msra.mxu0 0.0
    %1961 = vmatprep.subr.mxu0 0.0
    %1962 = vmatpush1.msra.mxu0 0.0
    %1963 = vmatprep.subr.mxu0 0.0
    %1964 = vmatpush1.msra.mxu0 0.0
    %1965 = vmatprep.subr.mxu0 0.0
    %1966 = vmatpush1.msra.mxu0 0.0
    %1967 = vmatprep.subr.mxu0 0.0
    %1968 = vmatpush1.msra.mxu0 0.0
    %1969 = vmatprep.subr.mxu0 0.0
    %1970 = vmatpush1.msra.mxu0 0.0
    %1971 = vmatprep.subr.mxu0 0.0
    %1972 = vmatpush1.msra.mxu0 0.0
    %1973 = vmatprep.subr.mxu0 0.0
    %1974 = vmatpush1.msra.mxu0 0.0
    %1975 = vmatprep.subr.mxu0 0.0
    %1976 = vmatpush1.msra.mxu0 0.0
    %1977 = vmatprep.subr.mxu0 0.0
    %1978 = vmatpush1.msra.mxu0 0.0
    %1979 = vmatprep.subr.mxu0 0.0
    %1980 = vmatpush1.msra.mxu0 0.0
    %1981 = vmatprep.subr.mxu0 0.0
    %1982 = vmatpush1.msra.mxu0 0.0
    %1983 = vmatprep.subr.mxu0 %v1800
    %1984 = vmatpush1.msra.mxu0 %v1799
    %1985 = vmatprep.subr.mxu0 0.0
    %1986 = vmatpush2.msra.mxu0 0.0
    %1987 = vmatprep.subr.mxu0 0.0
    %1988 = vmatpush2.msra.mxu0 0.0
    %1989 = vmatprep.subr.mxu0 0.0
    %1990 = vmatpush2.msra.mxu0 0.0
    %1991 = vmatprep.subr.mxu0 0.0
    %1992 = vmatpush2.msra.mxu0 0.0
    %1993 = vmatprep.subr.mxu0 0.0
    %1994 = vmatpush2.msra.mxu0 0.0
    %1995 = vmatprep.subr.mxu0 0.0
    %1996 = vmatpush2.msra.mxu0 0.0
    %1997 = vmatprep.subr.mxu0 0.0
    %1998 = vmatpush2.msra.mxu0 0.0
    %1999 = vmatprep.subr.mxu0 0.0
    %2000 = vmatpush2.msra.mxu0 0.0
    %2001 = vmatprep.subr.mxu0 0.0
    %2002 = vmatpush2.msra.mxu0 0.0
    %2003 = vmatprep.subr.mxu0 0.0
    %2004 = vmatpush2.msra.mxu0 0.0
    %2005 = vmatprep.subr.mxu0 0.0
    %2006 = vmatpush2.msra.mxu0 0.0
    %2007 = vmatprep.subr.mxu0 0.0
    %2008 = vmatpush2.msra.mxu0 0.0
    %2009 = vmatprep.subr.mxu0 0.0
    %2010 = vmatpush2.msra.mxu0 0.0
    %2011 = vmatprep.subr.mxu0 0.0
    %2012 = vmatpush2.msra.mxu0 0.0
    %2013 = vmatprep.subr.mxu0 0.0
    %2014 = vmatpush2.msra.mxu0 0.0
    %2015 = vmatprep.subr.mxu0 0.0
    %2016 = vmatpush2.msra.mxu0 0.0
    %2017 = vmatprep.mubr.f32.mxu0 0.0
    %2018 = vmatmul.mubr.f32.gmra.mxu0 %v1951
    %v2019 = vpop.f32.mrf.mxu0
    %v2020 = vadd.f32 %v1875, %v2019
    %v2021 = vpop.f32.mrf.mxu0
    %v2022 = vadd.f32 %v1877, %v2021
    %2023 = vdwg.mxu0
    %2024 = vmatprep.subr.mxu0 0.0
    %2025 = vmatpush1.msra.mxu0 0.0
    %2026 = vmatprep.subr.mxu0 0.0
    %2027 = vmatpush1.msra.mxu0 0.0
    %2028 = vmatprep.subr.mxu0 0.0
    %2029 = vmatpush1.msra.mxu0 0.0
    %2030 = vmatprep.subr.mxu0 0.0
    %2031 = vmatpush1.msra.mxu0 0.0
    %2032 = vmatprep.subr.mxu0 0.0
    %2033 = vmatpush1.msra.mxu0 0.0
    %2034 = vmatprep.subr.mxu0 0.0
    %2035 = vmatpush1.msra.mxu0 0.0
    %2036 = vmatprep.subr.mxu0 0.0
    %2037 = vmatpush1.msra.mxu0 0.0
    %2038 = vmatprep.subr.mxu0 0.0
    %2039 = vmatpush1.msra.mxu0 0.0
    %2040 = vmatprep.subr.mxu0 0.0
    %2041 = vmatpush1.msra.mxu0 0.0
    %2042 = vmatprep.subr.mxu0 0.0
    %2043 = vmatpush1.msra.mxu0 0.0
    %2044 = vmatprep.subr.mxu0 0.0
    %2045 = vmatpush1.msra.mxu0 0.0
    %2046 = vmatprep.subr.mxu0 0.0
    %2047 = vmatpush1.msra.mxu0 0.0
    %2048 = vmatprep.subr.mxu0 0.0
    %2049 = vmatpush1.msra.mxu0 0.0
    %2050 = vmatprep.subr.mxu0 0.0
    %2051 = vmatpush1.msra.mxu0 0.0
    %2052 = vmatprep.subr.mxu0 0.0
    %2053 = vmatpush1.msra.mxu0 0.0
    %2054 = vmatprep.subr.mxu0 %v1802
    %2055 = vmatpush1.msra.mxu0 %v1801
    %2056 = vmatprep.subr.mxu0 0.0
    %2057 = vmatpush2.msra.mxu0 0.0
    %2058 = vmatprep.subr.mxu0 0.0
    %2059 = vmatpush2.msra.mxu0 0.0
    %2060 = vmatprep.subr.mxu0 0.0
    %2061 = vmatpush2.msra.mxu0 0.0
    %2062 = vmatprep.subr.mxu0 0.0
    %2063 = vmatpush2.msra.mxu0 0.0
    %2064 = vmatprep.subr.mxu0 0.0
    %2065 = vmatpush2.msra.mxu0 0.0
    %2066 = vmatprep.subr.mxu0 0.0
    %2067 = vmatpush2.msra.mxu0 0.0
    %2068 = vmatprep.subr.mxu0 0.0
    %2069 = vmatpush2.msra.mxu0 0.0
    %2070 = vmatprep.subr.mxu0 0.0
    %2071 = vmatpush2.msra.mxu0 0.0
    %2072 = vmatprep.subr.mxu0 0.0
    %2073 = vmatpush2.msra.mxu0 0.0
    %2074 = vmatprep.subr.mxu0 0.0
    %2075 = vmatpush2.msra.mxu0 0.0
    %2076 = vmatprep.subr.mxu0 0.0
    %2077 = vmatpush2.msra.mxu0 0.0
    %2078 = vmatprep.subr.mxu0 0.0
    %2079 = vmatpush2.msra.mxu0 0.0
    %2080 = vmatprep.subr.mxu0 0.0
    %2081 = vmatpush2.msra.mxu0 0.0
    %2082 = vmatprep.subr.mxu0 0.0
    %2083 = vmatpush2.msra.mxu0 0.0
    %2084 = vmatprep.subr.mxu0 0.0
    %2085 = vmatpush2.msra.mxu0 0.0
    %2086 = vmatprep.subr.mxu0 0.0
    %2087 = vmatpush2.msra.mxu0 0.0
    %2088 = vmatprep.mubr.f32.mxu0 0.0
    %2089 = vmatmul.mubr.f32.gmra.mxu0 %v1951
    %v2090 = vpop.f32.mrf.mxu0
    %v2091 = vadd.f32 %v1946, %v2090
    %v2092 = vpop.f32.mrf.mxu0
    %v2093 = vadd.f32 %v1948, %v2092
    %2094 = vdwg.mxu0
    %v2095 = vld [vmem:[%s18] sm:$0xff]
    %2097 = vset.pattern.permute.xlu0 0
    %2098 = vperm.xlu0 %2097, %v2095
    %v2099 = vpop.permute.xlu0 %2098
    %v2101 = vadd.f32 %v2020, %v2099
    %v2102 = vadd.f32 %v2022, %v2099
    %v2103 = vadd.f32 %v2091, %v2099
    %v2104 = vadd.f32 %v2093, %v2099
    %v2105 = vmax.f32 %v2101, 0.0
    %v2106 = vmax.f32 %v2102, 0.0
    %v2107 = vmax.f32 %v2103, 0.0
    %v2108 = vmax.f32 %v2104, 0.0
    %v2109 = vadd.f32 %v2105, %v1130
    %v2110 = vadd.f32 %v2106, %v1131
    %v2111 = vadd.f32 %v2107, %v1132
    %v2112 = vadd.f32 %v2108, %v1133
    %v2113 = vmax.f32 %v2109, 0.0
    %v2114 = vmax.f32 %v2110, 0.0
    %v2115 = vmax.f32 %v2111, 0.0
    %v2116 = vmax.f32 %v2112, 0.0
    %2117 = vst [vmem:[#allocation2] sm:$0xff] %v2113
    %2118 = vst [vmem:[#allocation2 + $0x8] sm:$0xff] %v2114
    %2119 = vst [vmem:[#allocation2 + $0x10] sm:$0xff] %v2115
    %2120 = vst [vmem:[#allocation2 + $0x18] sm:$0xff] %v2116
    // Predicated region
    $region78: #{tpu_custom_call.1} parent=1 // pred_check
      _
    $region79: #{tpu_custom_call.1} parent=1 // pred_check_branch
      %2122 = sbr.rel (0) target = $region81
    $region80: #{tpu_custom_call.1} parent=1 // pred_region
      %s2124 = ssub.s32 512, 512
      %2125 = vsyncadd [#allocation3], %s2124
      %s2127 = sshll.u32 [#allocation2], 4
      %s2128 = int_to_ptr.vmem [resolvable:$true] %s2127
      %2130 = dma.vmem_to_hbm [thread:$0]  %s2128, 512, %s19, [#allocation3]
    $region81: #{tpu_custom_call.1} parent=1 // pred_fallthru
      _
    // Predicated region
    $region82: #{tpu_custom_call.1} parent=1 // pred_check
      _
    $region83: #{tpu_custom_call.1} parent=1 // pred_check_branch
      %2132 = sbr.rel (0) target = $region85
    $region84: #{tpu_custom_call.1} parent=1 // pred_region
      %2133 = dma.done [#allocation3], 512
    $region85: #{tpu_custom_call.1} parent=1 // pred_fallthru
      _
    %2134 = vsyncpa [#allocation3], 1

</llo_original>
